<compile_context>
chip_gen: v7x
topology: tpu7x:2x2x1
jax: 0.10.0
libtpu: 0.0.40
codegen_flags: <defaults>
</compile_context>

<pallas_src>
import functools

import jax
import jax.numpy as jnp
from jax.experimental import pallas as pl
from jax.experimental.pallas import tpu as pltpu

LANE = 128                      # vreg lane width / MXU granularity
COMPUTE_DTYPE = jnp.bfloat16    # MXU input dtype (accumulation stays f32)


# ----------------------------------------------------------------------------
# Small helpers
# ----------------------------------------------------------------------------
def _round_up(x, m):
    return ((x + m - 1) // m) * m


def _pad_axis(a, axis, target):
    cur = a.shape[axis]
    if cur == target:
        return a
    widths = [(0, 0)] * a.ndim
    widths[axis] = (0, target - cur)
    return jnp.pad(a, widths)


def _tap(start, size, stride):
    return pl.ds(start, size) if stride == 1 else pl.ds(start, size, stride)


def _vmem_limit_bytes():
    """Per-generation scoped-VMEM budget: 3/4 of physical VMEM, capped."""
    cap = None
    try:
        cap = getattr(pltpu.get_tpu_info(), "vmem_capacity_bytes", None)
    except Exception:
        cap = None
    if not cap:
        return 48 * 1024 * 1024          # conservative fallback (v7x-safe)
    return min(int(cap) * 3 // 4, 112 * 1024 * 1024)


def _pick_row_chunk(Ho, Wo, target_pixels=1024, max_chunks=32):
    """Output-row chunk so per-chunk f32 temporaries stay small (~1K pixels)."""
    rc = max(1, target_pixels // max(1, Wo))
    rc = max(rc, -(-Ho // max_chunks))   # bound the number of unrolled chunks
    return min(rc, Ho)


# ----------------------------------------------------------------------------
# Fully fused Bottleneck kernel (one image per grid step)
# ----------------------------------------------------------------------------
def _bottleneck_kernel(*refs, H, W, Ho, Wo, pad, stride, dilation,
                       row_chunk, has_ds):
    if has_ds:
        (x_ref, w1_ref, s1_ref, b1_ref, w2_ref, s2_ref, b2_ref,
         w3_ref, s3_ref, b3_ref, wd_ref, sd_ref, bd_ref,
         o_ref, h1p_ref) = refs
    else:
        (x_ref, w1_ref, s1_ref, b1_ref, w2_ref, s2_ref, b2_ref,
         w3_ref, s3_ref, b3_ref, o_ref, h1p_ref) = refs
        wd_ref = sd_ref = bd_ref = None

    Cin = x_ref.shape[-1]
    Hp, Wp, Cb = h1p_ref.shape
    Cout = o_ref.shape[-1]
    f32 = jnp.float32

    # --- zero only the halo strips; the interior is fully rewritten below ---
    h1p_ref[pl.ds(0, pad), :, :] = jnp.zeros((pad, Wp, Cb), f32)
    h1p_ref[pl.ds(pad + H, pad), :, :] = jnp.zeros((pad, Wp, Cb), f32)
    h1p_ref[:, pl.ds(0, pad), :] = jnp.zeros((Hp, pad, Cb), f32)
    h1p_ref[:, pl.ds(pad + W, pad), :] = jnp.zeros((Hp, pad, Cb), f32)

    # --- conv1 (1x1) + bn1 + ReLU -> padded VMEM scratch (stays on-chip) ----
    x2d = x_ref[...].reshape(H * W, Cin).astype(COMPUTE_DTYPE)
    h1 = jnp.dot(x2d, w1_ref[...], preferred_element_type=f32)
    h1 = jnp.maximum(h1 * s1_ref[...] + b1_ref[...], 0.0)
    h1p_ref[pl.ds(pad, H), pl.ds(pad, W), :] = h1.reshape(H, W, Cb)

    s2v, b2v = s2_ref[...], b2_ref[...]
    s3v, b3v = s3_ref[...], b3_ref[...]
    if has_ds:
        sdv, bdv = sd_ref[...], bd_ref[...]

    # --- conv2(3x3)+bn2+relu, conv3(1x1)+bn3, residual, relu : row chunks ---
    for r0 in range(0, Ho, row_chunk):
        rows = min(row_chunk, Ho - r0)

        acc = None                               # chunk-local f32 accumulator
        for ky in range(3):
            for kx in range(3):
                patch = h1p_ref[
                    _tap(r0 * stride + ky * dilation, rows, stride),
                    _tap(kx * dilation, Wo, stride), :]
                lhs = patch.reshape(rows * Wo, Cb).astype(COMPUTE_DTYPE)
                part = jnp.dot(lhs, w2_ref[3 * ky + kx],
                               preferred_element_type=f32)
                acc = part if acc is None else acc + part
        h2 = jnp.maximum(acc * s2v + b2v, 0.0).astype(COMPUTE_DTYPE)

        y = jnp.dot(h2, w3_ref[...], preferred_element_type=f32)
        y = y * s3v + b3v

        if has_ds:
            xid = x_ref[_tap(r0 * stride, rows, stride),
                        _tap(0, Wo, stride), :]
            xid = xid.reshape(rows * Wo, Cin).astype(COMPUTE_DTYPE)
            ident = jnp.dot(xid, wd_ref[...], preferred_element_type=f32)
            ident = ident * sdv + bdv
        else:  # wrapper guarantees stride == 1 and Cin == Cout here
            ident = x_ref[pl.ds(r0, rows), :, :].reshape(rows * Wo, Cin)
            ident = ident.astype(f32)

        out = jnp.maximum(y + ident, 0.0)
        o_ref[pl.ds(r0, rows), :, :] = (
            out.reshape(rows, Wo, Cout).astype(o_ref.dtype))


# ----------------------------------------------------------------------------
# Bottleneck forward (wrapper mirrors Bottleneck.forward(x, dummy))
# ----------------------------------------------------------------------------
def bottleneck_forward(x_nchw, dummy, params, *, stride, dilation):
    del dummy  # unused, same as the PyTorch module
    x = jnp.transpose(x_nchw, (0, 2, 3, 1))       # NCHW -> NHWC
    N, H, W, Cin = x.shape
    Cb = params["w1"].shape[1]
    Cout = params["w3"].shape[1]
    has_ds = "wd" in params
    if not has_ds and (stride != 1 or Cin != Cout):
        raise ValueError("identity residual requires stride == 1 and Cin == Cout")

    pad = dilation                                # per the module: padding = dilation
    Hp, Wp = H + 2 * pad, W + 2 * pad
    Ho = (H + 2 * pad - 2 * dilation - 1) // stride + 1
    Wo = (W + 2 * pad - 2 * dilation - 1) // stride + 1

    # Lane-dense channel padding (no-op when channels are multiples of 128).
    Cin_p, Cb_p, Cout_p = (_round_up(c, LANE) for c in (Cin, Cb, Cout))
    cd = COMPUTE_DTYPE

    xp = _pad_axis(x, 3, Cin_p)                   # keep input dtype (f32 identity add)
    w1 = _pad_axis(_pad_axis(params["w1"], 0, Cin_p), 1, Cb_p).astype(cd)
    w2 = _pad_axis(_pad_axis(params["w2"], 1, Cb_p), 2, Cb_p).astype(cd)
    w3 = _pad_axis(_pad_axis(params["w3"], 0, Cb_p), 1, Cout_p).astype(cd)
    s1 = _pad_axis(params["s1"], 0, Cb_p).reshape(1, Cb_p)
    b1 = _pad_axis(params["b1"], 0, Cb_p).reshape(1, Cb_p)
    s2 = _pad_axis(params["s2"], 0, Cb_p).reshape(1, Cb_p)
    b2 = _pad_axis(params["b2"], 0, Cb_p).reshape(1, Cb_p)
    s3 = _pad_axis(params["s3"], 0, Cout_p).reshape(1, Cout_p)
    b3 = _pad_axis(params["b3"], 0, Cout_p).reshape(1, Cout_p)

    vec_cb = pl.BlockSpec((1, Cb_p), lambda n: (0, 0))
    vec_co = pl.BlockSpec((1, Cout_p), lambda n: (0, 0))
    in_specs = [
        pl.BlockSpec((None, H, W, Cin_p), lambda n: (n, 0, 0, 0)),
        pl.BlockSpec((Cin_p, Cb_p), lambda n: (0, 0)),
        vec_cb, vec_cb,
        pl.BlockSpec((9, Cb_p, Cb_p), lambda n: (0, 0, 0)),
        vec_cb, vec_cb,
        pl.BlockSpec((Cb_p, Cout_p), lambda n: (0, 0)),
        vec_co, vec_co,
    ]
    args = [xp, w1, s1, b1, w2, s2, b2, w3, s3, b3]
    if has_ds:
        wd = _pad_axis(_pad_axis(params["wd"], 0, Cin_p), 1, Cout_p).astype(cd)
        sd = _pad_axis(params["sd"], 0, Cout_p).reshape(1, Cout_p)
        bd = _pad_axis(params["bd"], 0, Cout_p).reshape(1, Cout_p)
        in_specs += [pl.BlockSpec((Cin_p, Cout_p), lambda n: (0, 0)),
                     vec_co, vec_co]
        args += [wd, sd, bd]

    kernel = functools.partial(
        _bottleneck_kernel, H=H, W=W, Ho=Ho, Wo=Wo, pad=pad,
        stride=stride, dilation=dilation,
        row_chunk=_pick_row_chunk(Ho, Wo), has_ds=has_ds)

    out = pl.pallas_call(
        kernel,
        out_shape=jax.ShapeDtypeStruct((N, Ho, Wo, Cout_p), x.dtype),
        grid=(N,),
        in_specs=in_specs,
        out_specs=pl.BlockSpec((None, Ho, Wo, Cout_p), lambda n: (n, 0, 0, 0)),
        scratch_shapes=[pltpu.VMEM((Hp, Wp, Cb_p), jnp.float32)],
        compiler_params=pltpu.CompilerParams(
            dimension_semantics=("parallel",),
            vmem_limit_bytes=_vmem_limit_bytes()),
    )(*args)

    out = out[..., :Cout]
    return jnp.transpose(out, (0, 3, 1, 2))       # NHWC -> NCHW


# ----------------------------------------------------------------------------
# Deterministic parameter init (folded frozen BatchNorm)
# ----------------------------------------------------------------------------
def _make_bn(key, C, eps=1e-5):
    k1, k2, k3, k4 = jax.random.split(key, 4)
    gamma = jax.random.uniform(k1, (C,), jnp.float32, 0.5, 1.5)
    beta = 0.1 * jax.random.normal(k2, (C,), jnp.float32)
    mean = 0.1 * jax.random.normal(k3, (C,), jnp.float32)
    var = jax.random.uniform(k4, (C,), jnp.float32, 0.5, 1.5)
    scale = gamma / jnp.sqrt(var + eps)
    shift = beta - mean * scale
    return scale, shift


def init_params(key, Cin, Cb, Cout, use_downsample):
    ks = jax.random.split(key, 8)
    params = {
        "w1": 0.1 * jax.random.normal(ks[0], (Cin, Cb), jnp.float32),
        "w2": 0.1 * jax.random.normal(ks[1], (9, Cb, Cb), jnp.float32),
        "w3": 0.1 * jax.random.normal(ks[2], (Cb, Cout), jnp.float32),
    }
    params["s1"], params["b1"] = _make_bn(ks[3], Cb)
    params["s2"], params["b2"] = _make_bn(ks[4], Cb)
    params["s3"], params["b3"] = _make_bn(ks[5], Cout)
    if use_downsample:
        params["wd"] = 0.1 * jax.random.normal(ks[6], (Cin, Cout), jnp.float32)
        params["sd"], params["bd"] = _make_bn(ks[7], Cout)
    return params


# ----------------------------------------------------------------------------
# Pure-JAX reference (mirrors the kernel's bf16 matmuls / f32 accumulation)
# ----------------------------------------------------------------------------
def reference(x_nchw, params, stride, dilation):
    cd = COMPUTE_DTYPE
    x = jnp.transpose(x_nchw, (0, 2, 3, 1))
    Cb = params["w1"].shape[1]

    def mm(h, w):
        return jax.lax.dot_general(
            h.astype(cd), w.astype(cd),
            (((h.ndim - 1,), (0,)), ((), ())),
            preferred_element_type=jnp.float32)

    h = jnp.maximum(mm(x, params["w1"]) * params["s1"] + params["b1"], 0.0)
    w2 = params["w2"].reshape(3, 3, Cb, Cb)
    h = jax.lax.conv_general_dilated(
        h.astype(cd), w2.astype(cd), (stride, stride),
        padding=[(dilation, dilation), (dilation, dilation)],
        rhs_dilation=(dilation, dilation),
        dimension_numbers=("NHWC", "HWIO", "NHWC"),
        preferred_element_type=jnp.float32)
    h = jnp.maximum(h * params["s2"] + params["b2"], 0.0)
    y = mm(h, params["w3"]) * params["s3"] + params["b3"]
    if "wd" in params:
        xs = x if stride == 1 else x[:, ::stride, ::stride, :]
        ident = mm(xs, params["wd"]) * params["sd"] + params["bd"]
    else:
        ident = x
    out = jnp.maximum(y + ident, 0.0)
    return jnp.transpose(out, (0, 3, 1, 2))


# ----------------------------------------------------------------------------
if __name__ == "__main__":
    key = jax.random.PRNGKey(0)
    kx, kp, kx2, kp2 = jax.random.split(key, 4)
    dummy = jnp.zeros((1,), jnp.float32)

    # Test 1: projection shortcut (Cin != Cout -> 1x1 downsample), stride 1.
    N, Cin, H, W = 2, 4, 16, 16
    Cb, Cout = 8, 16
    stride, dilation = 1, 1
    x = jax.random.normal(kx, (N, Cin, H, W), jnp.float32)
    params = init_params(kp, Cin, Cb, Cout, use_downsample=True)
    out = jax.block_until_ready(
        bottleneck_forward(x, dummy, params, stride=stride, dilation=dilation))
    ref = reference(x, params, stride, dilation)
    assert out.shape == (N, Cout, H, W), out.shape
    err = float(jnp.max(jnp.abs(out - ref)))
    assert err < 5e-3, f"downsample path max abs error {err}"

    # Test 2: identity shortcut (Cin == Cout, no downsample), stride 1.
    Cin2 = Cout2 = 16
    x2 = jax.random.normal(kx2, (N, Cin2, H, W), jnp.float32)
    params2 = init_params(kp2, Cin2, Cb, Cout2, use_downsample=False)
    out2 = jax.block_until_ready(
        bottleneck_forward(x2, dummy, params2, stride=1, dilation=1))
    ref2 = reference(x2, params2, 1, 1)
    assert out2.shape == (N, Cout2, H, W), out2.shape
    err2 = float(jnp.max(jnp.abs(out2 - ref2)))
    assert err2 < 5e-3, f"identity path max abs error {err2}"

    print("KERNEL_OK")
</pallas_src>

<mosaic_0001>
module attributes {stable_mosaic.version = 11 : i64} {
  func.func @_bottleneck_kernel(%arg0: i32, %arg1: memref<1x16x16x128xf32, #tpu.memory_space<vmem>>, %arg2: memref<128x128xbf16, #tpu.memory_space<vmem>>, %arg3: memref<1x128xf32, #tpu.memory_space<vmem>>, %arg4: memref<1x128xf32, #tpu.memory_space<vmem>>, %arg5: memref<9x128x128xbf16, #tpu.memory_space<vmem>>, %arg6: memref<1x128xf32, #tpu.memory_space<vmem>>, %arg7: memref<1x128xf32, #tpu.memory_space<vmem>>, %arg8: memref<128x128xbf16, #tpu.memory_space<vmem>>, %arg9: memref<1x128xf32, #tpu.memory_space<vmem>>, %arg10: memref<1x128xf32, #tpu.memory_space<vmem>>, %arg11: memref<128x128xbf16, #tpu.memory_space<vmem>>, %arg12: memref<1x128xf32, #tpu.memory_space<vmem>>, %arg13: memref<1x128xf32, #tpu.memory_space<vmem>>, %arg14: memref<1x16x16x128xf32, #tpu.memory_space<vmem>>, %arg15: memref<18x18x128xf32, #tpu.memory_space<vmem>>) attributes {dimension_semantics = [#tpu.dimension_semantics<parallel>], iteration_bounds = array<i64: 2>, scalar_prefetch = 0 : i64, scratch_operands = 1 : i64, tpu.core_type = #tpu.core_type<tc>, window_params = [{transform_indices = @transform_0, window_bounds = array<i64: 1, 16, 16, 128>}, {pipeline_mode = #tpu.pipeline_mode<synchronous>, transform_indices = @transform_1, window_bounds = array<i64: 128, 128>}, {pipeline_mode = #tpu.pipeline_mode<synchronous>, transform_indices = @transform_2, window_bounds = array<i64: 1, 128>}, {pipeline_mode = #tpu.pipeline_mode<synchronous>, transform_indices = @transform_3, window_bounds = array<i64: 1, 128>}, {pipeline_mode = #tpu.pipeline_mode<synchronous>, transform_indices = @transform_4, window_bounds = array<i64: 9, 128, 128>}, {pipeline_mode = #tpu.pipeline_mode<synchronous>, transform_indices = @transform_5, window_bounds = array<i64: 1, 128>}, {pipeline_mode = #tpu.pipeline_mode<synchronous>, transform_indices = @transform_6, window_bounds = array<i64: 1, 128>}, {pipeline_mode = #tpu.pipeline_mode<synchronous>, transform_indices = @transform_7, window_bounds = array<i64: 128, 128>}, {pipeline_mode = #tpu.pipeline_mode<synchronous>, transform_indices = @transform_8, window_bounds = array<i64: 1, 128>}, {pipeline_mode = #tpu.pipeline_mode<synchronous>, transform_indices = @transform_9, window_bounds = array<i64: 1, 128>}, {pipeline_mode = #tpu.pipeline_mode<synchronous>, transform_indices = @transform_10, window_bounds = array<i64: 128, 128>}, {pipeline_mode = #tpu.pipeline_mode<synchronous>, transform_indices = @transform_11, window_bounds = array<i64: 1, 128>}, {pipeline_mode = #tpu.pipeline_mode<synchronous>, transform_indices = @transform_12, window_bounds = array<i64: 1, 128>}, {transform_indices = @transform_13, window_bounds = array<i64: 1, 16, 16, 128>}]} {
    %cst = arith.constant 0.000000e+00 : f32
    %0 = vector.broadcast %cst : f32 to vector<1x18x128xf32>
    %c0 = arith.constant 0 : index
    %c0_0 = arith.constant 0 : index
    %c0_1 = arith.constant 0 : index
    %1 = vector.load %arg15[%c0, %c0_0, %c0_1] : memref<18x18x128xf32, #tpu.memory_space<vmem>>, vector<1x18x128xf32>
    tpu.vector_store %arg15[%c0, %c0_0, %c0_1], %0 {strides = array<i32>} : memref<18x18x128xf32, #tpu.memory_space<vmem>>, vector<1x18x128xf32>,
    %cst_2 = arith.constant 0.000000e+00 : f32
    %2 = vector.broadcast %cst_2 : f32 to vector<1x18x128xf32>
    %c17 = arith.constant 17 : index
    %c0_3 = arith.constant 0 : index
    %c0_4 = arith.constant 0 : index
    %3 = vector.load %arg15[%c17, %c0_3, %c0_4] : memref<18x18x128xf32, #tpu.memory_space<vmem>>, vector<1x18x128xf32>
    tpu.vector_store %arg15[%c17, %c0_3, %c0_4], %2 {strides = array<i32>} : memref<18x18x128xf32, #tpu.memory_space<vmem>>, vector<1x18x128xf32>,
    %cst_5 = arith.constant 0.000000e+00 : f32
    %4 = vector.broadcast %cst_5 : f32 to vector<18x1x128xf32>
    %c0_6 = arith.constant 0 : index
    %c0_7 = arith.constant 0 : index
    %c0_8 = arith.constant 0 : index
    %5 = vector.load %arg15[%c0_6, %c0_7, %c0_8] : memref<18x18x128xf32, #tpu.memory_space<vmem>>, vector<18x1x128xf32>
    tpu.vector_store %arg15[%c0_6, %c0_7, %c0_8], %4 {strides = array<i32>} : memref<18x18x128xf32, #tpu.memory_space<vmem>>, vector<18x1x128xf32>,
    %cst_9 = arith.constant 0.000000e+00 : f32
    %6 = vector.broadcast %cst_9 : f32 to vector<18x1x128xf32>
    %c0_10 = arith.constant 0 : index
    %c17_11 = arith.constant 17 : index
    %c0_12 = arith.constant 0 : index
    %7 = vector.load %arg15[%c0_10, %c17_11, %c0_12] : memref<18x18x128xf32, #tpu.memory_space<vmem>>, vector<18x1x128xf32>
    tpu.vector_store %arg15[%c0_10, %c17_11, %c0_12], %6 {strides = array<i32>} : memref<18x18x128xf32, #tpu.memory_space<vmem>>, vector<18x1x128xf32>,
    %c0_13 = arith.constant 0 : index
    %c0_14 = arith.constant 0 : index
    %c0_15 = arith.constant 0 : index
    %c0_16 = arith.constant 0 : index
    %8 = vector.load %arg1[%c0_13, %c0_14, %c0_15, %c0_16] : memref<1x16x16x128xf32, #tpu.memory_space<vmem>>, vector<1x16x16x128xf32>
    %9 = vector.shape_cast %8 : vector<1x16x16x128xf32> to vector<16x16x128xf32>
    %10 = vector.shape_cast %9 : vector<16x16x128xf32> to vector<256x128xf32>
    %11 = arith.truncf %10 : vector<256x128xf32> to vector<256x128xbf16>
    %c0_17 = arith.constant 0 : index
    %c0_18 = arith.constant 0 : index
    %12 = vector.load %arg2[%c0_17, %c0_18] : memref<128x128xbf16, #tpu.memory_space<vmem>>, vector<128x128xbf16>
    %cst_19 = arith.constant dense<0.000000e+00> : vector<256x128xf32>
    %13 = tpu.matmul %11, %12, %cst_19 {dimension_numbers = #tpu.dot_dimension_numbers<[1], [0], [0], [1], [0, 0, 1, 1], [], []>} : vector<256x128xbf16>, vector<128x128xbf16>, vector<256x128xf32> -> vector<256x128xf32>
    %c0_20 = arith.constant 0 : index
    %c0_21 = arith.constant 0 : index
    %14 = vector.load %arg3[%c0_20, %c0_21] : memref<1x128xf32, #tpu.memory_space<vmem>>, vector<1x128xf32>
    %15 = vector.broadcast %14 : vector<1x128xf32> to vector<256x128xf32>
    %16 = arith.mulf %13, %15 : vector<256x128xf32>
    %c0_22 = arith.constant 0 : index
    %c0_23 = arith.constant 0 : index
    %17 = vector.load %arg4[%c0_22, %c0_23] : memref<1x128xf32, #tpu.memory_space<vmem>>, vector<1x128xf32>
    %18 = vector.broadcast %17 : vector<1x128xf32> to vector<256x128xf32>
    %19 = arith.addf %16, %18 : vector<256x128xf32>
    %cst_24 = arith.constant 0.000000e+00 : f32
    %20 = vector.broadcast %cst_24 : f32 to vector<256x128xf32>
    %21 = arith.maximumf %19, %20 : vector<256x128xf32>
    %22 = vector.shape_cast %21 : vector<256x128xf32> to vector<16x16x128xf32>
    %c1 = arith.constant 1 : index
    %c1_25 = arith.constant 1 : index
    %c0_26 = arith.constant 0 : index
    %23 = vector.load %arg15[%c1, %c1_25, %c0_26] : memref<18x18x128xf32, #tpu.memory_space<vmem>>, vector<16x16x128xf32>
    tpu.vector_store %arg15[%c1, %c1_25, %c0_26], %22 {strides = array<i32>} : memref<18x18x128xf32, #tpu.memory_space<vmem>>, vector<16x16x128xf32>,
    %c0_27 = arith.constant 0 : index
    %c0_28 = arith.constant 0 : index
    %24 = vector.load %arg6[%c0_27, %c0_28] : memref<1x128xf32, #tpu.memory_space<vmem>>, vector<1x128xf32>
    %c0_29 = arith.constant 0 : index
    %c0_30 = arith.constant 0 : index
    %25 = vector.load %arg7[%c0_29, %c0_30] : memref<1x128xf32, #tpu.memory_space<vmem>>, vector<1x128xf32>
    %c0_31 = arith.constant 0 : index
    %c0_32 = arith.constant 0 : index
    %26 = vector.load %arg9[%c0_31, %c0_32] : memref<1x128xf32, #tpu.memory_space<vmem>>, vector<1x128xf32>
    %c0_33 = arith.constant 0 : index
    %c0_34 = arith.constant 0 : index
    %27 = vector.load %arg10[%c0_33, %c0_34] : memref<1x128xf32, #tpu.memory_space<vmem>>, vector<1x128xf32>
    %c0_35 = arith.constant 0 : index
    %c0_36 = arith.constant 0 : index
    %28 = vector.load %arg12[%c0_35, %c0_36] : memref<1x128xf32, #tpu.memory_space<vmem>>, vector<1x128xf32>
    %c0_37 = arith.constant 0 : index
    %c0_38 = arith.constant 0 : index
    %29 = vector.load %arg13[%c0_37, %c0_38] : memref<1x128xf32, #tpu.memory_space<vmem>>, vector<1x128xf32>
    %c0_39 = arith.constant 0 : index
    %c0_40 = arith.constant 0 : index
    %c0_41 = arith.constant 0 : index
    %30 = vector.load %arg15[%c0_39, %c0_40, %c0_41] : memref<18x18x128xf32, #tpu.memory_space<vmem>>, vector<16x16x128xf32>
    %31 = vector.shape_cast %30 : vector<16x16x128xf32> to vector<256x128xf32>
    %32 = arith.truncf %31 : vector<256x128xf32> to vector<256x128xbf16>
    %c0_42 = arith.constant 0 : index
    %c0_43 = arith.constant 0 : index
    %c0_44 = arith.constant 0 : index
    %33 = vector.load %arg5[%c0_42, %c0_43, %c0_44] : memref<9x128x128xbf16, #tpu.memory_space<vmem>>, vector<1x128x128xbf16>
    %34 = vector.shape_cast %33 : vector<1x128x128xbf16> to vector<128x128xbf16>
    %cst_45 = arith.constant dense<0.000000e+00> : vector<256x128xf32>
    %35 = tpu.matmul %32, %34, %cst_45 {dimension_numbers = #tpu.dot_dimension_numbers<[1], [0], [0], [1], [0, 0, 1, 1], [], []>} : vector<256x128xbf16>, vector<128x128xbf16>, vector<256x128xf32> -> vector<256x128xf32>
    %c0_46 = arith.constant 0 : index
    %c1_47 = arith.constant 1 : index
    %c0_48 = arith.constant 0 : index
    %36 = vector.load %arg15[%c0_46, %c1_47, %c0_48] : memref<18x18x128xf32, #tpu.memory_space<vmem>>, vector<16x16x128xf32>
    %37 = vector.shape_cast %36 : vector<16x16x128xf32> to vector<256x128xf32>
    %38 = arith.truncf %37 : vector<256x128xf32> to vector<256x128xbf16>
    %c1_49 = arith.constant 1 : index
    %c0_50 = arith.constant 0 : index
    %c0_51 = arith.constant 0 : index
    %39 = vector.load %arg5[%c1_49, %c0_50, %c0_51] : memref<9x128x128xbf16, #tpu.memory_space<vmem>>, vector<1x128x128xbf16>
    %40 = vector.shape_cast %39 : vector<1x128x128xbf16> to vector<128x128xbf16>
    %cst_52 = arith.constant dense<0.000000e+00> : vector<256x128xf32>
    %41 = tpu.matmul %38, %40, %cst_52 {dimension_numbers = #tpu.dot_dimension_numbers<[1], [0], [0], [1], [0, 0, 1, 1], [], []>} : vector<256x128xbf16>, vector<128x128xbf16>, vector<256x128xf32> -> vector<256x128xf32>
    %42 = arith.addf %35, %41 : vector<256x128xf32>
    %c0_53 = arith.constant 0 : index
    %c2 = arith.constant 2 : index
    %c0_54 = arith.constant 0 : index
    %43 = vector.load %arg15[%c0_53, %c2, %c0_54] : memref<18x18x128xf32, #tpu.memory_space<vmem>>, vector<16x16x128xf32>
    %44 = vector.shape_cast %43 : vector<16x16x128xf32> to vector<256x128xf32>
    %45 = arith.truncf %44 : vector<256x128xf32> to vector<256x128xbf16>
    %c2_55 = arith.constant 2 : index
    %c0_56 = arith.constant 0 : index
    %c0_57 = arith.constant 0 : index
    %46 = vector.load %arg5[%c2_55, %c0_56, %c0_57] : memref<9x128x128xbf16, #tpu.memory_space<vmem>>, vector<1x128x128xbf16>
    %47 = vector.shape_cast %46 : vector<1x128x128xbf16> to vector<128x128xbf16>
    %cst_58 = arith.constant dense<0.000000e+00> : vector<256x128xf32>
    %48 = tpu.matmul %45, %47, %cst_58 {dimension_numbers = #tpu.dot_dimension_numbers<[1], [0], [0], [1], [0, 0, 1, 1], [], []>} : vector<256x128xbf16>, vector<128x128xbf16>, vector<256x128xf32> -> vector<256x128xf32>
    %49 = arith.addf %42, %48 : vector<256x128xf32>
    %c1_59 = arith.constant 1 : index
    %c0_60 = arith.constant 0 : index
    %c0_61 = arith.constant 0 : index
    %50 = vector.load %arg15[%c1_59, %c0_60, %c0_61] : memref<18x18x128xf32, #tpu.memory_space<vmem>>, vector<16x16x128xf32>
    %51 = vector.shape_cast %50 : vector<16x16x128xf32> to vector<256x128xf32>
    %52 = arith.truncf %51 : vector<256x128xf32> to vector<256x128xbf16>
    %c3 = arith.constant 3 : index
    %c0_62 = arith.constant 0 : index
    %c0_63 = arith.constant 0 : index
    %53 = vector.load %arg5[%c3, %c0_62, %c0_63] : memref<9x128x128xbf16, #tpu.memory_space<vmem>>, vector<1x128x128xbf16>
    %54 = vector.shape_cast %53 : vector<1x128x128xbf16> to vector<128x128xbf16>
    %cst_64 = arith.constant dense<0.000000e+00> : vector<256x128xf32>
    %55 = tpu.matmul %52, %54, %cst_64 {dimension_numbers = #tpu.dot_dimension_numbers<[1], [0], [0], [1], [0, 0, 1, 1], [], []>} : vector<256x128xbf16>, vector<128x128xbf16>, vector<256x128xf32> -> vector<256x128xf32>
    %56 = arith.addf %49, %55 : vector<256x128xf32>
    %c1_65 = arith.constant 1 : index
    %c1_66 = arith.constant 1 : index
    %c0_67 = arith.constant 0 : index
    %57 = vector.load %arg15[%c1_65, %c1_66, %c0_67] : memref<18x18x128xf32, #tpu.memory_space<vmem>>, vector<16x16x128xf32>
    %58 = vector.shape_cast %57 : vector<16x16x128xf32> to vector<256x128xf32>
    %59 = arith.truncf %58 : vector<256x128xf32> to vector<256x128xbf16>
    %c4 = arith.constant 4 : index
    %c0_68 = arith.constant 0 : index
    %c0_69 = arith.constant 0 : index
    %60 = vector.load %arg5[%c4, %c0_68, %c0_69] : memref<9x128x128xbf16, #tpu.memory_space<vmem>>, vector<1x128x128xbf16>
    %61 = vector.shape_cast %60 : vector<1x128x128xbf16> to vector<128x128xbf16>
    %cst_70 = arith.constant dense<0.000000e+00> : vector<256x128xf32>
    %62 = tpu.matmul %59, %61, %cst_70 {dimension_numbers = #tpu.dot_dimension_numbers<[1], [0], [0], [1], [0, 0, 1, 1], [], []>} : vector<256x128xbf16>, vector<128x128xbf16>, vector<256x128xf32> -> vector<256x128xf32>
    %63 = arith.addf %56, %62 : vector<256x128xf32>
    %c1_71 = arith.constant 1 : index
    %c2_72 = arith.constant 2 : index
    %c0_73 = arith.constant 0 : index
    %64 = vector.load %arg15[%c1_71, %c2_72, %c0_73] : memref<18x18x128xf32, #tpu.memory_space<vmem>>, vector<16x16x128xf32>
    %65 = vector.shape_cast %64 : vector<16x16x128xf32> to vector<256x128xf32>
    %66 = arith.truncf %65 : vector<256x128xf32> to vector<256x128xbf16>
    %c5 = arith.constant 5 : index
    %c0_74 = arith.constant 0 : index
    %c0_75 = arith.constant 0 : index
    %67 = vector.load %arg5[%c5, %c0_74, %c0_75] : memref<9x128x128xbf16, #tpu.memory_space<vmem>>, vector<1x128x128xbf16>
    %68 = vector.shape_cast %67 : vector<1x128x128xbf16> to vector<128x128xbf16>
    %cst_76 = arith.constant dense<0.000000e+00> : vector<256x128xf32>
    %69 = tpu.matmul %66, %68, %cst_76 {dimension_numbers = #tpu.dot_dimension_numbers<[1], [0], [0], [1], [0, 0, 1, 1], [], []>} : vector<256x128xbf16>, vector<128x128xbf16>, vector<256x128xf32> -> vector<256x128xf32>
    %70 = arith.addf %63, %69 : vector<256x128xf32>
    %c2_77 = arith.constant 2 : index
    %c0_78 = arith.constant 0 : index
    %c0_79 = arith.constant 0 : index
    %71 = vector.load %arg15[%c2_77, %c0_78, %c0_79] : memref<18x18x128xf32, #tpu.memory_space<vmem>>, vector<16x16x128xf32>
    %72 = vector.shape_cast %71 : vector<16x16x128xf32> to vector<256x128xf32>
    %73 = arith.truncf %72 : vector<256x128xf32> to vector<256x128xbf16>
    %c6 = arith.constant 6 : index
    %c0_80 = arith.constant 0 : index
    %c0_81 = arith.constant 0 : index
    %74 = vector.load %arg5[%c6, %c0_80, %c0_81] : memref<9x128x128xbf16, #tpu.memory_space<vmem>>, vector<1x128x128xbf16>
    %75 = vector.shape_cast %74 : vector<1x128x128xbf16> to vector<128x128xbf16>
    %cst_82 = arith.constant dense<0.000000e+00> : vector<256x128xf32>
    %76 = tpu.matmul %73, %75, %cst_82 {dimension_numbers = #tpu.dot_dimension_numbers<[1], [0], [0], [1], [0, 0, 1, 1], [], []>} : vector<256x128xbf16>, vector<128x128xbf16>, vector<256x128xf32> -> vector<256x128xf32>
    %77 = arith.addf %70, %76 : vector<256x128xf32>
    %c2_83 = arith.constant 2 : index
    %c1_84 = arith.constant 1 : index
    %c0_85 = arith.constant 0 : index
    %78 = vector.load %arg15[%c2_83, %c1_84, %c0_85] : memref<18x18x128xf32, #tpu.memory_space<vmem>>, vector<16x16x128xf32>
    %79 = vector.shape_cast %78 : vector<16x16x128xf32> to vector<256x128xf32>
    %80 = arith.truncf %79 : vector<256x128xf32> to vector<256x128xbf16>
    %c7 = arith.constant 7 : index
    %c0_86 = arith.constant 0 : index
    %c0_87 = arith.constant 0 : index
    %81 = vector.load %arg5[%c7, %c0_86, %c0_87] : memref<9x128x128xbf16, #tpu.memory_space<vmem>>, vector<1x128x128xbf16>
    %82 = vector.shape_cast %81 : vector<1x128x128xbf16> to vector<128x128xbf16>
    %cst_88 = arith.constant dense<0.000000e+00> : vector<256x128xf32>
    %83 = tpu.matmul %80, %82, %cst_88 {dimension_numbers = #tpu.dot_dimension_numbers<[1], [0], [0], [1], [0, 0, 1, 1], [], []>} : vector<256x128xbf16>, vector<128x128xbf16>, vector<256x128xf32> -> vector<256x128xf32>
    %84 = arith.addf %77, %83 : vector<256x128xf32>
    %c2_89 = arith.constant 2 : index
    %c2_90 = arith.constant 2 : index
    %c0_91 = arith.constant 0 : index
    %85 = vector.load %arg15[%c2_89, %c2_90, %c0_91] : memref<18x18x128xf32, #tpu.memory_space<vmem>>, vector<16x16x128xf32>
    %86 = vector.shape_cast %85 : vector<16x16x128xf32> to vector<256x128xf32>
    %87 = arith.truncf %86 : vector<256x128xf32> to vector<256x128xbf16>
    %c8 = arith.constant 8 : index
    %c0_92 = arith.constant 0 : index
    %c0_93 = arith.constant 0 : index
    %88 = vector.load %arg5[%c8, %c0_92, %c0_93] : memref<9x128x128xbf16, #tpu.memory_space<vmem>>, vector<1x128x128xbf16>
    %89 = vector.shape_cast %88 : vector<1x128x128xbf16> to vector<128x128xbf16>
    %cst_94 = arith.constant dense<0.000000e+00> : vector<256x128xf32>
    %90 = tpu.matmul %87, %89, %cst_94 {dimension_numbers = #tpu.dot_dimension_numbers<[1], [0], [0], [1], [0, 0, 1, 1], [], []>} : vector<256x128xbf16>, vector<128x128xbf16>, vector<256x128xf32> -> vector<256x128xf32>
    %91 = arith.addf %84, %90 : vector<256x128xf32>
    %92 = vector.broadcast %24 : vector<1x128xf32> to vector<256x128xf32>
    %93 = arith.mulf %91, %92 : vector<256x128xf32>
    %94 = vector.broadcast %25 : vector<1x128xf32> to vector<256x128xf32>
    %95 = arith.addf %93, %94 : vector<256x128xf32>
    %cst_95 = arith.constant 0.000000e+00 : f32
    %96 = vector.broadcast %cst_95 : f32 to vector<256x128xf32>
    %97 = arith.maximumf %95, %96 : vector<256x128xf32>
    %98 = arith.truncf %97 : vector<256x128xf32> to vector<256x128xbf16>
    %c0_96 = arith.constant 0 : index
    %c0_97 = arith.constant 0 : index
    %99 = vector.load %arg8[%c0_96, %c0_97] : memref<128x128xbf16, #tpu.memory_space<vmem>>, vector<128x128xbf16>
    %cst_98 = arith.constant dense<0.000000e+00> : vector<256x128xf32>
    %100 = tpu.matmul %98, %99, %cst_98 {dimension_numbers = #tpu.dot_dimension_numbers<[1], [0], [0], [1], [0, 0, 1, 1], [], []>} : vector<256x128xbf16>, vector<128x128xbf16>, vector<256x128xf32> -> vector<256x128xf32>
    %101 = vector.broadcast %26 : vector<1x128xf32> to vector<256x128xf32>
    %102 = arith.mulf %100, %101 : vector<256x128xf32>
    %103 = vector.broadcast %27 : vector<1x128xf32> to vector<256x128xf32>
    %104 = arith.addf %102, %103 : vector<256x128xf32>
    %c0_99 = arith.constant 0 : index
    %c0_100 = arith.constant 0 : index
    %c0_101 = arith.constant 0 : index
    %c0_102 = arith.constant 0 : index
    %105 = vector.load %arg1[%c0_99, %c0_100, %c0_101, %c0_102] : memref<1x16x16x128xf32, #tpu.memory_space<vmem>>, vector<1x16x16x128xf32>
    %106 = vector.shape_cast %105 : vector<1x16x16x128xf32> to vector<16x16x128xf32>
    %107 = vector.shape_cast %106 : vector<16x16x128xf32> to vector<256x128xf32>
    %108 = arith.truncf %107 : vector<256x128xf32> to vector<256x128xbf16>
    %c0_103 = arith.constant 0 : index
    %c0_104 = arith.constant 0 : index
    %109 = vector.load %arg11[%c0_103, %c0_104] : memref<128x128xbf16, #tpu.memory_space<vmem>>, vector<128x128xbf16>
    %cst_105 = arith.constant dense<0.000000e+00> : vector<256x128xf32>
    %110 = tpu.matmul %108, %109, %cst_105 {dimension_numbers = #tpu.dot_dimension_numbers<[1], [0], [0], [1], [0, 0, 1, 1], [], []>} : vector<256x128xbf16>, vector<128x128xbf16>, vector<256x128xf32> -> vector<256x128xf32>
    %111 = vector.broadcast %28 : vector<1x128xf32> to vector<256x128xf32>
    %112 = arith.mulf %110, %111 : vector<256x128xf32>
    %113 = vector.broadcast %29 : vector<1x128xf32> to vector<256x128xf32>
    %114 = arith.addf %112, %113 : vector<256x128xf32>
    %115 = arith.addf %104, %114 : vector<256x128xf32>
    %cst_106 = arith.constant 0.000000e+00 : f32
    %116 = vector.broadcast %cst_106 : f32 to vector<256x128xf32>
    %117 = arith.maximumf %115, %116 : vector<256x128xf32>
    %118 = vector.shape_cast %117 : vector<256x128xf32> to vector<16x16x128xf32>
    %c0_107 = arith.constant 0 : index
    %c0_108 = arith.constant 0 : index
    %c0_109 = arith.constant 0 : index
    %c0_110 = arith.constant 0 : index
    %119 = vector.load %arg14[%c0_107, %c0_108, %c0_109, %c0_110] : memref<1x16x16x128xf32, #tpu.memory_space<vmem>>, vector<1x16x16x128xf32>
    %120 = vector.shape_cast %119 : vector<1x16x16x128xf32> to vector<16x16x128xf32>
    %121 = vector.shape_cast %118 : vector<16x16x128xf32> to vector<1x16x16x128xf32>
    tpu.vector_store %arg14[%c0_107, %c0_108, %c0_109, %c0_110], %121 {strides = array<i32>} : memref<1x16x16x128xf32, #tpu.memory_space<vmem>>, vector<1x16x16x128xf32>,
    return
  }
  func.func @transform_0(%arg0: i32) -> (i32, i32, i32, i32) {
    %c0_i32 = arith.constant 0 : i32
    %c0_i32_0 = arith.constant 0 : i32
    %c0_i32_1 = arith.constant 0 : i32
    %c0_i32_2 = arith.constant 0 : i32
    return %arg0, %c0_i32, %c0_i32_0, %c0_i32_1 : i32, i32, i32, i32
  }
  func.func @transform_1(%arg0: i32) -> (i32, i32) {
    %c0_i32 = arith.constant 0 : i32
    %c0_i32_0 = arith.constant 0 : i32
    %c0_i32_1 = arith.constant 0 : i32
    return %c0_i32, %c0_i32_0 : i32, i32
  }
  func.func @transform_2(%arg0: i32) -> (i32, i32) {
    %c0_i32 = arith.constant 0 : i32
    %c0_i32_0 = arith.constant 0 : i32
    %c0_i32_1 = arith.constant 0 : i32
    return %c0_i32, %c0_i32_0 : i32, i32
  }
  func.func @transform_3(%arg0: i32) -> (i32, i32) {
    %c0_i32 = arith.constant 0 : i32
    %c0_i32_0 = arith.constant 0 : i32
    %c0_i32_1 = arith.constant 0 : i32
    return %c0_i32, %c0_i32_0 : i32, i32
  }
  func.func @transform_4(%arg0: i32) -> (i32, i32, i32) {
    %c0_i32 = arith.constant 0 : i32
    %c0_i32_0 = arith.constant 0 : i32
    %c0_i32_1 = arith.constant 0 : i32
    %c0_i32_2 = arith.constant 0 : i32
    return %c0_i32, %c0_i32_0, %c0_i32_1 : i32, i32, i32
  }
  func.func @transform_5(%arg0: i32) -> (i32, i32) {
    %c0_i32 = arith.constant 0 : i32
    %c0_i32_0 = arith.constant 0 : i32
    %c0_i32_1 = arith.constant 0 : i32
    return %c0_i32, %c0_i32_0 : i32, i32
  }
  func.func @transform_6(%arg0: i32) -> (i32, i32) {
    %c0_i32 = arith.constant 0 : i32
    %c0_i32_0 = arith.constant 0 : i32
    %c0_i32_1 = arith.constant 0 : i32
    return %c0_i32, %c0_i32_0 : i32, i32
  }
  func.func @transform_7(%arg0: i32) -> (i32, i32) {
    %c0_i32 = arith.constant 0 : i32
    %c0_i32_0 = arith.constant 0 : i32
    %c0_i32_1 = arith.constant 0 : i32
    return %c0_i32, %c0_i32_0 : i32, i32
  }
  func.func @transform_8(%arg0: i32) -> (i32, i32) {
    %c0_i32 = arith.constant 0 : i32
    %c0_i32_0 = arith.constant 0 : i32
    %c0_i32_1 = arith.constant 0 : i32
    return %c0_i32, %c0_i32_0 : i32, i32
  }
  func.func @transform_9(%arg0: i32) -> (i32, i32) {
    %c0_i32 = arith.constant 0 : i32
    %c0_i32_0 = arith.constant 0 : i32
    %c0_i32_1 = arith.constant 0 : i32
    return %c0_i32, %c0_i32_0 : i32, i32
  }
  func.func @transform_10(%arg0: i32) -> (i32, i32) {
    %c0_i32 = arith.constant 0 : i32
    %c0_i32_0 = arith.constant 0 : i32
    %c0_i32_1 = arith.constant 0 : i32
    return %c0_i32, %c0_i32_0 : i32, i32
  }
  func.func @transform_11(%arg0: i32) -> (i32, i32) {
    %c0_i32 = arith.constant 0 : i32
    %c0_i32_0 = arith.constant 0 : i32
    %c0_i32_1 = arith.constant 0 : i32
    return %c0_i32, %c0_i32_0 : i32, i32
  }
  func.func @transform_12(%arg0: i32) -> (i32, i32) {
    %c0_i32 = arith.constant 0 : i32
    %c0_i32_0 = arith.constant 0 : i32
    %c0_i32_1 = arith.constant 0 : i32
    return %c0_i32, %c0_i32_0 : i32, i32
  }
  func.func @transform_13(%arg0: i32) -> (i32, i32, i32, i32) {
    %c0_i32 = arith.constant 0 : i32
    %c0_i32_0 = arith.constant 0 : i32
    %c0_i32_1 = arith.constant 0 : i32
    %c0_i32_2 = arith.constant 0 : i32
    return %arg0, %c0_i32, %c0_i32_0, %c0_i32_1 : i32, i32, i32, i32
  }
}

</mosaic_0001>

<llo_original>
// kernel: tpu_custom_call.1
$region0: #{tpu_custom_call.1}
  #allocation0 [shape = 'u32[]', space=smem, size = 0x4, offset = 0x4, fixed_abs, tag = 'smem constant byte address 0x4 - core index']
  #allocation1 [shape = 'u32[144,128]{1,0:T(1,128)}', space=vmem, size = 0x12000, scoped, tag = 'internal scratch']
  #allocation2 [shape = 'f32[18,18,128]{2,1,0:T(8,128)}', space=vmem, size = 0x36000, scoped, tag = 'scratch operand']
  %s0 = inlined_call_operand.hbm [shape: f32[2,16,16,128], index: 0, kind: input, shape index: {}]
  %s1 = inlined_call_operand.hbm [shape: bf16[128,128], index: 1, kind: input, shape index: {}]
  %s2 = inlined_call_operand.vmem [shape: f32[1,128], index: 2, kind: input, shape index: {}]
  %s3 = inlined_call_operand.vmem [shape: f32[1,128], index: 3, kind: input, shape index: {}]
  %s4 = inlined_call_operand.hbm [shape: bf16[9,128,128], index: 4, kind: input, shape index: {}]
  %s5 = inlined_call_operand.vmem [shape: f32[1,128], index: 5, kind: input, shape index: {}]
  %s6 = inlined_call_operand.vmem [shape: f32[1,128], index: 6, kind: input, shape index: {}]
  %s7 = inlined_call_operand.hbm [shape: bf16[128,128], index: 7, kind: input, shape index: {}]
  %s8 = inlined_call_operand.vmem [shape: f32[1,128], index: 8, kind: input, shape index: {}]
  %s9 = inlined_call_operand.vmem [shape: f32[1,128], index: 9, kind: input, shape index: {}]
  %s10 = inlined_call_operand.hbm [shape: bf16[128,128], index: 10, kind: input, shape index: {}]
  %s11 = inlined_call_operand.vmem [shape: f32[1,128], index: 11, kind: input, shape index: {}]
  %s12 = inlined_call_operand.vmem [shape: f32[1,128], index: 12, kind: input, shape index: {}]
  %s13 = inlined_call_operand.hbm [shape: f32[2,16,16,128], index: 13, kind: output, shape index: {}]
  %s14 = sld [smem:[#allocation0]]
  $region105: #{tpu_custom_call.1} parent=0
    _
  %s16 = ssub.s32 1, %s14
  %s17 = scalar_select 0, %s16, %s14
  $region1: #{tpu_custom_call.1} parent=0
    #allocation3 [shape = 'u8[262144]{0}', space=vmem, size = 0x40000, scoped, tag = 'input window, operand 0']
    #allocation4 [shape = 's32[2]{0}', space=sflag, size = 0x8, scoped, tag = 'scoped memory for tpu_custom_call.1']
    #allocation5 [shape = 's32[2]{0}', space=sflag, size = 0x8, scoped, tag = 'scoped memory for tpu_custom_call.1']
    #allocation6 [shape = 'u8[32768]{0}', space=vmem, size = 0x8000, scoped, tag = 'input window, operand 1, single buffered']
    #allocation7 [shape = 's32[1]{0}', space=sflag, size = 0x4, scoped, tag = 'scoped memory for tpu_custom_call.1']
    #allocation8 [shape = 'u8[294912]{0}', space=vmem, size = 0x48000, scoped, tag = 'input window, operand 4, single buffered']
    #allocation9 [shape = 'u8[32768]{0}', space=vmem, size = 0x8000, scoped, tag = 'input window, operand 7, single buffered']
    #allocation10 [shape = 's32[1]{0}', space=sflag, size = 0x4, scoped, tag = 'scoped memory for tpu_custom_call.1']
    #allocation11 [shape = 'u8[32768]{0}', space=vmem, size = 0x8000, scoped, tag = 'input window, operand 10, single buffered']
    #allocation12 [shape = 'u8[262144]{0}', space=vmem, size = 0x40000, scoped, tag = 'output window, operand 0']
    %18 = vsyncpa [#allocation4], 0
    %s19 = scalar_lea.sflag [#allocation4], 1
    %20 = vsyncpa %s19, 0
    %21 = vsyncpa [#allocation7], 0
    %22 = vsyncpa [#allocation10], 0
    %23 = vsyncpa [#allocation5], 0
    %s24 = scalar_lea.sflag [#allocation5], 1
    %25 = vsyncpa %s24, 0
    loop: start=0, step=1, limit=4
    $region2: #{tpu_custom_call.1} parent=1 // loop_pre_header
      _
    $region3: #{tpu_custom_call.1} parent=1 // loop_header
      %s27 = sphi 0, %s31
      %p28 = scmp.ge.s32.totalorder %s27, 4
      %s37 = sphi 0, %s39
      %s40 = sphi 0, %s37
      %s41 = sphi 0, %s40
      %s57 = sphi 0, %s41
      %s61 = sphi 0, %s61
      %s63 = sphi 0, %s61
      %s64 = sphi 0, %s63
      %s78 = sphi 0, %s64
      %s82 = sphi 0, %s82
      %s84 = sphi 0, %s82
      %s85 = sphi 0, %s84
      %s99 = sphi 0, %s85
      %s103 = sphi 0, %s103
      %s105 = sphi 0, %s103
      %s106 = sphi 0, %s105
      %s120 = sphi 0, %s106
      %s124 = sphi 0, %s124
      %s126 = sphi 0, %s124
      %s127 = sphi 0, %s126
      %s141 = sphi 0, %s127
      %s145 = sphi 0, %s145
      %s147 = sphi 0, %s145
      %s148 = sphi 0, %s147
      %s162 = sphi 0, %s148
      %s166 = sphi 0, %s166
      %s168 = sphi 0, %s166
      %s169 = sphi 0, %s168
      %s183 = sphi 0, %s169
      %s187 = sphi 0, %s187
      %s189 = sphi 0, %s187
      %s190 = sphi 0, %s189
      %s204 = sphi 0, %s190
      %s208 = sphi 0, %s208
      %s210 = sphi 0, %s208
      %s211 = sphi 0, %s210
      %s225 = sphi 0, %s211
      %s229 = sphi 0, %s229
      %s231 = sphi 0, %s229
      %s232 = sphi 0, %s231
      %s246 = sphi 0, %s232
      %s250 = sphi 0, %s250
      %s252 = sphi 0, %s250
      %s253 = sphi 0, %s252
      %s267 = sphi 0, %s253
      %s271 = sphi 0, %s271
      %s273 = sphi 0, %s271
      %s274 = sphi 0, %s273
      %s288 = sphi 0, %s274
      %s292 = sphi 0, %s292
      %s294 = sphi 0, %s292
      %s295 = sphi 0, %s294
      %s309 = sphi 0, %s295
      %s315 = sphi 0, %s317
      %s318 = sphi 0, %s315
      %s319 = sphi 0, %s318
      %s335 = sphi 0, %s319
    $region4: #{tpu_custom_call.1} parent=1 // loop_header_branch
      %30 = sbr.rel (%p28) target = $region8
    $region5: #{tpu_custom_call.1} parent=1 // loop_body
      %s32 = ssub.s32 %s27, 1
      %s33 = ssub.s32 %s27, 2
      %s34 = sadd.s32 %s27, 1
      %s35 = ssub.s32 %s27, %s34
      %p36 = scmp.eq.s32.totalorder %s35, 0
      %s38 = sadd.s32 %s37, 1
      %s39 = scalar_select %p36, %s37, %s38
      %p42 = pneg %p36
      %p43 = scmp.eq.s32.totalorder %s27, 1
      %p44 = por %p42, %p43
      %p45 = scmp.ne.s32.totalorder %s37, %s40
      %p46 = scmp.eq.s32.totalorder %s27, 0
      %p47 = por %p45, %p46
      %p48 = scmp.ne.s32.totalorder %s37, %s40
      %p49 = scmp.eq.s32.totalorder %s32, 1
      %p50 = por %p48, %p49
      %p51 = scmp.ne.s32.totalorder %s40, %s41
      %p52 = scmp.eq.s32.totalorder %s32, 0
      %p53 = por %p51, %p52
      %p54 = scmp.ne.s32.totalorder %s40, %s41
      %p55 = scmp.eq.s32.totalorder %s33, 1
      %p56 = por %p54, %p55
      %p58 = scmp.ne.s32.totalorder %s41, %s57
      %p59 = scmp.eq.s32.totalorder %s33, 0
      %p60 = por %p58, %p59
      %s62 = sadd.s32 %s61, 1
      %p65 = scmp.eq.s32.totalorder %s27, 1
      %p66 = scmp.ne.s32.totalorder %s61, %s63
      %p67 = scmp.eq.s32.totalorder %s27, 0
      %p68 = por %p66, %p67
      %p69 = scmp.ne.s32.totalorder %s61, %s63
      %p70 = scmp.eq.s32.totalorder %s32, 1
      %p71 = por %p69, %p70
      %p72 = scmp.ne.s32.totalorder %s63, %s64
      %p73 = scmp.eq.s32.totalorder %s32, 0
      %p74 = por %p72, %p73
      %p75 = scmp.ne.s32.totalorder %s63, %s64
      %p76 = scmp.eq.s32.totalorder %s33, 1
      %p77 = por %p75, %p76
      %p79 = scmp.ne.s32.totalorder %s64, %s78
      %p80 = scmp.eq.s32.totalorder %s33, 0
      %p81 = por %p79, %p80
      %s83 = sadd.s32 %s82, 1
      %p86 = scmp.eq.s32.totalorder %s27, 1
      %p87 = scmp.ne.s32.totalorder %s82, %s84
      %p88 = scmp.eq.s32.totalorder %s27, 0
      %p89 = por %p87, %p88
      %p90 = scmp.ne.s32.totalorder %s82, %s84
      %p91 = scmp.eq.s32.totalorder %s32, 1
      %p92 = por %p90, %p91
      %p93 = scmp.ne.s32.totalorder %s84, %s85
      %p94 = scmp.eq.s32.totalorder %s32, 0
      %p95 = por %p93, %p94
      %p96 = scmp.ne.s32.totalorder %s84, %s85
      %p97 = scmp.eq.s32.totalorder %s33, 1
      %p98 = por %p96, %p97
      %p100 = scmp.ne.s32.totalorder %s85, %s99
      %p101 = scmp.eq.s32.totalorder %s33, 0
      %p102 = por %p100, %p101
      %s104 = sadd.s32 %s103, 1
      %p107 = scmp.eq.s32.totalorder %s27, 1
      %p108 = scmp.ne.s32.totalorder %s103, %s105
      %p109 = scmp.eq.s32.totalorder %s27, 0
      %p110 = por %p108, %p109
      %p111 = scmp.ne.s32.totalorder %s103, %s105
      %p112 = scmp.eq.s32.totalorder %s32, 1
      %p113 = por %p111, %p112
      %p114 = scmp.ne.s32.totalorder %s105, %s106
      %p115 = scmp.eq.s32.totalorder %s32, 0
      %p116 = por %p114, %p115
      %p117 = scmp.ne.s32.totalorder %s105, %s106
      %p118 = scmp.eq.s32.totalorder %s33, 1
      %p119 = por %p117, %p118
      %p121 = scmp.ne.s32.totalorder %s106, %s120
      %p122 = scmp.eq.s32.totalorder %s33, 0
      %p123 = por %p121, %p122
      %s125 = sadd.s32 %s124, 1
      %p128 = scmp.eq.s32.totalorder %s27, 1
      %p129 = scmp.ne.s32.totalorder %s124, %s126
      %p130 = scmp.eq.s32.totalorder %s27, 0
      %p131 = por %p129, %p130
      %p132 = scmp.ne.s32.totalorder %s124, %s126
      %p133 = scmp.eq.s32.totalorder %s32, 1
      %p134 = por %p132, %p133
      %p135 = scmp.ne.s32.totalorder %s126, %s127
      %p136 = scmp.eq.s32.totalorder %s32, 0
      %p137 = por %p135, %p136
      %p138 = scmp.ne.s32.totalorder %s126, %s127
      %p139 = scmp.eq.s32.totalorder %s33, 1
      %p140 = por %p138, %p139
      %p142 = scmp.ne.s32.totalorder %s127, %s141
      %p143 = scmp.eq.s32.totalorder %s33, 0
      %p144 = por %p142, %p143
      %s146 = sadd.s32 %s145, 1
      %p149 = scmp.eq.s32.totalorder %s27, 1
      %p150 = scmp.ne.s32.totalorder %s145, %s147
      %p151 = scmp.eq.s32.totalorder %s27, 0
      %p152 = por %p150, %p151
      %p153 = scmp.ne.s32.totalorder %s145, %s147
      %p154 = scmp.eq.s32.totalorder %s32, 1
      %p155 = por %p153, %p154
      %p156 = scmp.ne.s32.totalorder %s147, %s148
      %p157 = scmp.eq.s32.totalorder %s32, 0
      %p158 = por %p156, %p157
      %p159 = scmp.ne.s32.totalorder %s147, %s148
      %p160 = scmp.eq.s32.totalorder %s33, 1
      %p161 = por %p159, %p160
      %p163 = scmp.ne.s32.totalorder %s148, %s162
      %p164 = scmp.eq.s32.totalorder %s33, 0
      %p165 = por %p163, %p164
      %s167 = sadd.s32 %s166, 1
      %p170 = scmp.eq.s32.totalorder %s27, 1
      %p171 = scmp.ne.s32.totalorder %s166, %s168
      %p172 = scmp.eq.s32.totalorder %s27, 0
      %p173 = por %p171, %p172
      %p174 = scmp.ne.s32.totalorder %s166, %s168
      %p175 = scmp.eq.s32.totalorder %s32, 1
      %p176 = por %p174, %p175
      %p177 = scmp.ne.s32.totalorder %s168, %s169
      %p178 = scmp.eq.s32.totalorder %s32, 0
      %p179 = por %p177, %p178
      %p180 = scmp.ne.s32.totalorder %s168, %s169
      %p181 = scmp.eq.s32.totalorder %s33, 1
      %p182 = por %p180, %p181
      %p184 = scmp.ne.s32.totalorder %s169, %s183
      %p185 = scmp.eq.s32.totalorder %s33, 0
      %p186 = por %p184, %p185
      %s188 = sadd.s32 %s187, 1
      %p191 = scmp.eq.s32.totalorder %s27, 1
      %p192 = scmp.ne.s32.totalorder %s187, %s189
      %p193 = scmp.eq.s32.totalorder %s27, 0
      %p194 = por %p192, %p193
      %p195 = scmp.ne.s32.totalorder %s187, %s189
      %p196 = scmp.eq.s32.totalorder %s32, 1
      %p197 = por %p195, %p196
      %p198 = scmp.ne.s32.totalorder %s189, %s190
      %p199 = scmp.eq.s32.totalorder %s32, 0
      %p200 = por %p198, %p199
      %p201 = scmp.ne.s32.totalorder %s189, %s190
      %p202 = scmp.eq.s32.totalorder %s33, 1
      %p203 = por %p201, %p202
      %p205 = scmp.ne.s32.totalorder %s190, %s204
      %p206 = scmp.eq.s32.totalorder %s33, 0
      %p207 = por %p205, %p206
      %s209 = sadd.s32 %s208, 1
      %p212 = scmp.eq.s32.totalorder %s27, 1
      %p213 = scmp.ne.s32.totalorder %s208, %s210
      %p214 = scmp.eq.s32.totalorder %s27, 0
      %p215 = por %p213, %p214
      %p216 = scmp.ne.s32.totalorder %s208, %s210
      %p217 = scmp.eq.s32.totalorder %s32, 1
      %p218 = por %p216, %p217
      %p219 = scmp.ne.s32.totalorder %s210, %s211
      %p220 = scmp.eq.s32.totalorder %s32, 0
      %p221 = por %p219, %p220
      %p222 = scmp.ne.s32.totalorder %s210, %s211
      %p223 = scmp.eq.s32.totalorder %s33, 1
      %p224 = por %p222, %p223
      %p226 = scmp.ne.s32.totalorder %s211, %s225
      %p227 = scmp.eq.s32.totalorder %s33, 0
      %p228 = por %p226, %p227
      %s230 = sadd.s32 %s229, 1
      %p233 = scmp.eq.s32.totalorder %s27, 1
      %p234 = scmp.ne.s32.totalorder %s229, %s231
      %p235 = scmp.eq.s32.totalorder %s27, 0
      %p236 = por %p234, %p235
      %p237 = scmp.ne.s32.totalorder %s229, %s231
      %p238 = scmp.eq.s32.totalorder %s32, 1
      %p239 = por %p237, %p238
      %p240 = scmp.ne.s32.totalorder %s231, %s232
      %p241 = scmp.eq.s32.totalorder %s32, 0
      %p242 = por %p240, %p241
      %p243 = scmp.ne.s32.totalorder %s231, %s232
      %p244 = scmp.eq.s32.totalorder %s33, 1
      %p245 = por %p243, %p244
      %p247 = scmp.ne.s32.totalorder %s232, %s246
      %p248 = scmp.eq.s32.totalorder %s33, 0
      %p249 = por %p247, %p248
      %s251 = sadd.s32 %s250, 1
      %p254 = scmp.eq.s32.totalorder %s27, 1
      %p255 = scmp.ne.s32.totalorder %s250, %s252
      %p256 = scmp.eq.s32.totalorder %s27, 0
      %p257 = por %p255, %p256
      %p258 = scmp.ne.s32.totalorder %s250, %s252
      %p259 = scmp.eq.s32.totalorder %s32, 1
      %p260 = por %p258, %p259
      %p261 = scmp.ne.s32.totalorder %s252, %s253
      %p262 = scmp.eq.s32.totalorder %s32, 0
      %p263 = por %p261, %p262
      %p264 = scmp.ne.s32.totalorder %s252, %s253
      %p265 = scmp.eq.s32.totalorder %s33, 1
      %p266 = por %p264, %p265
      %p268 = scmp.ne.s32.totalorder %s253, %s267
      %p269 = scmp.eq.s32.totalorder %s33, 0
      %p270 = por %p268, %p269
      %s272 = sadd.s32 %s271, 1
      %p275 = scmp.eq.s32.totalorder %s27, 1
      %p276 = scmp.ne.s32.totalorder %s271, %s273
      %p277 = scmp.eq.s32.totalorder %s27, 0
      %p278 = por %p276, %p277
      %p279 = scmp.ne.s32.totalorder %s271, %s273
      %p280 = scmp.eq.s32.totalorder %s32, 1
      %p281 = por %p279, %p280
      %p282 = scmp.ne.s32.totalorder %s273, %s274
      %p283 = scmp.eq.s32.totalorder %s32, 0
      %p284 = por %p282, %p283
      %p285 = scmp.ne.s32.totalorder %s273, %s274
      %p286 = scmp.eq.s32.totalorder %s33, 1
      %p287 = por %p285, %p286
      %p289 = scmp.ne.s32.totalorder %s274, %s288
      %p290 = scmp.eq.s32.totalorder %s33, 0
      %p291 = por %p289, %p290
      %s293 = sadd.s32 %s292, 1
      %p296 = scmp.eq.s32.totalorder %s27, 1
      %p297 = scmp.ne.s32.totalorder %s292, %s294
      %p298 = scmp.eq.s32.totalorder %s27, 0
      %p299 = por %p297, %p298
      %p300 = scmp.ne.s32.totalorder %s292, %s294
      %p301 = scmp.eq.s32.totalorder %s32, 1
      %p302 = por %p300, %p301
      %p303 = scmp.ne.s32.totalorder %s294, %s295
      %p304 = scmp.eq.s32.totalorder %s32, 0
      %p305 = por %p303, %p304
      %p306 = scmp.ne.s32.totalorder %s294, %s295
      %p307 = scmp.eq.s32.totalorder %s33, 1
      %p308 = por %p306, %p307
      %p310 = scmp.ne.s32.totalorder %s295, %s309
      %p311 = scmp.eq.s32.totalorder %s33, 0
      %p312 = por %p310, %p311
      %s313 = ssub.s32 %s27, %s34
      %p314 = scmp.eq.s32.totalorder %s313, 0
      %s316 = sadd.s32 %s315, 1
      %s317 = scalar_select %p314, %s315, %s316
      %p320 = pneg %p314
      %p321 = scmp.eq.s32.totalorder %s27, 1
      %p322 = por %p320, %p321
      %p323 = scmp.ne.s32.totalorder %s315, %s318
      %p324 = scmp.eq.s32.totalorder %s27, 0
      %p325 = por %p323, %p324
      %p326 = scmp.ne.s32.totalorder %s315, %s318
      %p327 = scmp.eq.s32.totalorder %s32, 1
      %p328 = por %p326, %p327
      %p329 = scmp.ne.s32.totalorder %s318, %s319
      %p330 = scmp.eq.s32.totalorder %s32, 0
      %p331 = por %p329, %p330
      %p332 = scmp.ne.s32.totalorder %s318, %s319
      %p333 = scmp.eq.s32.totalorder %s33, 1
      %p334 = por %p332, %p333
      %p336 = scmp.ne.s32.totalorder %s319, %s335
      %p337 = scmp.eq.s32.totalorder %s33, 0
      %p338 = por %p336, %p337
      %p339 = scmp.le.s32.totalorder 1, %s27
      %p340 = scmp.lt.s32.totalorder %s27, 3
      %p341 = pnand %p339, %p340
      %p342 = pneg %p341
      // Predicated region
      $region9: #{tpu_custom_call.1} parent=5 // pred_check
        _
      $region10: #{tpu_custom_call.1} parent=5 // pred_check_branch
        %344 = sbr.rel (%p341) target = $region12
      $region11: #{tpu_custom_call.1} parent=5 // pred_region
        %s345 = ssub.s32 %s27, 1
        // Predicated region
        $region13: #{tpu_custom_call.1} parent=11 // pred_check
          %p346 = pneg %p74
        $region14: #{tpu_custom_call.1} parent=11 // pred_check_branch
          %348 = sbr.rel (%p346) target = $region16
        $region15: #{tpu_custom_call.1} parent=11 // pred_region
          %s350 = ssub.s32 1024, 1024
          %351 = vsyncadd [#allocation7], %s350
          %s352 = sshll.u32 [#allocation6], 4
          %s353 = int_to_ptr.vmem [resolvable:$true] %s352
          %358 = dma.hbm_to_vmem [thread:$0]  %s1, 1024, %s353, [#allocation7], 64, 64, 4
        $region16: #{tpu_custom_call.1} parent=11 // pred_fallthru
          _
        // Predicated region
        $region17: #{tpu_custom_call.1} parent=11 // pred_check
          %p359 = pneg %p95
        $region18: #{tpu_custom_call.1} parent=11 // pred_check_branch
          %361 = sbr.rel (%p359) target = $region20
        $region19: #{tpu_custom_call.1} parent=11 // pred_region
          _
        $region20: #{tpu_custom_call.1} parent=11 // pred_fallthru
          _
        // Predicated region
        $region21: #{tpu_custom_call.1} parent=11 // pred_check
          %p362 = pneg %p116
        $region22: #{tpu_custom_call.1} parent=11 // pred_check_branch
          %364 = sbr.rel (%p362) target = $region24
        $region23: #{tpu_custom_call.1} parent=11 // pred_region
          _
        $region24: #{tpu_custom_call.1} parent=11 // pred_fallthru
          _
        // Predicated region
        $region25: #{tpu_custom_call.1} parent=11 // pred_check
          %p365 = pneg %p137
        $region26: #{tpu_custom_call.1} parent=11 // pred_check_branch
          %367 = sbr.rel (%p365) target = $region28
        $region27: #{tpu_custom_call.1} parent=11 // pred_region
          %s369 = ssub.s32 9216, 9216
          %370 = vsyncadd [#allocation7], %s369
          %s371 = sshll.u32 [#allocation8], 4
          %s372 = int_to_ptr.vmem [resolvable:$true] %s371
          %377 = dma.hbm_to_vmem [thread:$0]  %s4, 9216, %s372, [#allocation7], 64, 64, 4
        $region28: #{tpu_custom_call.1} parent=11 // pred_fallthru
          _
        // Predicated region
        $region29: #{tpu_custom_call.1} parent=11 // pred_check
          %p378 = pneg %p158
        $region30: #{tpu_custom_call.1} parent=11 // pred_check_branch
          %380 = sbr.rel (%p378) target = $region32
        $region31: #{tpu_custom_call.1} parent=11 // pred_region
          _
        $region32: #{tpu_custom_call.1} parent=11 // pred_fallthru
          _
        // Predicated region
        $region33: #{tpu_custom_call.1} parent=11 // pred_check
          %p381 = pneg %p179
        $region34: #{tpu_custom_call.1} parent=11 // pred_check_branch
          %383 = sbr.rel (%p381) target = $region36
        $region35: #{tpu_custom_call.1} parent=11 // pred_region
          _
        $region36: #{tpu_custom_call.1} parent=11 // pred_fallthru
          _
        // Predicated region
        $region37: #{tpu_custom_call.1} parent=11 // pred_check
          %p384 = pneg %p200
        $region38: #{tpu_custom_call.1} parent=11 // pred_check_branch
          %386 = sbr.rel (%p384) target = $region40
        $region39: #{tpu_custom_call.1} parent=11 // pred_region
          %s388 = ssub.s32 1024, 1024
          %389 = vsyncadd [#allocation10], %s388
          %s390 = sshll.u32 [#allocation9], 4
          %s391 = int_to_ptr.vmem [resolvable:$true] %s390
          %396 = dma.hbm_to_vmem [thread:$0]  %s7, 1024, %s391, [#allocation10], 64, 64, 4
        $region40: #{tpu_custom_call.1} parent=11 // pred_fallthru
          _
        // Predicated region
        $region41: #{tpu_custom_call.1} parent=11 // pred_check
          %p397 = pneg %p221
        $region42: #{tpu_custom_call.1} parent=11 // pred_check_branch
          %399 = sbr.rel (%p397) target = $region44
        $region43: #{tpu_custom_call.1} parent=11 // pred_region
          _
        $region44: #{tpu_custom_call.1} parent=11 // pred_fallthru
          _
        // Predicated region
        $region45: #{tpu_custom_call.1} parent=11 // pred_check
          %p400 = pneg %p242
        $region46: #{tpu_custom_call.1} parent=11 // pred_check_branch
          %402 = sbr.rel (%p400) target = $region48
        $region47: #{tpu_custom_call.1} parent=11 // pred_region
          _
        $region48: #{tpu_custom_call.1} parent=11 // pred_fallthru
          _
        // Predicated region
        $region49: #{tpu_custom_call.1} parent=11 // pred_check
          %p403 = pneg %p263
        $region50: #{tpu_custom_call.1} parent=11 // pred_check_branch
          %405 = sbr.rel (%p403) target = $region52
        $region51: #{tpu_custom_call.1} parent=11 // pred_region
          %s407 = ssub.s32 1024, 1024
          %408 = vsyncadd [#allocation10], %s407
          %s409 = sshll.u32 [#allocation11], 4
          %s410 = int_to_ptr.vmem [resolvable:$true] %s409
          %415 = dma.hbm_to_vmem [thread:$0]  %s10, 1024, %s410, [#allocation10], 64, 64, 4
        $region52: #{tpu_custom_call.1} parent=11 // pred_fallthru
          _
        // Predicated region
        $region53: #{tpu_custom_call.1} parent=11 // pred_check
          %p416 = pneg %p284
        $region54: #{tpu_custom_call.1} parent=11 // pred_check_branch
          %418 = sbr.rel (%p416) target = $region56
        $region55: #{tpu_custom_call.1} parent=11 // pred_region
          _
        $region56: #{tpu_custom_call.1} parent=11 // pred_fallthru
          _
        // Predicated region
        $region57: #{tpu_custom_call.1} parent=11 // pred_check
          %p419 = pneg %p305
        $region58: #{tpu_custom_call.1} parent=11 // pred_check_branch
          %421 = sbr.rel (%p419) target = $region60
        $region59: #{tpu_custom_call.1} parent=11 // pred_region
          _
        $region60: #{tpu_custom_call.1} parent=11 // pred_fallthru
          _
      $region12: #{tpu_custom_call.1} parent=5 // pred_fallthru
        _
      %p422 = scmp.lt.s32.totalorder %s27, 2
      // Predicated region
      $region61: #{tpu_custom_call.1} parent=5 // pred_check
        %p423 = pneg %p422
      $region62: #{tpu_custom_call.1} parent=5 // pred_check_branch
        %425 = sbr.rel (%p423) target = $region64
      $region63: #{tpu_custom_call.1} parent=5 // pred_region
        // Predicated region
        $region65: #{tpu_custom_call.1} parent=63 // pred_check
          %p426 = pneg %p47
        $region66: #{tpu_custom_call.1} parent=63 // pred_check_branch
          %428 = sbr.rel (%p426) target = $region68
        $region67: #{tpu_custom_call.1} parent=63 // pred_region
          %s429 = sand.u32 %s37, 1
          %s430 = scalar_lea.sflag [#allocation4], %s429
          %s431 = sand.u32 %s37, 1
          %s432 = smul.addr %s431, 256
          %s433 = scalar_lea.vmem [#allocation3], %s432
          %s435 = ssub.s32 4096, 4096
          %436 = vsyncadd %s430, %s435
          %s437 = smul.addr %s27, 32
          %s438 = smul.addr %s437, 128
          %s439 = scalar_lea.hbm %s0, %s438
          %s440 = sshll.u32 %s433, 4
          %s441 = int_to_ptr.vmem [resolvable:$true] %s440
          %446 = dma.hbm_to_vmem [thread:$0]  %s439, 4096, %s441, %s430, 128, 128, 8
        $region68: #{tpu_custom_call.1} parent=63 // pred_fallthru
          _
      $region64: #{tpu_custom_call.1} parent=5 // pred_fallthru
        _
      %p447 = scmp.le.s32.totalorder 1, %s27
      %p448 = scmp.lt.s32.totalorder %s27, 3
      %p449 = pnand %p447, %p448
      %p450 = pneg %p449
      // Predicated region
      $region69: #{tpu_custom_call.1} parent=5 // pred_check
        _
      $region70: #{tpu_custom_call.1} parent=5 // pred_check_branch
        %452 = sbr.rel (%p449) target = $region72
      $region71: #{tpu_custom_call.1} parent=5 // pred_region
        %s453 = ssub.s32 %s27, 1
        %s454 = sand.u32 %s40, 1
        %s455 = scalar_lea.sflag [#allocation4], %s454
        %s456 = sand.u32 %s40, 1
        %s457 = smul.addr %s456, 256
        %s458 = scalar_lea.vmem [#allocation3], %s457
        // Predicated region
        $region73: #{tpu_custom_call.1} parent=71 // pred_check
          %p459 = pneg %p53
        $region74: #{tpu_custom_call.1} parent=71 // pred_check_branch
          %461 = sbr.rel (%p459) target = $region76
        $region75: #{tpu_custom_call.1} parent=71 // pred_region
          %462 = dma.done %s455, 4096
        $region76: #{tpu_custom_call.1} parent=71 // pred_fallthru
          _
        // Predicated region
        $region77: #{tpu_custom_call.1} parent=71 // pred_check
          %p463 = pneg %p74
        $region78: #{tpu_custom_call.1} parent=71 // pred_check_branch
          %465 = sbr.rel (%p463) target = $region80
        $region79: #{tpu_custom_call.1} parent=71 // pred_region
          %466 = dma.done [#allocation7], 1024
        $region80: #{tpu_custom_call.1} parent=71 // pred_fallthru
          _
        // Predicated region
        $region81: #{tpu_custom_call.1} parent=71 // pred_check
          %p467 = pneg %p137
        $region82: #{tpu_custom_call.1} parent=71 // pred_check_branch
          %469 = sbr.rel (%p467) target = $region84
        $region83: #{tpu_custom_call.1} parent=71 // pred_region
          %470 = dma.done [#allocation7], 9216
        $region84: #{tpu_custom_call.1} parent=71 // pred_fallthru
          _
        // Predicated region
        $region85: #{tpu_custom_call.1} parent=71 // pred_check
          %p471 = pneg %p200
        $region86: #{tpu_custom_call.1} parent=71 // pred_check_branch
          %473 = sbr.rel (%p471) target = $region88
        $region87: #{tpu_custom_call.1} parent=71 // pred_region
          %474 = dma.done [#allocation10], 1024
        $region88: #{tpu_custom_call.1} parent=71 // pred_fallthru
          _
        // Predicated region
        $region89: #{tpu_custom_call.1} parent=71 // pred_check
          %p475 = pneg %p263
        $region90: #{tpu_custom_call.1} parent=71 // pred_check_branch
          %477 = sbr.rel (%p475) target = $region92
        $region91: #{tpu_custom_call.1} parent=71 // pred_region
          %478 = dma.done [#allocation10], 1024
        $region92: #{tpu_custom_call.1} parent=71 // pred_fallthru
          _
        %s479 = sand.u32 %s40, 1
        %s480 = scalar_lea.sflag [#allocation4], %s479
        %s481 = sand.u32 %s40, 1
        %s482 = smul.addr %s481, 256
        %s483 = scalar_lea.vmem [#allocation3], %s482
        %p484 = pneg %p53
        %p485 = pneg %p50
        %p486 = pneg %p74
        %p487 = pneg %p71
        %p488 = pneg %p95
        %p489 = pneg %p92
        %p490 = pneg %p116
        %p491 = pneg %p113
        %p492 = pneg %p137
        %p493 = pneg %p134
        %p494 = pneg %p158
        %p495 = pneg %p155
        %p496 = pneg %p179
        %p497 = pneg %p176
        %p498 = pneg %p200
        %p499 = pneg %p197
        %p500 = pneg %p221
        %p501 = pneg %p218
        %p502 = pneg %p242
        %p503 = pneg %p239
        %p504 = pneg %p263
        %p505 = pneg %p260
        %p506 = pneg %p284
        %p507 = pneg %p281
        %p508 = pneg %p305
        %p509 = pneg %p302
        %p510 = pneg %p331
        %p511 = pneg %p328
        %s512 = sand.u32 %s318, 1
        %s513 = scalar_lea.sflag [#allocation5], %s512
        %s514 = sand.u32 %s318, 1
        %s515 = smul.addr %s514, 256
        %s516 = scalar_lea.vmem [#allocation12], %s515
        %518 = vst [vmem:[#allocation2] sm:$0xff] 0.0
        %519 = vst [vmem:[#allocation2 + $0x8] sm:$0xff] 0.0
        %520 = vst [vmem:[#allocation2 + $0x10] sm:$0x3] 0.0
        %s521 = scalar_lea.vmem [#allocation2], 408
        %522 = vst [vmem:[%s521] sm:$0xff] 0.0
        %523 = vst [vmem:[%s521 + $0x8] sm:$0xff] 0.0
        %524 = vst [vmem:[%s521 + $0x10] sm:$0x3] 0.0
        %525 = vst [vmem:[#allocation2] sm:$0x1] 0.0
        %526 = vst [vmem:[#allocation2 + $0x18] sm:$0x1] 0.0
        %527 = vst [vmem:[#allocation2 + $0x30] sm:$0x1] 0.0
        %528 = vst [vmem:[#allocation2 + $0x48] sm:$0x1] 0.0
        %529 = vst [vmem:[#allocation2 + $0x60] sm:$0x1] 0.0
        %530 = vst [vmem:[#allocation2 + $0x78] sm:$0x1] 0.0
        %531 = vst [vmem:[#allocation2 + $0x90] sm:$0x1] 0.0
        %532 = vst [vmem:[#allocation2 + $0xa8] sm:$0x1] 0.0
        %533 = vst [vmem:[#allocation2 + $0xc0] sm:$0x1] 0.0
        %534 = vst [vmem:[#allocation2 + $0xd8] sm:$0x1] 0.0
        %535 = vst [vmem:[#allocation2 + $0xf0] sm:$0x1] 0.0
        %536 = vst [vmem:[#allocation2 + $0x108] sm:$0x1] 0.0
        %537 = vst [vmem:[#allocation2 + $0x120] sm:$0x1] 0.0
        %538 = vst [vmem:[#allocation2 + $0x138] sm:$0x1] 0.0
        %539 = vst [vmem:[#allocation2 + $0x150] sm:$0x1] 0.0
        %540 = vst [vmem:[#allocation2 + $0x168] sm:$0x1] 0.0
        %541 = vst [vmem:[#allocation2 + $0x180] sm:$0x1] 0.0
        %542 = vst [vmem:[#allocation2 + $0x198] sm:$0x1] 0.0
        %543 = vst [vmem:[#allocation2 + $0x11] sm:$0x1] 0.0
        %544 = vst [vmem:[#allocation2 + $0x29] sm:$0x1] 0.0
        %545 = vst [vmem:[#allocation2 + $0x41] sm:$0x1] 0.0
        %546 = vst [vmem:[#allocation2 + $0x59] sm:$0x1] 0.0
        %547 = vst [vmem:[#allocation2 + $0x71] sm:$0x1] 0.0
        %548 = vst [vmem:[#allocation2 + $0x89] sm:$0x1] 0.0
        %549 = vst [vmem:[#allocation2 + $0xa1] sm:$0x1] 0.0
        %550 = vst [vmem:[#allocation2 + $0xb9] sm:$0x1] 0.0
        %551 = vst [vmem:[#allocation2 + $0xd1] sm:$0x1] 0.0
        %552 = vst [vmem:[#allocation2 + $0xe9] sm:$0x1] 0.0
        %553 = vst [vmem:[#allocation2 + $0x101] sm:$0x1] 0.0
        %554 = vst [vmem:[#allocation2 + $0x119] sm:$0x1] 0.0
        %555 = vst [vmem:[#allocation2 + $0x131] sm:$0x1] 0.0
        %556 = vst [vmem:[#allocation2 + $0x149] sm:$0x1] 0.0
        %557 = vst [vmem:[#allocation2 + $0x161] sm:$0x1] 0.0
        %558 = vst [vmem:[#allocation2 + $0x179] sm:$0x1] 0.0
        %559 = vst [vmem:[#allocation2 + $0x191] sm:$0x1] 0.0
        %560 = vst [vmem:[#allocation2 + $0x1a9] sm:$0x1] 0.0
        %v561 = vld [vmem:[%s458] sm:$0xff]
        %v562 = vld [vmem:[%s458 + $0x8] sm:$0xff]
        %v563 = vld [vmem:[%s458 + $0x10] sm:$0xff]
        %v564 = vld [vmem:[%s458 + $0x18] sm:$0xff]
        %v565 = vld [vmem:[%s458 + $0x20] sm:$0xff]
        %v566 = vld [vmem:[%s458 + $0x28] sm:$0xff]
        %v567 = vld [vmem:[%s458 + $0x30] sm:$0xff]
        %v568 = vld [vmem:[%s458 + $0x38] sm:$0xff]
        %v569 = vld [vmem:[%s458 + $0x40] sm:$0xff]
        %v570 = vld [vmem:[%s458 + $0x48] sm:$0xff]
        %v571 = vld [vmem:[%s458 + $0x50] sm:$0xff]
        %v572 = vld [vmem:[%s458 + $0x58] sm:$0xff]
        %v573 = vld [vmem:[%s458 + $0x60] sm:$0xff]
        %v574 = vld [vmem:[%s458 + $0x68] sm:$0xff]
        %v575 = vld [vmem:[%s458 + $0x70] sm:$0xff]
        %v576 = vld [vmem:[%s458 + $0x78] sm:$0xff]
        %v577 = vld [vmem:[%s458 + $0x80] sm:$0xff]
        %v578 = vld [vmem:[%s458 + $0x88] sm:$0xff]
        %v579 = vld [vmem:[%s458 + $0x90] sm:$0xff]
        %v580 = vld [vmem:[%s458 + $0x98] sm:$0xff]
        %v581 = vld [vmem:[%s458 + $0xa0] sm:$0xff]
        %v582 = vld [vmem:[%s458 + $0xa8] sm:$0xff]
        %v583 = vld [vmem:[%s458 + $0xb0] sm:$0xff]
        %v584 = vld [vmem:[%s458 + $0xb8] sm:$0xff]
        %v585 = vld [vmem:[%s458 + $0xc0] sm:$0xff]
        %v586 = vld [vmem:[%s458 + $0xc8] sm:$0xff]
        %v587 = vld [vmem:[%s458 + $0xd0] sm:$0xff]
        %v588 = vld [vmem:[%s458 + $0xd8] sm:$0xff]
        %v589 = vld [vmem:[%s458 + $0xe0] sm:$0xff]
        %v590 = vld [vmem:[%s458 + $0xe8] sm:$0xff]
        %v591 = vld [vmem:[%s458 + $0xf0] sm:$0xff]
        %v592 = vld [vmem:[%s458 + $0xf8] sm:$0xff]
        %v593 = vpack.c.bf16 %v562, %v561
        %v594 = vpack.c.bf16 %v564, %v563
        %v595 = vpack.c.bf16 %v566, %v565
        %v596 = vpack.c.bf16 %v568, %v567
        %v597 = vpack.c.bf16 %v570, %v569
        %v598 = vpack.c.bf16 %v572, %v571
        %v599 = vpack.c.bf16 %v574, %v573
        %v600 = vpack.c.bf16 %v576, %v575
        %v601 = vpack.c.bf16 %v578, %v577
        %v602 = vpack.c.bf16 %v580, %v579
        %v603 = vpack.c.bf16 %v582, %v581
        %v604 = vpack.c.bf16 %v584, %v583
        %v605 = vpack.c.bf16 %v586, %v585
        %v606 = vpack.c.bf16 %v588, %v587
        %v607 = vpack.c.bf16 %v590, %v589
        %v608 = vpack.c.bf16 %v592, %v591
        %v609 = vld [vmem:[#allocation6] sm:$0xf]
        %v610 = vld [vmem:[#allocation6 + $0x4] sm:$0xf]
        %v611 = vld [vmem:[#allocation6 + $0x8] sm:$0xf]
        %v612 = vld [vmem:[#allocation6 + $0xc] sm:$0xf]
        %v613 = vld [vmem:[#allocation6 + $0x10] sm:$0xf]
        %v614 = vld [vmem:[#allocation6 + $0x14] sm:$0xf]
        %v615 = vld [vmem:[#allocation6 + $0x18] sm:$0xf]
        %v616 = vld [vmem:[#allocation6 + $0x1c] sm:$0xf]
        %v617 = vld [vmem:[#allocation6 + $0x20] sm:$0xf]
        %v618 = vld [vmem:[#allocation6 + $0x24] sm:$0xf]
        %v619 = vld [vmem:[#allocation6 + $0x28] sm:$0xf]
        %v620 = vld [vmem:[#allocation6 + $0x2c] sm:$0xf]
        %v621 = vld [vmem:[#allocation6 + $0x30] sm:$0xf]
        %v622 = vld [vmem:[#allocation6 + $0x34] sm:$0xf]
        %v623 = vld [vmem:[#allocation6 + $0x38] sm:$0xf]
        %v624 = vld [vmem:[#allocation6 + $0x3c] sm:$0xf]
        %v641 = vunpack.c.l.b16 %v609
        %v642 = vunpack.c.l.b16 %v610
        %v643 = vunpack.c.l.b16 %v611
        %v644 = vunpack.c.l.b16 %v612
        %v645 = vunpack.c.l.b16 %v613
        %v646 = vunpack.c.l.b16 %v614
        %v647 = vunpack.c.l.b16 %v615
        %v648 = vunpack.c.l.b16 %v616
        %v649 = vunpack.c.l.b16 %v617
        %v650 = vunpack.c.l.b16 %v618
        %v651 = vunpack.c.l.b16 %v619
        %v652 = vunpack.c.l.b16 %v620
        %v653 = vunpack.c.l.b16 %v621
        %v654 = vunpack.c.l.b16 %v622
        %v655 = vunpack.c.l.b16 %v623
        %v656 = vunpack.c.l.b16 %v624
        %v657 = vpack.c.b16 %v642, %v641
        %v658 = vpack.c.b16 %v644, %v643
        %v659 = vpack.c.b16 %v646, %v645
        %v660 = vpack.c.b16 %v648, %v647
        %v661 = vpack.c.b16 %v650, %v649
        %v662 = vpack.c.b16 %v652, %v651
        %v663 = vpack.c.b16 %v654, %v653
        %v664 = vpack.c.b16 %v656, %v655
        %673 = vmatprep.subr.bf16.mxu0 0
        %674 = vmatpush1.bf16.msra.mxu0 %v657
        %675 = vmatprep.subr.bf16.mxu0 0
        %676 = vmatpush1.bf16.msra.mxu0 %v658
        %677 = vmatprep.subr.bf16.mxu0 0
        %678 = vmatpush1.bf16.msra.mxu0 %v659
        %679 = vmatprep.subr.bf16.mxu0 0
        %680 = vmatpush1.bf16.msra.mxu0 %v660
        %681 = vmatprep.subr.bf16.mxu0 0
        %682 = vmatpush1.bf16.msra.mxu0 %v661
        %683 = vmatprep.subr.bf16.mxu0 0
        %684 = vmatpush1.bf16.msra.mxu0 %v662
        %685 = vmatprep.subr.bf16.mxu0 0
        %686 = vmatpush1.bf16.msra.mxu0 %v663
        %687 = vmatprep.subr.bf16.mxu0 0
        %688 = vmatpush1.bf16.msra.mxu0 %v664
        %689 = vmatprep.subr.bf16.mxu0 0
        %690 = vmatpush1.bf16.msra.mxu0 0
        %691 = vmatprep.subr.bf16.mxu0 0
        %692 = vmatpush1.bf16.msra.mxu0 0
        %693 = vmatprep.subr.bf16.mxu0 0
        %694 = vmatpush1.bf16.msra.mxu0 0
        %695 = vmatprep.subr.bf16.mxu0 0
        %696 = vmatpush1.bf16.msra.mxu0 0
        %697 = vmatprep.subr.bf16.mxu0 0
        %698 = vmatpush1.bf16.msra.mxu0 0
        %699 = vmatprep.subr.bf16.mxu0 0
        %700 = vmatpush1.bf16.msra.mxu0 0
        %701 = vmatprep.subr.bf16.mxu0 0
        %702 = vmatpush1.bf16.msra.mxu0 0
        %703 = vmatprep.subr.bf16.mxu0 0
        %704 = vmatpush1.bf16.msra.mxu0 0
        %705 = vmatprep.mubr.bf16.mxu0 0
        %706 = vmatmul.mubr.bf16.gmra.mrb[0].mxu0 %v593
        %v707 = vpop.f32.mrb[0].mxu0
        %v708 = vadd.f32 0.0, %v707
        %v709 = vpop.f32.mrb[0].mxu0
        %v710 = vpop.f32.mrb[0].mxu0
        %v711 = vadd.f32 0.0, %v710
        %v712 = vpop.f32.mrb[0].mxu0
        %713 = vmatprep.mubr.bf16.mxu0 0
        %714 = vmatmul.mubr.bf16.gmra.mrb[0].mxu0 %v594
        %v715 = vpop.f32.mrb[0].mxu0
        %v716 = vadd.f32 0.0, %v715
        %v717 = vpop.f32.mrb[0].mxu0
        %v718 = vpop.f32.mrb[0].mxu0
        %v719 = vadd.f32 0.0, %v718
        %v720 = vpop.f32.mrb[0].mxu0
        %721 = vmatprep.mubr.bf16.mxu0 0
        %722 = vmatmul.mubr.bf16.gmra.mrb[0].mxu0 %v595
        %v723 = vpop.f32.mrb[0].mxu0
        %v724 = vadd.f32 0.0, %v723
        %v725 = vpop.f32.mrb[0].mxu0
        %v726 = vpop.f32.mrb[0].mxu0
        %v727 = vadd.f32 0.0, %v726
        %v728 = vpop.f32.mrb[0].mxu0
        %729 = vmatprep.mubr.bf16.mxu0 0
        %730 = vmatmul.mubr.bf16.gmra.mrb[0].mxu0 %v596
        %v731 = vpop.f32.mrb[0].mxu0
        %v732 = vadd.f32 0.0, %v731
        %v733 = vpop.f32.mrb[0].mxu0
        %v734 = vpop.f32.mrb[0].mxu0
        %v735 = vadd.f32 0.0, %v734
        %v736 = vpop.f32.mrb[0].mxu0
        %737 = vmatprep.mubr.bf16.mxu0 0
        %738 = vmatmul.mubr.bf16.gmra.mrb[0].mxu0 %v597
        %v739 = vpop.f32.mrb[0].mxu0
        %v740 = vadd.f32 0.0, %v739
        %v741 = vpop.f32.mrb[0].mxu0
        %v742 = vpop.f32.mrb[0].mxu0
        %v743 = vadd.f32 0.0, %v742
        %v744 = vpop.f32.mrb[0].mxu0
        %745 = vmatprep.mubr.bf16.mxu0 0
        %746 = vmatmul.mubr.bf16.gmra.mrb[0].mxu0 %v598
        %v747 = vpop.f32.mrb[0].mxu0
        %v748 = vadd.f32 0.0, %v747
        %v749 = vpop.f32.mrb[0].mxu0
        %v750 = vpop.f32.mrb[0].mxu0
        %v751 = vadd.f32 0.0, %v750
        %v752 = vpop.f32.mrb[0].mxu0
        %753 = vmatprep.mubr.bf16.mxu0 0
        %754 = vmatmul.mubr.bf16.gmra.mrb[0].mxu0 %v599
        %v755 = vpop.f32.mrb[0].mxu0
        %v756 = vadd.f32 0.0, %v755
        %v757 = vpop.f32.mrb[0].mxu0
        %v758 = vpop.f32.mrb[0].mxu0
        %v759 = vadd.f32 0.0, %v758
        %v760 = vpop.f32.mrb[0].mxu0
        %761 = vmatprep.mubr.bf16.mxu0 0
        %762 = vmatmul.mubr.bf16.gmra.mrb[0].mxu0 %v600
        %v763 = vpop.f32.mrb[0].mxu0
        %v764 = vadd.f32 0.0, %v763
        %v765 = vpop.f32.mrb[0].mxu0
        %v766 = vpop.f32.mrb[0].mxu0
        %v767 = vadd.f32 0.0, %v766
        %v768 = vpop.f32.mrb[0].mxu0
        %769 = vmatprep.mubr.bf16.mxu0 0
        %770 = vmatmul.mubr.bf16.gmra.mrb[0].mxu0 %v601
        %v771 = vpop.f32.mrb[0].mxu0
        %v772 = vadd.f32 0.0, %v771
        %v773 = vpop.f32.mrb[0].mxu0
        %v774 = vpop.f32.mrb[0].mxu0
        %v775 = vadd.f32 0.0, %v774
        %v776 = vpop.f32.mrb[0].mxu0
        %777 = vmatprep.mubr.bf16.mxu0 0
        %778 = vmatmul.mubr.bf16.gmra.mrb[0].mxu0 %v602
        %v779 = vpop.f32.mrb[0].mxu0
        %v780 = vadd.f32 0.0, %v779
        %v781 = vpop.f32.mrb[0].mxu0
        %v782 = vpop.f32.mrb[0].mxu0
        %v783 = vadd.f32 0.0, %v782
        %v784 = vpop.f32.mrb[0].mxu0
        %785 = vmatprep.mubr.bf16.mxu0 0
        %786 = vmatmul.mubr.bf16.gmra.mrb[0].mxu0 %v603
        %v787 = vpop.f32.mrb[0].mxu0
        %v788 = vadd.f32 0.0, %v787
        %v789 = vpop.f32.mrb[0].mxu0
        %v790 = vpop.f32.mrb[0].mxu0
        %v791 = vadd.f32 0.0, %v790
        %v792 = vpop.f32.mrb[0].mxu0
        %793 = vmatprep.mubr.bf16.mxu0 0
        %794 = vmatmul.mubr.bf16.gmra.mrb[0].mxu0 %v604
        %v795 = vpop.f32.mrb[0].mxu0
        %v796 = vadd.f32 0.0, %v795
        %v797 = vpop.f32.mrb[0].mxu0
        %v798 = vpop.f32.mrb[0].mxu0
        %v799 = vadd.f32 0.0, %v798
        %v800 = vpop.f32.mrb[0].mxu0
        %801 = vmatprep.mubr.bf16.mxu0 0
        %802 = vmatmul.mubr.bf16.gmra.mrb[0].mxu0 %v605
        %v803 = vpop.f32.mrb[0].mxu0
        %v804 = vadd.f32 0.0, %v803
        %v805 = vpop.f32.mrb[0].mxu0
        %v806 = vpop.f32.mrb[0].mxu0
        %v807 = vadd.f32 0.0, %v806
        %v808 = vpop.f32.mrb[0].mxu0
        %809 = vmatprep.mubr.bf16.mxu0 0
        %810 = vmatmul.mubr.bf16.gmra.mrb[0].mxu0 %v606
        %v811 = vpop.f32.mrb[0].mxu0
        %v812 = vadd.f32 0.0, %v811
        %v813 = vpop.f32.mrb[0].mxu0
        %v814 = vpop.f32.mrb[0].mxu0
        %v815 = vadd.f32 0.0, %v814
        %v816 = vpop.f32.mrb[0].mxu0
        %817 = vmatprep.mubr.bf16.mxu0 0
        %818 = vmatmul.mubr.bf16.gmra.mrb[0].mxu0 %v607
        %v819 = vpop.f32.mrb[0].mxu0
        %v820 = vadd.f32 0.0, %v819
        %v821 = vpop.f32.mrb[0].mxu0
        %v822 = vpop.f32.mrb[0].mxu0
        %v823 = vadd.f32 0.0, %v822
        %v824 = vpop.f32.mrb[0].mxu0
        %825 = vmatprep.mubr.bf16.mxu0 0
        %826 = vmatmul.mubr.bf16.gmra.mrb[0].mxu0 %v608
        %v827 = vpop.f32.mrb[0].mxu0
        %v828 = vadd.f32 0.0, %v827
        %v829 = vpop.f32.mrb[0].mxu0
        %v830 = vpop.f32.mrb[0].mxu0
        %v831 = vadd.f32 0.0, %v830
        %v832 = vpop.f32.mrb[0].mxu0
        %833 = vdwg.mxu0
        %v834 = vld [vmem:[%s2] sm:$0x1]
        %v836 = vlaneseq
        %v837 = vshrl.u32 %v836, 7
        %v838 = vsub.s32 0, %v837
        %v839 = vrot.slane %v834, %v838
        %v841 = vmul.f32 %v708, %v839
        %v842 = vmul.f32 %v711, %v839
        %v843 = vmul.f32 %v716, %v839
        %v844 = vmul.f32 %v719, %v839
        %v845 = vmul.f32 %v724, %v839
        %v846 = vmul.f32 %v727, %v839
        %v847 = vmul.f32 %v732, %v839
        %v848 = vmul.f32 %v735, %v839
        %v849 = vmul.f32 %v740, %v839
        %v850 = vmul.f32 %v743, %v839
        %v851 = vmul.f32 %v748, %v839
        %v852 = vmul.f32 %v751, %v839
        %v853 = vmul.f32 %v756, %v839
        %v854 = vmul.f32 %v759, %v839
        %v855 = vmul.f32 %v764, %v839
        %v856 = vmul.f32 %v767, %v839
        %v857 = vmul.f32 %v772, %v839
        %v858 = vmul.f32 %v775, %v839
        %v859 = vmul.f32 %v780, %v839
        %v860 = vmul.f32 %v783, %v839
        %v861 = vmul.f32 %v788, %v839
        %v862 = vmul.f32 %v791, %v839
        %v863 = vmul.f32 %v796, %v839
        %v864 = vmul.f32 %v799, %v839
        %v865 = vmul.f32 %v804, %v839
        %v866 = vmul.f32 %v807, %v839
        %v867 = vmul.f32 %v812, %v839
        %v868 = vmul.f32 %v815, %v839
        %v869 = vmul.f32 %v820, %v839
        %v870 = vmul.f32 %v823, %v839
        %v871 = vmul.f32 %v828, %v839
        %v872 = vmul.f32 %v831, %v839
        %v873 = vld [vmem:[%s3] sm:$0x1]
        %v875 = vlaneseq
        %v876 = vshrl.u32 %v875, 7
        %v877 = vsub.s32 0, %v876
        %v878 = vrot.slane %v873, %v877
        %v880 = vadd.f32 %v841, %v878
        %v881 = vadd.f32 %v842, %v878
        %v882 = vadd.f32 %v843, %v878
        %v883 = vadd.f32 %v844, %v878
        %v884 = vadd.f32 %v845, %v878
        %v885 = vadd.f32 %v846, %v878
        %v886 = vadd.f32 %v847, %v878
        %v887 = vadd.f32 %v848, %v878
        %v888 = vadd.f32 %v849, %v878
        %v889 = vadd.f32 %v850, %v878
        %v890 = vadd.f32 %v851, %v878
        %v891 = vadd.f32 %v852, %v878
        %v892 = vadd.f32 %v853, %v878
        %v893 = vadd.f32 %v854, %v878
        %v894 = vadd.f32 %v855, %v878
        %v895 = vadd.f32 %v856, %v878
        %v896 = vadd.f32 %v857, %v878
        %v897 = vadd.f32 %v858, %v878
        %v898 = vadd.f32 %v859, %v878
        %v899 = vadd.f32 %v860, %v878
        %v900 = vadd.f32 %v861, %v878
        %v901 = vadd.f32 %v862, %v878
        %v902 = vadd.f32 %v863, %v878
        %v903 = vadd.f32 %v864, %v878
        %v904 = vadd.f32 %v865, %v878
        %v905 = vadd.f32 %v866, %v878
        %v906 = vadd.f32 %v867, %v878
        %v907 = vadd.f32 %v868, %v878
        %v908 = vadd.f32 %v869, %v878
        %v909 = vadd.f32 %v870, %v878
        %v910 = vadd.f32 %v871, %v878
        %v911 = vadd.f32 %v872, %v878
        %v912 = vmax.f32 %v880, 0.0
        %v913 = vmax.f32 %v881, 0.0
        %v914 = vmax.f32 %v882, 0.0
        %v915 = vmax.f32 %v883, 0.0
        %v916 = vmax.f32 %v884, 0.0
        %v917 = vmax.f32 %v885, 0.0
        %v918 = vmax.f32 %v886, 0.0
        %v919 = vmax.f32 %v887, 0.0
        %v920 = vmax.f32 %v888, 0.0
        %v921 = vmax.f32 %v889, 0.0
        %v922 = vmax.f32 %v890, 0.0
        %v923 = vmax.f32 %v891, 0.0
        %v924 = vmax.f32 %v892, 0.0
        %v925 = vmax.f32 %v893, 0.0
        %v926 = vmax.f32 %v894, 0.0
        %v927 = vmax.f32 %v895, 0.0
        %v928 = vmax.f32 %v896, 0.0
        %v929 = vmax.f32 %v897, 0.0
        %v930 = vmax.f32 %v898, 0.0
        %v931 = vmax.f32 %v899, 0.0
        %v932 = vmax.f32 %v900, 0.0
        %v933 = vmax.f32 %v901, 0.0
        %v934 = vmax.f32 %v902, 0.0
        %v935 = vmax.f32 %v903, 0.0
        %v936 = vmax.f32 %v904, 0.0
        %v937 = vmax.f32 %v905, 0.0
        %v938 = vmax.f32 %v906, 0.0
        %v939 = vmax.f32 %v907, 0.0
        %v940 = vmax.f32 %v908, 0.0
        %v941 = vmax.f32 %v909, 0.0
        %v942 = vmax.f32 %v910, 0.0
        %v943 = vmax.f32 %v911, 0.0
        %s944 = scalar_lea.vmem [#allocation2], 24
        %945 = vst [vmem:[%s944 + $0x1] sm:$0xff] %v912
        %946 = vst [vmem:[%s944 + $0x9] sm:$0xff] %v913
        %947 = vst [vmem:[%s944 + $0x19] sm:$0xff] %v914
        %948 = vst [vmem:[%s944 + $0x21] sm:$0xff] %v915
        %949 = vst [vmem:[%s944 + $0x31] sm:$0xff] %v916
        %950 = vst [vmem:[%s944 + $0x39] sm:$0xff] %v917
        %951 = vst [vmem:[%s944 + $0x49] sm:$0xff] %v918
        %952 = vst [vmem:[%s944 + $0x51] sm:$0xff] %v919
        %953 = vst [vmem:[%s944 + $0x61] sm:$0xff] %v920
        %954 = vst [vmem:[%s944 + $0x69] sm:$0xff] %v921
        %955 = vst [vmem:[%s944 + $0x79] sm:$0xff] %v922
        %956 = vst [vmem:[%s944 + $0x81] sm:$0xff] %v923
        %957 = vst [vmem:[%s944 + $0x91] sm:$0xff] %v924
        %958 = vst [vmem:[%s944 + $0x99] sm:$0xff] %v925
        %959 = vst [vmem:[%s944 + $0xa9] sm:$0xff] %v926
        %960 = vst [vmem:[%s944 + $0xb1] sm:$0xff] %v927
        %961 = vst [vmem:[%s944 + $0xc1] sm:$0xff] %v928
        %962 = vst [vmem:[%s944 + $0xc9] sm:$0xff] %v929
        %963 = vst [vmem:[%s944 + $0xd9] sm:$0xff] %v930
        %964 = vst [vmem:[%s944 + $0xe1] sm:$0xff] %v931
        %965 = vst [vmem:[%s944 + $0xf1] sm:$0xff] %v932
        %966 = vst [vmem:[%s944 + $0xf9] sm:$0xff] %v933
        %967 = vst [vmem:[%s944 + $0x109] sm:$0xff] %v934
        %968 = vst [vmem:[%s944 + $0x111] sm:$0xff] %v935
        %969 = vst [vmem:[%s944 + $0x121] sm:$0xff] %v936
        %970 = vst [vmem:[%s944 + $0x129] sm:$0xff] %v937
        %971 = vst [vmem:[%s944 + $0x139] sm:$0xff] %v938
        %972 = vst [vmem:[%s944 + $0x141] sm:$0xff] %v939
        %973 = vst [vmem:[%s944 + $0x151] sm:$0xff] %v940
        %974 = vst [vmem:[%s944 + $0x159] sm:$0xff] %v941
        %975 = vst [vmem:[%s944 + $0x169] sm:$0xff] %v942
        %976 = vst [vmem:[%s944 + $0x171] sm:$0xff] %v943
        %v977 = vld [vmem:[%s5] sm:$0x1]
        %v978 = vld [vmem:[%s6] sm:$0x1]
        %v979 = vld [vmem:[%s8] sm:$0x1]
        %v980 = vld [vmem:[%s9] sm:$0x1]
        %v981 = vld [vmem:[%s11] sm:$0x1]
        %v982 = vld [vmem:[%s12] sm:$0x1]
        %v983 = vld [vmem:[#allocation2] sm:$0xff]
        %v984 = vld [vmem:[#allocation2 + $0x8] sm:$0xff]
        %v985 = vld [vmem:[#allocation2 + $0x18] sm:$0xff]
        %v986 = vld [vmem:[#allocation2 + $0x20] sm:$0xff]
        %v987 = vld [vmem:[#allocation2 + $0x30] sm:$0xff]
        %v988 = vld [vmem:[#allocation2 + $0x38] sm:$0xff]
        %v989 = vld [vmem:[#allocation2 + $0x48] sm:$0xff]
        %v990 = vld [vmem:[#allocation2 + $0x50] sm:$0xff]
        %v991 = vld [vmem:[#allocation2 + $0x60] sm:$0xff]
        %v992 = vld [vmem:[#allocation2 + $0x68] sm:$0xff]
        %v993 = vld [vmem:[#allocation2 + $0x78] sm:$0xff]
        %v994 = vld [vmem:[#allocation2 + $0x80] sm:$0xff]
        %v995 = vld [vmem:[#allocation2 + $0x90] sm:$0xff]
        %v996 = vld [vmem:[#allocation2 + $0x98] sm:$0xff]
        %v997 = vld [vmem:[#allocation2 + $0xa8] sm:$0xff]
        %v998 = vld [vmem:[#allocation2 + $0xb0] sm:$0xff]
        %v999 = vld [vmem:[#allocation2 + $0xc0] sm:$0xff]
        %v1000 = vld [vmem:[#allocation2 + $0xc8] sm:$0xff]
        %v1001 = vld [vmem:[#allocation2 + $0xd8] sm:$0xff]
        %v1002 = vld [vmem:[#allocation2 + $0xe0] sm:$0xff]
        %v1003 = vld [vmem:[#allocation2 + $0xf0] sm:$0xff]
        %v1004 = vld [vmem:[#allocation2 + $0xf8] sm:$0xff]
        %v1005 = vld [vmem:[#allocation2 + $0x108] sm:$0xff]
        %v1006 = vld [vmem:[#allocation2 + $0x110] sm:$0xff]
        %v1007 = vld [vmem:[#allocation2 + $0x120] sm:$0xff]
        %v1008 = vld [vmem:[#allocation2 + $0x128] sm:$0xff]
        %v1009 = vld [vmem:[#allocation2 + $0x138] sm:$0xff]
        %v1010 = vld [vmem:[#allocation2 + $0x140] sm:$0xff]
        %v1011 = vld [vmem:[#allocation2 + $0x150] sm:$0xff]
        %v1012 = vld [vmem:[#allocation2 + $0x158] sm:$0xff]
        %v1013 = vld [vmem:[#allocation2 + $0x168] sm:$0xff]
        %v1014 = vld [vmem:[#allocation2 + $0x170] sm:$0xff]
        %v1015 = vpack.c.bf16 %v984, %v983
        %v1016 = vpack.c.bf16 %v986, %v985
        %v1017 = vpack.c.bf16 %v988, %v987
        %v1018 = vpack.c.bf16 %v990, %v989
        %v1019 = vpack.c.bf16 %v992, %v991
        %v1020 = vpack.c.bf16 %v994, %v993
        %v1021 = vpack.c.bf16 %v996, %v995
        %v1022 = vpack.c.bf16 %v998, %v997
        %v1023 = vpack.c.bf16 %v1000, %v999
        %v1024 = vpack.c.bf16 %v1002, %v1001
        %v1025 = vpack.c.bf16 %v1004, %v1003
        %v1026 = vpack.c.bf16 %v1006, %v1005
        %v1027 = vpack.c.bf16 %v1008, %v1007
        %v1028 = vpack.c.bf16 %v1010, %v1009
        %v1029 = vpack.c.bf16 %v1012, %v1011
        %v1030 = vpack.c.bf16 %v1014, %v1013
        %v1031 = vld [vmem:[#allocation8] sm:$0xf]
        %v1032 = vld [vmem:[#allocation8 + $0x4] sm:$0xf]
        %v1033 = vld [vmem:[#allocation8 + $0x8] sm:$0xf]
        %v1034 = vld [vmem:[#allocation8 + $0xc] sm:$0xf]
        %v1035 = vld [vmem:[#allocation8 + $0x10] sm:$0xf]
        %v1036 = vld [vmem:[#allocation8 + $0x14] sm:$0xf]
        %v1037 = vld [vmem:[#allocation8 + $0x18] sm:$0xf]
        %v1038 = vld [vmem:[#allocation8 + $0x1c] sm:$0xf]
        %v1039 = vld [vmem:[#allocation8 + $0x20] sm:$0xf]
        %v1040 = vld [vmem:[#allocation8 + $0x24] sm:$0xf]
        %v1041 = vld [vmem:[#allocation8 + $0x28] sm:$0xf]
        %v1042 = vld [vmem:[#allocation8 + $0x2c] sm:$0xf]
        %v1043 = vld [vmem:[#allocation8 + $0x30] sm:$0xf]
        %v1044 = vld [vmem:[#allocation8 + $0x34] sm:$0xf]
        %v1045 = vld [vmem:[#allocation8 + $0x38] sm:$0xf]
        %v1046 = vld [vmem:[#allocation8 + $0x3c] sm:$0xf]
        %v1047 = vld [vmem:[#allocation2 + $0x1] sm:$0xff]
        %v1048 = vld [vmem:[#allocation2 + $0x9] sm:$0xff]
        %v1049 = vld [vmem:[#allocation2 + $0x19] sm:$0xff]
        %v1050 = vld [vmem:[#allocation2 + $0x21] sm:$0xff]
        %v1051 = vld [vmem:[#allocation2 + $0x31] sm:$0xff]
        %v1052 = vld [vmem:[#allocation2 + $0x39] sm:$0xff]
        %v1053 = vld [vmem:[#allocation2 + $0x49] sm:$0xff]
        %v1054 = vld [vmem:[#allocation2 + $0x51] sm:$0xff]
        %v1055 = vld [vmem:[#allocation2 + $0x61] sm:$0xff]
        %v1056 = vld [vmem:[#allocation2 + $0x69] sm:$0xff]
        %v1057 = vld [vmem:[#allocation2 + $0x79] sm:$0xff]
        %v1058 = vld [vmem:[#allocation2 + $0x81] sm:$0xff]
        %v1059 = vld [vmem:[#allocation2 + $0x91] sm:$0xff]
        %v1060 = vld [vmem:[#allocation2 + $0x99] sm:$0xff]
        %v1061 = vld [vmem:[#allocation2 + $0xa9] sm:$0xff]
        %v1062 = vld [vmem:[#allocation2 + $0xb1] sm:$0xff]
        %v1063 = vld [vmem:[#allocation2 + $0xc1] sm:$0xff]
        %v1064 = vld [vmem:[#allocation2 + $0xc9] sm:$0xff]
        %v1065 = vld [vmem:[#allocation2 + $0xd9] sm:$0xff]
        %v1066 = vld [vmem:[#allocation2 + $0xe1] sm:$0xff]
        %v1067 = vld [vmem:[#allocation2 + $0xf1] sm:$0xff]
        %v1068 = vld [vmem:[#allocation2 + $0xf9] sm:$0xff]
        %v1069 = vld [vmem:[#allocation2 + $0x109] sm:$0xff]
        %v1070 = vld [vmem:[#allocation2 + $0x111] sm:$0xff]
        %v1071 = vld [vmem:[#allocation2 + $0x121] sm:$0xff]
        %v1072 = vld [vmem:[#allocation2 + $0x129] sm:$0xff]
        %v1073 = vld [vmem:[#allocation2 + $0x139] sm:$0xff]
        %v1074 = vld [vmem:[#allocation2 + $0x141] sm:$0xff]
        %v1075 = vld [vmem:[#allocation2 + $0x151] sm:$0xff]
        %v1076 = vld [vmem:[#allocation2 + $0x159] sm:$0xff]
        %v1077 = vld [vmem:[#allocation2 + $0x169] sm:$0xff]
        %v1078 = vld [vmem:[#allocation2 + $0x171] sm:$0xff]
        %v1079 = vpack.c.bf16 %v1048, %v1047
        %v1080 = vpack.c.bf16 %v1050, %v1049
        %v1081 = vpack.c.bf16 %v1052, %v1051
        %v1082 = vpack.c.bf16 %v1054, %v1053
        %v1083 = vpack.c.bf16 %v1056, %v1055
        %v1084 = vpack.c.bf16 %v1058, %v1057
        %v1085 = vpack.c.bf16 %v1060, %v1059
        %v1086 = vpack.c.bf16 %v1062, %v1061
        %v1087 = vpack.c.bf16 %v1064, %v1063
        %v1088 = vpack.c.bf16 %v1066, %v1065
        %v1089 = vpack.c.bf16 %v1068, %v1067
        %v1090 = vpack.c.bf16 %v1070, %v1069
        %v1091 = vpack.c.bf16 %v1072, %v1071
        %v1092 = vpack.c.bf16 %v1074, %v1073
        %v1093 = vpack.c.bf16 %v1076, %v1075
        %v1094 = vpack.c.bf16 %v1078, %v1077
        %s1095 = scalar_lea.vmem [#allocation8], 64
        %v1096 = vld [vmem:[%s1095] sm:$0xf]
        %v1097 = vld [vmem:[%s1095 + $0x4] sm:$0xf]
        %v1098 = vld [vmem:[%s1095 + $0x8] sm:$0xf]
        %v1099 = vld [vmem:[%s1095 + $0xc] sm:$0xf]
        %v1100 = vld [vmem:[%s1095 + $0x10] sm:$0xf]
        %v1101 = vld [vmem:[%s1095 + $0x14] sm:$0xf]
        %v1102 = vld [vmem:[%s1095 + $0x18] sm:$0xf]
        %v1103 = vld [vmem:[%s1095 + $0x1c] sm:$0xf]
        %v1104 = vld [vmem:[%s1095 + $0x20] sm:$0xf]
        %v1105 = vld [vmem:[%s1095 + $0x24] sm:$0xf]
        %v1106 = vld [vmem:[%s1095 + $0x28] sm:$0xf]
        %v1107 = vld [vmem:[%s1095 + $0x2c] sm:$0xf]
        %v1108 = vld [vmem:[%s1095 + $0x30] sm:$0xf]
        %v1109 = vld [vmem:[%s1095 + $0x34] sm:$0xf]
        %v1110 = vld [vmem:[%s1095 + $0x38] sm:$0xf]
        %v1111 = vld [vmem:[%s1095 + $0x3c] sm:$0xf]
        %v1128 = vunpack.c.l.b16 %v1096
        %v1129 = vunpack.c.l.b16 %v1097
        %v1130 = vunpack.c.l.b16 %v1098
        %v1131 = vunpack.c.l.b16 %v1099
        %v1132 = vunpack.c.l.b16 %v1100
        %v1133 = vunpack.c.l.b16 %v1101
        %v1134 = vunpack.c.l.b16 %v1102
        %v1135 = vunpack.c.l.b16 %v1103
        %v1136 = vunpack.c.l.b16 %v1104
        %v1137 = vunpack.c.l.b16 %v1105
        %v1138 = vunpack.c.l.b16 %v1106
        %v1139 = vunpack.c.l.b16 %v1107
        %v1140 = vunpack.c.l.b16 %v1108
        %v1141 = vunpack.c.l.b16 %v1109
        %v1142 = vunpack.c.l.b16 %v1110
        %v1143 = vunpack.c.l.b16 %v1111
        %v1144 = vpack.c.b16 %v1129, %v1128
        %v1145 = vpack.c.b16 %v1131, %v1130
        %v1146 = vpack.c.b16 %v1133, %v1132
        %v1147 = vpack.c.b16 %v1135, %v1134
        %v1148 = vpack.c.b16 %v1137, %v1136
        %v1149 = vpack.c.b16 %v1139, %v1138
        %v1150 = vpack.c.b16 %v1141, %v1140
        %v1151 = vpack.c.b16 %v1143, %v1142
        %1160 = vmatprep.subr.bf16.mxu0 0
        %1161 = vmatpush1.bf16.msra.mxu0 %v1144
        %1162 = vmatprep.subr.bf16.mxu0 0
        %1163 = vmatpush1.bf16.msra.mxu0 %v1145
        %1164 = vmatprep.subr.bf16.mxu0 0
        %1165 = vmatpush1.bf16.msra.mxu0 %v1146
        %1166 = vmatprep.subr.bf16.mxu0 0
        %1167 = vmatpush1.bf16.msra.mxu0 %v1147
        %1168 = vmatprep.subr.bf16.mxu0 0
        %1169 = vmatpush1.bf16.msra.mxu0 %v1148
        %1170 = vmatprep.subr.bf16.mxu0 0
        %1171 = vmatpush1.bf16.msra.mxu0 %v1149
        %1172 = vmatprep.subr.bf16.mxu0 0
        %1173 = vmatpush1.bf16.msra.mxu0 %v1150
        %1174 = vmatprep.subr.bf16.mxu0 0
        %1175 = vmatpush1.bf16.msra.mxu0 %v1151
        %1176 = vmatprep.subr.bf16.mxu0 0
        %1177 = vmatpush1.bf16.msra.mxu0 0
        %1178 = vmatprep.subr.bf16.mxu0 0
        %1179 = vmatpush1.bf16.msra.mxu0 0
        %1180 = vmatprep.subr.bf16.mxu0 0
        %1181 = vmatpush1.bf16.msra.mxu0 0
        %1182 = vmatprep.subr.bf16.mxu0 0
        %1183 = vmatpush1.bf16.msra.mxu0 0
        %1184 = vmatprep.subr.bf16.mxu0 0
        %1185 = vmatpush1.bf16.msra.mxu0 0
        %1186 = vmatprep.subr.bf16.mxu0 0
        %1187 = vmatpush1.bf16.msra.mxu0 0
        %1188 = vmatprep.subr.bf16.mxu0 0
        %1189 = vmatpush1.bf16.msra.mxu0 0
        %1190 = vmatprep.subr.bf16.mxu0 0
        %1191 = vmatpush1.bf16.msra.mxu0 0
        %1192 = vmatprep.mubr.bf16.mxu0 0
        %1193 = vmatmul.mubr.bf16.gmra.mrb[0].mxu0 %v1079
        %v1194 = vpop.f32.mrb[0].mxu0
        %v1195 = vadd.f32 0.0, %v1194
        %v1196 = vpop.f32.mrb[0].mxu0
        %v1197 = vpop.f32.mrb[0].mxu0
        %v1198 = vadd.f32 0.0, %v1197
        %v1199 = vpop.f32.mrb[0].mxu0
        %1200 = vmatprep.mubr.bf16.mxu0 0
        %1201 = vmatmul.mubr.bf16.gmra.mrb[0].mxu0 %v1080
        %v1202 = vpop.f32.mrb[0].mxu0
        %v1203 = vadd.f32 0.0, %v1202
        %v1204 = vpop.f32.mrb[0].mxu0
        %v1205 = vpop.f32.mrb[0].mxu0
        %v1206 = vadd.f32 0.0, %v1205
        %v1207 = vpop.f32.mrb[0].mxu0
        %1208 = vmatprep.mubr.bf16.mxu0 0
        %1209 = vmatmul.mubr.bf16.gmra.mrb[0].mxu0 %v1081
        %v1210 = vpop.f32.mrb[0].mxu0
        %v1211 = vadd.f32 0.0, %v1210
        %v1212 = vpop.f32.mrb[0].mxu0
        %v1213 = vpop.f32.mrb[0].mxu0
        %v1214 = vadd.f32 0.0, %v1213
        %v1215 = vpop.f32.mrb[0].mxu0
        %1216 = vmatprep.mubr.bf16.mxu0 0
        %1217 = vmatmul.mubr.bf16.gmra.mrb[0].mxu0 %v1082
        %v1218 = vpop.f32.mrb[0].mxu0
        %v1219 = vadd.f32 0.0, %v1218
        %v1220 = vpop.f32.mrb[0].mxu0
        %v1221 = vpop.f32.mrb[0].mxu0
        %v1222 = vadd.f32 0.0, %v1221
        %v1223 = vpop.f32.mrb[0].mxu0
        %1224 = vmatprep.mubr.bf16.mxu0 0
        %1225 = vmatmul.mubr.bf16.gmra.mrb[0].mxu0 %v1083
        %v1226 = vpop.f32.mrb[0].mxu0
        %v1227 = vadd.f32 0.0, %v1226
        %v1228 = vpop.f32.mrb[0].mxu0
        %v1229 = vpop.f32.mrb[0].mxu0
        %v1230 = vadd.f32 0.0, %v1229
        %v1231 = vpop.f32.mrb[0].mxu0
        %1232 = vmatprep.mubr.bf16.mxu0 0
        %1233 = vmatmul.mubr.bf16.gmra.mrb[0].mxu0 %v1084
        %v1234 = vpop.f32.mrb[0].mxu0
        %v1235 = vadd.f32 0.0, %v1234
        %v1236 = vpop.f32.mrb[0].mxu0
        %v1237 = vpop.f32.mrb[0].mxu0
        %v1238 = vadd.f32 0.0, %v1237
        %v1239 = vpop.f32.mrb[0].mxu0
        %1240 = vmatprep.mubr.bf16.mxu0 0
        %1241 = vmatmul.mubr.bf16.gmra.mrb[0].mxu0 %v1085
        %v1242 = vpop.f32.mrb[0].mxu0
        %v1243 = vadd.f32 0.0, %v1242
        %v1244 = vpop.f32.mrb[0].mxu0
        %v1245 = vpop.f32.mrb[0].mxu0
        %v1246 = vadd.f32 0.0, %v1245
        %v1247 = vpop.f32.mrb[0].mxu0
        %1248 = vmatprep.mubr.bf16.mxu0 0
        %1249 = vmatmul.mubr.bf16.gmra.mrb[0].mxu0 %v1086
        %v1250 = vpop.f32.mrb[0].mxu0
        %v1251 = vadd.f32 0.0, %v1250
        %v1252 = vpop.f32.mrb[0].mxu0
        %v1253 = vpop.f32.mrb[0].mxu0
        %v1254 = vadd.f32 0.0, %v1253
        %v1255 = vpop.f32.mrb[0].mxu0
        %1256 = vmatprep.mubr.bf16.mxu0 0
        %1257 = vmatmul.mubr.bf16.gmra.mrb[0].mxu0 %v1087
        %v1258 = vpop.f32.mrb[0].mxu0
        %v1259 = vadd.f32 0.0, %v1258
        %v1260 = vpop.f32.mrb[0].mxu0
        %v1261 = vpop.f32.mrb[0].mxu0
        %v1262 = vadd.f32 0.0, %v1261
        %v1263 = vpop.f32.mrb[0].mxu0
        %1264 = vmatprep.mubr.bf16.mxu0 0
        %1265 = vmatmul.mubr.bf16.gmra.mrb[0].mxu0 %v1088
        %v1266 = vpop.f32.mrb[0].mxu0
        %v1267 = vadd.f32 0.0, %v1266
        %v1268 = vpop.f32.mrb[0].mxu0
        %v1269 = vpop.f32.mrb[0].mxu0
        %v1270 = vadd.f32 0.0, %v1269
        %v1271 = vpop.f32.mrb[0].mxu0
        %1272 = vmatprep.mubr.bf16.mxu0 0
        %1273 = vmatmul.mubr.bf16.gmra.mrb[0].mxu0 %v1089
        %v1274 = vpop.f32.mrb[0].mxu0
        %v1275 = vadd.f32 0.0, %v1274
        %v1276 = vpop.f32.mrb[0].mxu0
        %v1277 = vpop.f32.mrb[0].mxu0
        %v1278 = vadd.f32 0.0, %v1277
        %v1279 = vpop.f32.mrb[0].mxu0
        %1280 = vmatprep.mubr.bf16.mxu0 0
        %1281 = vmatmul.mubr.bf16.gmra.mrb[0].mxu0 %v1090
        %v1282 = vpop.f32.mrb[0].mxu0
        %v1283 = vadd.f32 0.0, %v1282
        %v1284 = vpop.f32.mrb[0].mxu0
        %v1285 = vpop.f32.mrb[0].mxu0
        %v1286 = vadd.f32 0.0, %v1285
        %v1287 = vpop.f32.mrb[0].mxu0
        %1288 = vmatprep.mubr.bf16.mxu0 0
        %1289 = vmatmul.mubr.bf16.gmra.mrb[0].mxu0 %v1091
        %v1290 = vpop.f32.mrb[0].mxu0
        %v1291 = vadd.f32 0.0, %v1290
        %v1292 = vpop.f32.mrb[0].mxu0
        %v1293 = vpop.f32.mrb[0].mxu0
        %v1294 = vadd.f32 0.0, %v1293
        %v1295 = vpop.f32.mrb[0].mxu0
        %1296 = vmatprep.mubr.bf16.mxu0 0
        %1297 = vmatmul.mubr.bf16.gmra.mrb[0].mxu0 %v1092
        %v1298 = vpop.f32.mrb[0].mxu0
        %v1299 = vadd.f32 0.0, %v1298
        %v1300 = vpop.f32.mrb[0].mxu0
        %v1301 = vpop.f32.mrb[0].mxu0
        %v1302 = vadd.f32 0.0, %v1301
        %v1303 = vpop.f32.mrb[0].mxu0
        %1304 = vmatprep.mubr.bf16.mxu0 0
        %1305 = vmatmul.mubr.bf16.gmra.mrb[0].mxu0 %v1093
        %v1306 = vpop.f32.mrb[0].mxu0
        %v1307 = vadd.f32 0.0, %v1306
        %v1308 = vpop.f32.mrb[0].mxu0
        %v1309 = vpop.f32.mrb[0].mxu0
        %v1310 = vadd.f32 0.0, %v1309
        %v1311 = vpop.f32.mrb[0].mxu0
        %1312 = vmatprep.mubr.bf16.mxu0 0
        %1313 = vmatmul.mubr.bf16.gmra.mrb[0].mxu0 %v1094
        %v1314 = vpop.f32.mrb[0].mxu0
        %v1315 = vadd.f32 0.0, %v1314
        %v1316 = vpop.f32.mrb[0].mxu0
        %v1317 = vpop.f32.mrb[0].mxu0
        %v1318 = vadd.f32 0.0, %v1317
        %v1319 = vpop.f32.mrb[0].mxu0
        %1320 = vdwg.mxu0
        %v1337 = vunpack.c.l.b16 %v1031
        %v1338 = vunpack.c.l.b16 %v1032
        %v1339 = vunpack.c.l.b16 %v1033
        %v1340 = vunpack.c.l.b16 %v1034
        %v1341 = vunpack.c.l.b16 %v1035
        %v1342 = vunpack.c.l.b16 %v1036
        %v1343 = vunpack.c.l.b16 %v1037
        %v1344 = vunpack.c.l.b16 %v1038
        %v1345 = vunpack.c.l.b16 %v1039
        %v1346 = vunpack.c.l.b16 %v1040
        %v1347 = vunpack.c.l.b16 %v1041
        %v1348 = vunpack.c.l.b16 %v1042
        %v1349 = vunpack.c.l.b16 %v1043
        %v1350 = vunpack.c.l.b16 %v1044
        %v1351 = vunpack.c.l.b16 %v1045
        %v1352 = vunpack.c.l.b16 %v1046
        %v1353 = vpack.c.b16 %v1338, %v1337
        %v1354 = vpack.c.b16 %v1340, %v1339
        %v1355 = vpack.c.b16 %v1342, %v1341
        %v1356 = vpack.c.b16 %v1344, %v1343
        %v1357 = vpack.c.b16 %v1346, %v1345
        %v1358 = vpack.c.b16 %v1348, %v1347
        %v1359 = vpack.c.b16 %v1350, %v1349
        %v1360 = vpack.c.b16 %v1352, %v1351
        %1369 = vmatprep.subr.bf16.mxu0 0
        %1370 = vmatpush1.bf16.msra.mxu0 %v1353
        %1371 = vmatprep.subr.bf16.mxu0 0
        %1372 = vmatpush1.bf16.msra.mxu0 %v1354
        %1373 = vmatprep.subr.bf16.mxu0 0
        %1374 = vmatpush1.bf16.msra.mxu0 %v1355
        %1375 = vmatprep.subr.bf16.mxu0 0
        %1376 = vmatpush1.bf16.msra.mxu0 %v1356
        %1377 = vmatprep.subr.bf16.mxu0 0
        %1378 = vmatpush1.bf16.msra.mxu0 %v1357
        %1379 = vmatprep.subr.bf16.mxu0 0
        %1380 = vmatpush1.bf16.msra.mxu0 %v1358
        %1381 = vmatprep.subr.bf16.mxu0 0
        %1382 = vmatpush1.bf16.msra.mxu0 %v1359
        %1383 = vmatprep.subr.bf16.mxu0 0
        %1384 = vmatpush1.bf16.msra.mxu0 %v1360
        %1385 = vmatprep.subr.bf16.mxu0 0
        %1386 = vmatpush1.bf16.msra.mxu0 0
        %1387 = vmatprep.subr.bf16.mxu0 0
        %1388 = vmatpush1.bf16.msra.mxu0 0
        %1389 = vmatprep.subr.bf16.mxu0 0
        %1390 = vmatpush1.bf16.msra.mxu0 0
        %1391 = vmatprep.subr.bf16.mxu0 0
        %1392 = vmatpush1.bf16.msra.mxu0 0
        %1393 = vmatprep.subr.bf16.mxu0 0
        %1394 = vmatpush1.bf16.msra.mxu0 0
        %1395 = vmatprep.subr.bf16.mxu0 0
        %1396 = vmatpush1.bf16.msra.mxu0 0
        %1397 = vmatprep.subr.bf16.mxu0 0
        %1398 = vmatpush1.bf16.msra.mxu0 0
        %1399 = vmatprep.subr.bf16.mxu0 0
        %1400 = vmatpush1.bf16.msra.mxu0 0
        %1401 = vmatprep.mubr.bf16.mxu0 0
        %1402 = vmatmul.mubr.bf16.gmra.mrb[0].mxu0 %v1015
        %v1403 = vpop.f32.mrb[0].mxu0
        %v1404 = vadd.f32 %v1195, %v1403
        %v1405 = vpop.f32.mrb[0].mxu0
        %v1406 = vpop.f32.mrb[0].mxu0
        %v1407 = vadd.f32 %v1198, %v1406
        %v1408 = vpop.f32.mrb[0].mxu0
        %1409 = vmatprep.mubr.bf16.mxu0 0
        %1410 = vmatmul.mubr.bf16.gmra.mrb[0].mxu0 %v1016
        %v1411 = vpop.f32.mrb[0].mxu0
        %v1412 = vadd.f32 %v1203, %v1411
        %v1413 = vpop.f32.mrb[0].mxu0
        %v1414 = vpop.f32.mrb[0].mxu0
        %v1415 = vadd.f32 %v1206, %v1414
        %v1416 = vpop.f32.mrb[0].mxu0
        %1417 = vmatprep.mubr.bf16.mxu0 0
        %1418 = vmatmul.mubr.bf16.gmra.mrb[0].mxu0 %v1017
        %v1419 = vpop.f32.mrb[0].mxu0
        %v1420 = vadd.f32 %v1211, %v1419
        %v1421 = vpop.f32.mrb[0].mxu0
        %v1422 = vpop.f32.mrb[0].mxu0
        %v1423 = vadd.f32 %v1214, %v1422
        %v1424 = vpop.f32.mrb[0].mxu0
        %1425 = vmatprep.mubr.bf16.mxu0 0
        %1426 = vmatmul.mubr.bf16.gmra.mrb[0].mxu0 %v1018
        %v1427 = vpop.f32.mrb[0].mxu0
        %v1428 = vadd.f32 %v1219, %v1427
        %v1429 = vpop.f32.mrb[0].mxu0
        %v1430 = vpop.f32.mrb[0].mxu0
        %v1431 = vadd.f32 %v1222, %v1430
        %v1432 = vpop.f32.mrb[0].mxu0
        %1433 = vmatprep.mubr.bf16.mxu0 0
        %1434 = vmatmul.mubr.bf16.gmra.mrb[0].mxu0 %v1019
        %v1435 = vpop.f32.mrb[0].mxu0
        %v1436 = vadd.f32 %v1227, %v1435
        %v1437 = vpop.f32.mrb[0].mxu0
        %v1438 = vpop.f32.mrb[0].mxu0
        %v1439 = vadd.f32 %v1230, %v1438
        %v1440 = vpop.f32.mrb[0].mxu0
        %1441 = vmatprep.mubr.bf16.mxu0 0
        %1442 = vmatmul.mubr.bf16.gmra.mrb[0].mxu0 %v1020
        %v1443 = vpop.f32.mrb[0].mxu0
        %v1444 = vadd.f32 %v1235, %v1443
        %v1445 = vpop.f32.mrb[0].mxu0
        %v1446 = vpop.f32.mrb[0].mxu0
        %v1447 = vadd.f32 %v1238, %v1446
        %v1448 = vpop.f32.mrb[0].mxu0
        %1449 = vmatprep.mubr.bf16.mxu0 0
        %1450 = vmatmul.mubr.bf16.gmra.mrb[0].mxu0 %v1021
        %v1451 = vpop.f32.mrb[0].mxu0
        %v1452 = vadd.f32 %v1243, %v1451
        %v1453 = vpop.f32.mrb[0].mxu0
        %v1454 = vpop.f32.mrb[0].mxu0
        %v1455 = vadd.f32 %v1246, %v1454
        %v1456 = vpop.f32.mrb[0].mxu0
        %1457 = vmatprep.mubr.bf16.mxu0 0
        %1458 = vmatmul.mubr.bf16.gmra.mrb[0].mxu0 %v1022
        %v1459 = vpop.f32.mrb[0].mxu0
        %v1460 = vadd.f32 %v1251, %v1459
        %v1461 = vpop.f32.mrb[0].mxu0
        %v1462 = vpop.f32.mrb[0].mxu0
        %v1463 = vadd.f32 %v1254, %v1462
        %v1464 = vpop.f32.mrb[0].mxu0
        %1465 = vmatprep.mubr.bf16.mxu0 0
        %1466 = vmatmul.mubr.bf16.gmra.mrb[0].mxu0 %v1023
        %v1467 = vpop.f32.mrb[0].mxu0
        %v1468 = vadd.f32 %v1259, %v1467
        %v1469 = vpop.f32.mrb[0].mxu0
        %v1470 = vpop.f32.mrb[0].mxu0
        %v1471 = vadd.f32 %v1262, %v1470
        %v1472 = vpop.f32.mrb[0].mxu0
        %1473 = vmatprep.mubr.bf16.mxu0 0
        %1474 = vmatmul.mubr.bf16.gmra.mrb[0].mxu0 %v1024
        %v1475 = vpop.f32.mrb[0].mxu0
        %v1476 = vadd.f32 %v1267, %v1475
        %v1477 = vpop.f32.mrb[0].mxu0
        %v1478 = vpop.f32.mrb[0].mxu0
        %v1479 = vadd.f32 %v1270, %v1478
        %v1480 = vpop.f32.mrb[0].mxu0
        %1481 = vmatprep.mubr.bf16.mxu0 0
        %1482 = vmatmul.mubr.bf16.gmra.mrb[0].mxu0 %v1025
        %v1483 = vpop.f32.mrb[0].mxu0
        %v1484 = vadd.f32 %v1275, %v1483
        %v1485 = vpop.f32.mrb[0].mxu0
        %v1486 = vpop.f32.mrb[0].mxu0
        %v1487 = vadd.f32 %v1278, %v1486
        %v1488 = vpop.f32.mrb[0].mxu0
        %1489 = vmatprep.mubr.bf16.mxu0 0
        %1490 = vmatmul.mubr.bf16.gmra.mrb[0].mxu0 %v1026
        %v1491 = vpop.f32.mrb[0].mxu0
        %v1492 = vadd.f32 %v1283, %v1491
        %v1493 = vpop.f32.mrb[0].mxu0
        %v1494 = vpop.f32.mrb[0].mxu0
        %v1495 = vadd.f32 %v1286, %v1494
        %v1496 = vpop.f32.mrb[0].mxu0
        %1497 = vmatprep.mubr.bf16.mxu0 0
        %1498 = vmatmul.mubr.bf16.gmra.mrb[0].mxu0 %v1027
        %v1499 = vpop.f32.mrb[0].mxu0
        %v1500 = vadd.f32 %v1291, %v1499
        %v1501 = vpop.f32.mrb[0].mxu0
        %v1502 = vpop.f32.mrb[0].mxu0
        %v1503 = vadd.f32 %v1294, %v1502
        %v1504 = vpop.f32.mrb[0].mxu0
        %1505 = vmatprep.mubr.bf16.mxu0 0
        %1506 = vmatmul.mubr.bf16.gmra.mrb[0].mxu0 %v1028
        %v1507 = vpop.f32.mrb[0].mxu0
        %v1508 = vadd.f32 %v1299, %v1507
        %v1509 = vpop.f32.mrb[0].mxu0
        %v1510 = vpop.f32.mrb[0].mxu0
        %v1511 = vadd.f32 %v1302, %v1510
        %v1512 = vpop.f32.mrb[0].mxu0
        %1513 = vmatprep.mubr.bf16.mxu0 0
        %1514 = vmatmul.mubr.bf16.gmra.mrb[0].mxu0 %v1029
        %v1515 = vpop.f32.mrb[0].mxu0
        %v1516 = vadd.f32 %v1307, %v1515
        %v1517 = vpop.f32.mrb[0].mxu0
        %v1518 = vpop.f32.mrb[0].mxu0
        %v1519 = vadd.f32 %v1310, %v1518
        %v1520 = vpop.f32.mrb[0].mxu0
        %1521 = vmatprep.mubr.bf16.mxu0 0
        %1522 = vmatmul.mubr.bf16.gmra.mrb[0].mxu0 %v1030
        %v1523 = vpop.f32.mrb[0].mxu0
        %v1524 = vadd.f32 %v1315, %v1523
        %v1525 = vpop.f32.mrb[0].mxu0
        %v1526 = vpop.f32.mrb[0].mxu0
        %v1527 = vadd.f32 %v1318, %v1526
        %v1528 = vpop.f32.mrb[0].mxu0
        %1529 = vdwg.mxu0
        %v1530 = vld [vmem:[#allocation2 + $0x2] sm:$0xff]
        %v1531 = vld [vmem:[#allocation2 + $0xa] sm:$0xff]
        %v1532 = vld [vmem:[#allocation2 + $0x1a] sm:$0xff]
        %v1533 = vld [vmem:[#allocation2 + $0x22] sm:$0xff]
        %v1534 = vld [vmem:[#allocation2 + $0x32] sm:$0xff]
        %v1535 = vld [vmem:[#allocation2 + $0x3a] sm:$0xff]
        %v1536 = vld [vmem:[#allocation2 + $0x4a] sm:$0xff]
        %v1537 = vld [vmem:[#allocation2 + $0x52] sm:$0xff]
        %v1538 = vld [vmem:[#allocation2 + $0x62] sm:$0xff]
        %v1539 = vld [vmem:[#allocation2 + $0x6a] sm:$0xff]
        %v1540 = vld [vmem:[#allocation2 + $0x7a] sm:$0xff]
        %v1541 = vld [vmem:[#allocation2 + $0x82] sm:$0xff]
        %v1542 = vld [vmem:[#allocation2 + $0x92] sm:$0xff]
        %v1543 = vld [vmem:[#allocation2 + $0x9a] sm:$0xff]
        %v1544 = vld [vmem:[#allocation2 + $0xaa] sm:$0xff]
        %v1545 = vld [vmem:[#allocation2 + $0xb2] sm:$0xff]
        %v1546 = vld [vmem:[#allocation2 + $0xc2] sm:$0xff]
        %v1547 = vld [vmem:[#allocation2 + $0xca] sm:$0xff]
        %v1548 = vld [vmem:[#allocation2 + $0xda] sm:$0xff]
        %v1549 = vld [vmem:[#allocation2 + $0xe2] sm:$0xff]
        %v1550 = vld [vmem:[#allocation2 + $0xf2] sm:$0xff]
        %v1551 = vld [vmem:[#allocation2 + $0xfa] sm:$0xff]
        %v1552 = vld [vmem:[#allocation2 + $0x10a] sm:$0xff]
        %v1553 = vld [vmem:[#allocation2 + $0x112] sm:$0xff]
        %v1554 = vld [vmem:[#allocation2 + $0x122] sm:$0xff]
        %v1555 = vld [vmem:[#allocation2 + $0x12a] sm:$0xff]
        %v1556 = vld [vmem:[#allocation2 + $0x13a] sm:$0xff]
        %v1557 = vld [vmem:[#allocation2 + $0x142] sm:$0xff]
        %v1558 = vld [vmem:[#allocation2 + $0x152] sm:$0xff]
        %v1559 = vld [vmem:[#allocation2 + $0x15a] sm:$0xff]
        %v1560 = vld [vmem:[#allocation2 + $0x16a] sm:$0xff]
        %v1561 = vld [vmem:[#allocation2 + $0x172] sm:$0xff]
        %v1562 = vpack.c.bf16 %v1531, %v1530
        %v1563 = vpack.c.bf16 %v1533, %v1532
        %v1564 = vpack.c.bf16 %v1535, %v1534
        %v1565 = vpack.c.bf16 %v1537, %v1536
        %v1566 = vpack.c.bf16 %v1539, %v1538
        %v1567 = vpack.c.bf16 %v1541, %v1540
        %v1568 = vpack.c.bf16 %v1543, %v1542
        %v1569 = vpack.c.bf16 %v1545, %v1544
        %v1570 = vpack.c.bf16 %v1547, %v1546
        %v1571 = vpack.c.bf16 %v1549, %v1548
        %v1572 = vpack.c.bf16 %v1551, %v1550
        %v1573 = vpack.c.bf16 %v1553, %v1552
        %v1574 = vpack.c.bf16 %v1555, %v1554
        %v1575 = vpack.c.bf16 %v1557, %v1556
        %v1576 = vpack.c.bf16 %v1559, %v1558
        %v1577 = vpack.c.bf16 %v1561, %v1560
        %s1578 = scalar_lea.vmem [#allocation8], 128
        %v1579 = vld [vmem:[%s1578] sm:$0xf]
        %v1580 = vld [vmem:[%s1578 + $0x4] sm:$0xf]
        %v1581 = vld [vmem:[%s1578 + $0x8] sm:$0xf]
        %v1582 = vld [vmem:[%s1578 + $0xc] sm:$0xf]
        %v1583 = vld [vmem:[%s1578 + $0x10] sm:$0xf]
        %v1584 = vld [vmem:[%s1578 + $0x14] sm:$0xf]
        %v1585 = vld [vmem:[%s1578 + $0x18] sm:$0xf]
        %v1586 = vld [vmem:[%s1578 + $0x1c] sm:$0xf]
        %v1587 = vld [vmem:[%s1578 + $0x20] sm:$0xf]
        %v1588 = vld [vmem:[%s1578 + $0x24] sm:$0xf]
        %v1589 = vld [vmem:[%s1578 + $0x28] sm:$0xf]
        %v1590 = vld [vmem:[%s1578 + $0x2c] sm:$0xf]
        %v1591 = vld [vmem:[%s1578 + $0x30] sm:$0xf]
        %v1592 = vld [vmem:[%s1578 + $0x34] sm:$0xf]
        %v1593 = vld [vmem:[%s1578 + $0x38] sm:$0xf]
        %v1594 = vld [vmem:[%s1578 + $0x3c] sm:$0xf]
        %v1611 = vunpack.c.l.b16 %v1579
        %v1612 = vunpack.c.l.b16 %v1580
        %v1613 = vunpack.c.l.b16 %v1581
        %v1614 = vunpack.c.l.b16 %v1582
        %v1615 = vunpack.c.l.b16 %v1583
        %v1616 = vunpack.c.l.b16 %v1584
        %v1617 = vunpack.c.l.b16 %v1585
        %v1618 = vunpack.c.l.b16 %v1586
        %v1619 = vunpack.c.l.b16 %v1587
        %v1620 = vunpack.c.l.b16 %v1588
        %v1621 = vunpack.c.l.b16 %v1589
        %v1622 = vunpack.c.l.b16 %v1590
        %v1623 = vunpack.c.l.b16 %v1591
        %v1624 = vunpack.c.l.b16 %v1592
        %v1625 = vunpack.c.l.b16 %v1593
        %v1626 = vunpack.c.l.b16 %v1594
        %v1627 = vpack.c.b16 %v1612, %v1611
        %v1628 = vpack.c.b16 %v1614, %v1613
        %v1629 = vpack.c.b16 %v1616, %v1615
        %v1630 = vpack.c.b16 %v1618, %v1617
        %v1631 = vpack.c.b16 %v1620, %v1619
        %v1632 = vpack.c.b16 %v1622, %v1621
        %v1633 = vpack.c.b16 %v1624, %v1623
        %v1634 = vpack.c.b16 %v1626, %v1625
        %1643 = vmatprep.subr.bf16.mxu0 0
        %1644 = vmatpush1.bf16.msra.mxu0 %v1627
        %1645 = vmatprep.subr.bf16.mxu0 0
        %1646 = vmatpush1.bf16.msra.mxu0 %v1628
        %1647 = vmatprep.subr.bf16.mxu0 0
        %1648 = vmatpush1.bf16.msra.mxu0 %v1629
        %1649 = vmatprep.subr.bf16.mxu0 0
        %1650 = vmatpush1.bf16.msra.mxu0 %v1630
        %1651 = vmatprep.subr.bf16.mxu0 0
        %1652 = vmatpush1.bf16.msra.mxu0 %v1631
        %1653 = vmatprep.subr.bf16.mxu0 0
        %1654 = vmatpush1.bf16.msra.mxu0 %v1632
        %1655 = vmatprep.subr.bf16.mxu0 0
        %1656 = vmatpush1.bf16.msra.mxu0 %v1633
        %1657 = vmatprep.subr.bf16.mxu0 0
        %1658 = vmatpush1.bf16.msra.mxu0 %v1634
        %1659 = vmatprep.subr.bf16.mxu0 0
        %1660 = vmatpush1.bf16.msra.mxu0 0
        %1661 = vmatprep.subr.bf16.mxu0 0
        %1662 = vmatpush1.bf16.msra.mxu0 0
        %1663 = vmatprep.subr.bf16.mxu0 0
        %1664 = vmatpush1.bf16.msra.mxu0 0
        %1665 = vmatprep.subr.bf16.mxu0 0
        %1666 = vmatpush1.bf16.msra.mxu0 0
        %1667 = vmatprep.subr.bf16.mxu0 0
        %1668 = vmatpush1.bf16.msra.mxu0 0
        %1669 = vmatprep.subr.bf16.mxu0 0
        %1670 = vmatpush1.bf16.msra.mxu0 0
        %1671 = vmatprep.subr.bf16.mxu0 0
        %1672 = vmatpush1.bf16.msra.mxu0 0
        %1673 = vmatprep.subr.bf16.mxu0 0
        %1674 = vmatpush1.bf16.msra.mxu0 0
        %1675 = vmatprep.mubr.bf16.mxu0 0
        %1676 = vmatmul.mubr.bf16.gmra.mrb[0].mxu0 %v1562
        %v1677 = vpop.f32.mrb[0].mxu0
        %v1678 = vadd.f32 0.0, %v1677
        %v1679 = vpop.f32.mrb[0].mxu0
        %v1680 = vpop.f32.mrb[0].mxu0
        %v1681 = vadd.f32 0.0, %v1680
        %v1682 = vpop.f32.mrb[0].mxu0
        %1683 = vmatprep.mubr.bf16.mxu0 0
        %1684 = vmatmul.mubr.bf16.gmra.mrb[0].mxu0 %v1563
        %v1685 = vpop.f32.mrb[0].mxu0
        %v1686 = vadd.f32 0.0, %v1685
        %v1687 = vpop.f32.mrb[0].mxu0
        %v1688 = vpop.f32.mrb[0].mxu0
        %v1689 = vadd.f32 0.0, %v1688
        %v1690 = vpop.f32.mrb[0].mxu0
        %1691 = vmatprep.mubr.bf16.mxu0 0
        %1692 = vmatmul.mubr.bf16.gmra.mrb[0].mxu0 %v1564
        %v1693 = vpop.f32.mrb[0].mxu0
        %v1694 = vadd.f32 0.0, %v1693
        %v1695 = vpop.f32.mrb[0].mxu0
        %v1696 = vpop.f32.mrb[0].mxu0
        %v1697 = vadd.f32 0.0, %v1696
        %v1698 = vpop.f32.mrb[0].mxu0
        %1699 = vmatprep.mubr.bf16.mxu0 0
        %1700 = vmatmul.mubr.bf16.gmra.mrb[0].mxu0 %v1565
        %v1701 = vpop.f32.mrb[0].mxu0
        %v1702 = vadd.f32 0.0, %v1701
        %v1703 = vpop.f32.mrb[0].mxu0
        %v1704 = vpop.f32.mrb[0].mxu0
        %v1705 = vadd.f32 0.0, %v1704
        %v1706 = vpop.f32.mrb[0].mxu0
        %1707 = vmatprep.mubr.bf16.mxu0 0
        %1708 = vmatmul.mubr.bf16.gmra.mrb[0].mxu0 %v1566
        %v1709 = vpop.f32.mrb[0].mxu0
        %v1710 = vadd.f32 0.0, %v1709
        %v1711 = vpop.f32.mrb[0].mxu0
        %v1712 = vpop.f32.mrb[0].mxu0
        %v1713 = vadd.f32 0.0, %v1712
        %v1714 = vpop.f32.mrb[0].mxu0
        %1715 = vmatprep.mubr.bf16.mxu0 0
        %1716 = vmatmul.mubr.bf16.gmra.mrb[0].mxu0 %v1567
        %v1717 = vpop.f32.mrb[0].mxu0
        %v1718 = vadd.f32 0.0, %v1717
        %v1719 = vpop.f32.mrb[0].mxu0
        %v1720 = vpop.f32.mrb[0].mxu0
        %v1721 = vadd.f32 0.0, %v1720
        %v1722 = vpop.f32.mrb[0].mxu0
        %1723 = vmatprep.mubr.bf16.mxu0 0
        %1724 = vmatmul.mubr.bf16.gmra.mrb[0].mxu0 %v1568
        %v1725 = vpop.f32.mrb[0].mxu0
        %v1726 = vadd.f32 0.0, %v1725
        %v1727 = vpop.f32.mrb[0].mxu0
        %v1728 = vpop.f32.mrb[0].mxu0
        %v1729 = vadd.f32 0.0, %v1728
        %v1730 = vpop.f32.mrb[0].mxu0
        %1731 = vmatprep.mubr.bf16.mxu0 0
        %1732 = vmatmul.mubr.bf16.gmra.mrb[0].mxu0 %v1569
        %v1733 = vpop.f32.mrb[0].mxu0
        %v1734 = vadd.f32 0.0, %v1733
        %v1735 = vpop.f32.mrb[0].mxu0
        %v1736 = vpop.f32.mrb[0].mxu0
        %v1737 = vadd.f32 0.0, %v1736
        %v1738 = vpop.f32.mrb[0].mxu0
        %1739 = vmatprep.mubr.bf16.mxu0 0
        %1740 = vmatmul.mubr.bf16.gmra.mrb[0].mxu0 %v1570
        %v1741 = vpop.f32.mrb[0].mxu0
        %v1742 = vadd.f32 0.0, %v1741
        %v1743 = vpop.f32.mrb[0].mxu0
        %v1744 = vpop.f32.mrb[0].mxu0
        %v1745 = vadd.f32 0.0, %v1744
        %v1746 = vpop.f32.mrb[0].mxu0
        %1747 = vmatprep.mubr.bf16.mxu0 0
        %1748 = vmatmul.mubr.bf16.gmra.mrb[0].mxu0 %v1571
        %v1749 = vpop.f32.mrb[0].mxu0
        %v1750 = vadd.f32 0.0, %v1749
        %v1751 = vpop.f32.mrb[0].mxu0
        %v1752 = vpop.f32.mrb[0].mxu0
        %v1753 = vadd.f32 0.0, %v1752
        %v1754 = vpop.f32.mrb[0].mxu0
        %1755 = vmatprep.mubr.bf16.mxu0 0
        %1756 = vmatmul.mubr.bf16.gmra.mrb[0].mxu0 %v1572
        %v1757 = vpop.f32.mrb[0].mxu0
        %v1758 = vadd.f32 0.0, %v1757
        %v1759 = vpop.f32.mrb[0].mxu0
        %v1760 = vpop.f32.mrb[0].mxu0
        %v1761 = vadd.f32 0.0, %v1760
        %v1762 = vpop.f32.mrb[0].mxu0
        %1763 = vmatprep.mubr.bf16.mxu0 0
        %1764 = vmatmul.mubr.bf16.gmra.mrb[0].mxu0 %v1573
        %v1765 = vpop.f32.mrb[0].mxu0
        %v1766 = vadd.f32 0.0, %v1765
        %v1767 = vpop.f32.mrb[0].mxu0
        %v1768 = vpop.f32.mrb[0].mxu0
        %v1769 = vadd.f32 0.0, %v1768
        %v1770 = vpop.f32.mrb[0].mxu0
        %1771 = vmatprep.mubr.bf16.mxu0 0
        %1772 = vmatmul.mubr.bf16.gmra.mrb[0].mxu0 %v1574
        %v1773 = vpop.f32.mrb[0].mxu0
        %v1774 = vadd.f32 0.0, %v1773
        %v1775 = vpop.f32.mrb[0].mxu0
        %v1776 = vpop.f32.mrb[0].mxu0
        %v1777 = vadd.f32 0.0, %v1776
        %v1778 = vpop.f32.mrb[0].mxu0
        %1779 = vmatprep.mubr.bf16.mxu0 0
        %1780 = vmatmul.mubr.bf16.gmra.mrb[0].mxu0 %v1575
        %v1781 = vpop.f32.mrb[0].mxu0
        %v1782 = vadd.f32 0.0, %v1781
        %v1783 = vpop.f32.mrb[0].mxu0
        %v1784 = vpop.f32.mrb[0].mxu0
        %v1785 = vadd.f32 0.0, %v1784
        %v1786 = vpop.f32.mrb[0].mxu0
        %1787 = vmatprep.mubr.bf16.mxu0 0
        %1788 = vmatmul.mubr.bf16.gmra.mrb[0].mxu0 %v1576
        %v1789 = vpop.f32.mrb[0].mxu0
        %v1790 = vadd.f32 0.0, %v1789
        %v1791 = vpop.f32.mrb[0].mxu0
        %v1792 = vpop.f32.mrb[0].mxu0
        %v1793 = vadd.f32 0.0, %v1792
        %v1794 = vpop.f32.mrb[0].mxu0
        %1795 = vmatprep.mubr.bf16.mxu0 0
        %1796 = vmatmul.mubr.bf16.gmra.mrb[0].mxu0 %v1577
        %v1797 = vpop.f32.mrb[0].mxu0
        %v1798 = vadd.f32 0.0, %v1797
        %v1799 = vpop.f32.mrb[0].mxu0
        %v1800 = vpop.f32.mrb[0].mxu0
        %v1801 = vadd.f32 0.0, %v1800
        %v1802 = vpop.f32.mrb[0].mxu0
        %1803 = vdwg.mxu0
        %v1804 = vadd.f32 %v1404, %v1678
        %v1805 = vadd.f32 %v1407, %v1681
        %v1806 = vadd.f32 %v1412, %v1686
        %v1807 = vadd.f32 %v1415, %v1689
        %v1808 = vadd.f32 %v1420, %v1694
        %v1809 = vadd.f32 %v1423, %v1697
        %v1810 = vadd.f32 %v1428, %v1702
        %v1811 = vadd.f32 %v1431, %v1705
        %v1812 = vadd.f32 %v1436, %v1710
        %v1813 = vadd.f32 %v1439, %v1713
        %v1814 = vadd.f32 %v1444, %v1718
        %v1815 = vadd.f32 %v1447, %v1721
        %v1816 = vadd.f32 %v1452, %v1726
        %v1817 = vadd.f32 %v1455, %v1729
        %v1818 = vadd.f32 %v1460, %v1734
        %v1819 = vadd.f32 %v1463, %v1737
        %v1820 = vadd.f32 %v1468, %v1742
        %v1821 = vadd.f32 %v1471, %v1745
        %v1822 = vadd.f32 %v1476, %v1750
        %v1823 = vadd.f32 %v1479, %v1753
        %v1824 = vadd.f32 %v1484, %v1758
        %v1825 = vadd.f32 %v1487, %v1761
        %v1826 = vadd.f32 %v1492, %v1766
        %v1827 = vadd.f32 %v1495, %v1769
        %v1828 = vadd.f32 %v1500, %v1774
        %v1829 = vadd.f32 %v1503, %v1777
        %v1830 = vadd.f32 %v1508, %v1782
        %v1831 = vadd.f32 %v1511, %v1785
        %v1832 = vadd.f32 %v1516, %v1790
        %v1833 = vadd.f32 %v1519, %v1793
        %v1834 = vadd.f32 %v1524, %v1798
        %v1835 = vadd.f32 %v1527, %v1801
        %v1836 = vld [vmem:[%s944] sm:$0xff]
        %v1837 = vld [vmem:[%s944 + $0x8] sm:$0xff]
        %v1838 = vld [vmem:[%s944 + $0x18] sm:$0xff]
        %v1839 = vld [vmem:[%s944 + $0x20] sm:$0xff]
        %v1840 = vld [vmem:[%s944 + $0x30] sm:$0xff]
        %v1841 = vld [vmem:[%s944 + $0x38] sm:$0xff]
        %v1842 = vld [vmem:[%s944 + $0x48] sm:$0xff]
        %v1843 = vld [vmem:[%s944 + $0x50] sm:$0xff]
        %v1844 = vld [vmem:[%s944 + $0x60] sm:$0xff]
        %v1845 = vld [vmem:[%s944 + $0x68] sm:$0xff]
        %v1846 = vld [vmem:[%s944 + $0x78] sm:$0xff]
        %v1847 = vld [vmem:[%s944 + $0x80] sm:$0xff]
        %v1848 = vld [vmem:[%s944 + $0x90] sm:$0xff]
        %v1849 = vld [vmem:[%s944 + $0x98] sm:$0xff]
        %v1850 = vld [vmem:[%s944 + $0xa8] sm:$0xff]
        %v1851 = vld [vmem:[%s944 + $0xb0] sm:$0xff]
        %v1852 = vld [vmem:[%s944 + $0xc0] sm:$0xff]
        %v1853 = vld [vmem:[%s944 + $0xc8] sm:$0xff]
        %v1854 = vld [vmem:[%s944 + $0xd8] sm:$0xff]
        %v1855 = vld [vmem:[%s944 + $0xe0] sm:$0xff]
        %v1856 = vld [vmem:[%s944 + $0xf0] sm:$0xff]
        %v1857 = vld [vmem:[%s944 + $0xf8] sm:$0xff]
        %v1858 = vld [vmem:[%s944 + $0x108] sm:$0xff]
        %v1859 = vld [vmem:[%s944 + $0x110] sm:$0xff]
        %v1860 = vld [vmem:[%s944 + $0x120] sm:$0xff]
        %v1861 = vld [vmem:[%s944 + $0x128] sm:$0xff]
        %v1862 = vld [vmem:[%s944 + $0x138] sm:$0xff]
        %v1863 = vld [vmem:[%s944 + $0x140] sm:$0xff]
        %v1864 = vld [vmem:[%s944 + $0x150] sm:$0xff]
        %v1865 = vld [vmem:[%s944 + $0x158] sm:$0xff]
        %v1866 = vld [vmem:[%s944 + $0x168] sm:$0xff]
        %v1867 = vld [vmem:[%s944 + $0x170] sm:$0xff]
        %v1868 = vpack.c.bf16 %v1837, %v1836
        %v1869 = vpack.c.bf16 %v1839, %v1838
        %v1870 = vpack.c.bf16 %v1841, %v1840
        %v1871 = vpack.c.bf16 %v1843, %v1842
        %v1872 = vpack.c.bf16 %v1845, %v1844
        %v1873 = vpack.c.bf16 %v1847, %v1846
        %v1874 = vpack.c.bf16 %v1849, %v1848
        %v1875 = vpack.c.bf16 %v1851, %v1850
        %v1876 = vpack.c.bf16 %v1853, %v1852
        %v1877 = vpack.c.bf16 %v1855, %v1854
        %v1878 = vpack.c.bf16 %v1857, %v1856
        %v1879 = vpack.c.bf16 %v1859, %v1858
        %v1880 = vpack.c.bf16 %v1861, %v1860
        %v1881 = vpack.c.bf16 %v1863, %v1862
        %v1882 = vpack.c.bf16 %v1865, %v1864
        %v1883 = vpack.c.bf16 %v1867, %v1866
        %s1884 = scalar_lea.vmem [#allocation8], 192
        %v1885 = vld [vmem:[%s1884] sm:$0xf]
        %v1886 = vld [vmem:[%s1884 + $0x4] sm:$0xf]
        %v1887 = vld [vmem:[%s1884 + $0x8] sm:$0xf]
        %v1888 = vld [vmem:[%s1884 + $0xc] sm:$0xf]
        %v1889 = vld [vmem:[%s1884 + $0x10] sm:$0xf]
        %v1890 = vld [vmem:[%s1884 + $0x14] sm:$0xf]
        %v1891 = vld [vmem:[%s1884 + $0x18] sm:$0xf]
        %v1892 = vld [vmem:[%s1884 + $0x1c] sm:$0xf]
        %v1893 = vld [vmem:[%s1884 + $0x20] sm:$0xf]
        %v1894 = vld [vmem:[%s1884 + $0x24] sm:$0xf]
        %v1895 = vld [vmem:[%s1884 + $0x28] sm:$0xf]
        %v1896 = vld [vmem:[%s1884 + $0x2c] sm:$0xf]
        %v1897 = vld [vmem:[%s1884 + $0x30] sm:$0xf]
        %v1898 = vld [vmem:[%s1884 + $0x34] sm:$0xf]
        %v1899 = vld [vmem:[%s1884 + $0x38] sm:$0xf]
        %v1900 = vld [vmem:[%s1884 + $0x3c] sm:$0xf]
        %v1917 = vunpack.c.l.b16 %v1885
        %v1918 = vunpack.c.l.b16 %v1886
        %v1919 = vunpack.c.l.b16 %v1887
        %v1920 = vunpack.c.l.b16 %v1888
        %v1921 = vunpack.c.l.b16 %v1889
        %v1922 = vunpack.c.l.b16 %v1890
        %v1923 = vunpack.c.l.b16 %v1891
        %v1924 = vunpack.c.l.b16 %v1892
        %v1925 = vunpack.c.l.b16 %v1893
        %v1926 = vunpack.c.l.b16 %v1894
        %v1927 = vunpack.c.l.b16 %v1895
        %v1928 = vunpack.c.l.b16 %v1896
        %v1929 = vunpack.c.l.b16 %v1897
        %v1930 = vunpack.c.l.b16 %v1898
        %v1931 = vunpack.c.l.b16 %v1899
        %v1932 = vunpack.c.l.b16 %v1900
        %v1933 = vpack.c.b16 %v1918, %v1917
        %v1934 = vpack.c.b16 %v1920, %v1919
        %v1935 = vpack.c.b16 %v1922, %v1921
        %v1936 = vpack.c.b16 %v1924, %v1923
        %v1937 = vpack.c.b16 %v1926, %v1925
        %v1938 = vpack.c.b16 %v1928, %v1927
        %v1939 = vpack.c.b16 %v1930, %v1929
        %v1940 = vpack.c.b16 %v1932, %v1931
        %1949 = vmatprep.subr.bf16.mxu0 0
        %1950 = vmatpush1.bf16.msra.mxu0 %v1933
        %1951 = vmatprep.subr.bf16.mxu0 0
        %1952 = vmatpush1.bf16.msra.mxu0 %v1934
        %1953 = vmatprep.subr.bf16.mxu0 0
        %1954 = vmatpush1.bf16.msra.mxu0 %v1935
        %1955 = vmatprep.subr.bf16.mxu0 0
        %1956 = vmatpush1.bf16.msra.mxu0 %v1936
        %1957 = vmatprep.subr.bf16.mxu0 0
        %1958 = vmatpush1.bf16.msra.mxu0 %v1937
        %1959 = vmatprep.subr.bf16.mxu0 0
        %1960 = vmatpush1.bf16.msra.mxu0 %v1938
        %1961 = vmatprep.subr.bf16.mxu0 0
        %1962 = vmatpush1.bf16.msra.mxu0 %v1939
        %1963 = vmatprep.subr.bf16.mxu0 0
        %1964 = vmatpush1.bf16.msra.mxu0 %v1940
        %1965 = vmatprep.subr.bf16.mxu0 0
        %1966 = vmatpush1.bf16.msra.mxu0 0
        %1967 = vmatprep.subr.bf16.mxu0 0
        %1968 = vmatpush1.bf16.msra.mxu0 0
        %1969 = vmatprep.subr.bf16.mxu0 0
        %1970 = vmatpush1.bf16.msra.mxu0 0
        %1971 = vmatprep.subr.bf16.mxu0 0
        %1972 = vmatpush1.bf16.msra.mxu0 0
        %1973 = vmatprep.subr.bf16.mxu0 0
        %1974 = vmatpush1.bf16.msra.mxu0 0
        %1975 = vmatprep.subr.bf16.mxu0 0
        %1976 = vmatpush1.bf16.msra.mxu0 0
        %1977 = vmatprep.subr.bf16.mxu0 0
        %1978 = vmatpush1.bf16.msra.mxu0 0
        %1979 = vmatprep.subr.bf16.mxu0 0
        %1980 = vmatpush1.bf16.msra.mxu0 0
        %1981 = vmatprep.mubr.bf16.mxu0 0
        %1982 = vmatmul.mubr.bf16.gmra.mrb[0].mxu0 %v1868
        %v1983 = vpop.f32.mrb[0].mxu0
        %v1984 = vadd.f32 0.0, %v1983
        %v1985 = vpop.f32.mrb[0].mxu0
        %v1986 = vpop.f32.mrb[0].mxu0
        %v1987 = vadd.f32 0.0, %v1986
        %v1988 = vpop.f32.mrb[0].mxu0
        %1989 = vmatprep.mubr.bf16.mxu0 0
        %1990 = vmatmul.mubr.bf16.gmra.mrb[0].mxu0 %v1869
        %v1991 = vpop.f32.mrb[0].mxu0
        %v1992 = vadd.f32 0.0, %v1991
        %v1993 = vpop.f32.mrb[0].mxu0
        %v1994 = vpop.f32.mrb[0].mxu0
        %v1995 = vadd.f32 0.0, %v1994
        %v1996 = vpop.f32.mrb[0].mxu0
        %1997 = vmatprep.mubr.bf16.mxu0 0
        %1998 = vmatmul.mubr.bf16.gmra.mrb[0].mxu0 %v1870
        %v1999 = vpop.f32.mrb[0].mxu0
        %v2000 = vadd.f32 0.0, %v1999
        %v2001 = vpop.f32.mrb[0].mxu0
        %v2002 = vpop.f32.mrb[0].mxu0
        %v2003 = vadd.f32 0.0, %v2002
        %v2004 = vpop.f32.mrb[0].mxu0
        %2005 = vmatprep.mubr.bf16.mxu0 0
        %2006 = vmatmul.mubr.bf16.gmra.mrb[0].mxu0 %v1871
        %v2007 = vpop.f32.mrb[0].mxu0
        %v2008 = vadd.f32 0.0, %v2007
        %v2009 = vpop.f32.mrb[0].mxu0
        %v2010 = vpop.f32.mrb[0].mxu0
        %v2011 = vadd.f32 0.0, %v2010
        %v2012 = vpop.f32.mrb[0].mxu0
        %2013 = vmatprep.mubr.bf16.mxu0 0
        %2014 = vmatmul.mubr.bf16.gmra.mrb[0].mxu0 %v1872
        %v2015 = vpop.f32.mrb[0].mxu0
        %v2016 = vadd.f32 0.0, %v2015
        %v2017 = vpop.f32.mrb[0].mxu0
        %v2018 = vpop.f32.mrb[0].mxu0
        %v2019 = vadd.f32 0.0, %v2018
        %v2020 = vpop.f32.mrb[0].mxu0
        %2021 = vmatprep.mubr.bf16.mxu0 0
        %2022 = vmatmul.mubr.bf16.gmra.mrb[0].mxu0 %v1873
        %v2023 = vpop.f32.mrb[0].mxu0
        %v2024 = vadd.f32 0.0, %v2023
        %v2025 = vpop.f32.mrb[0].mxu0
        %v2026 = vpop.f32.mrb[0].mxu0
        %v2027 = vadd.f32 0.0, %v2026
        %v2028 = vpop.f32.mrb[0].mxu0
        %2029 = vmatprep.mubr.bf16.mxu0 0
        %2030 = vmatmul.mubr.bf16.gmra.mrb[0].mxu0 %v1874
        %v2031 = vpop.f32.mrb[0].mxu0
        %v2032 = vadd.f32 0.0, %v2031
        %v2033 = vpop.f32.mrb[0].mxu0
        %v2034 = vpop.f32.mrb[0].mxu0
        %v2035 = vadd.f32 0.0, %v2034
        %v2036 = vpop.f32.mrb[0].mxu0
        %2037 = vmatprep.mubr.bf16.mxu0 0
        %2038 = vmatmul.mubr.bf16.gmra.mrb[0].mxu0 %v1875
        %v2039 = vpop.f32.mrb[0].mxu0
        %v2040 = vadd.f32 0.0, %v2039
        %v2041 = vpop.f32.mrb[0].mxu0
        %v2042 = vpop.f32.mrb[0].mxu0
        %v2043 = vadd.f32 0.0, %v2042
        %v2044 = vpop.f32.mrb[0].mxu0
        %2045 = vmatprep.mubr.bf16.mxu0 0
        %2046 = vmatmul.mubr.bf16.gmra.mrb[0].mxu0 %v1876
        %v2047 = vpop.f32.mrb[0].mxu0
        %v2048 = vadd.f32 0.0, %v2047
        %v2049 = vpop.f32.mrb[0].mxu0
        %v2050 = vpop.f32.mrb[0].mxu0
        %v2051 = vadd.f32 0.0, %v2050
        %v2052 = vpop.f32.mrb[0].mxu0
        %2053 = vmatprep.mubr.bf16.mxu0 0
        %2054 = vmatmul.mubr.bf16.gmra.mrb[0].mxu0 %v1877
        %v2055 = vpop.f32.mrb[0].mxu0
        %v2056 = vadd.f32 0.0, %v2055
        %v2057 = vpop.f32.mrb[0].mxu0
        %v2058 = vpop.f32.mrb[0].mxu0
        %v2059 = vadd.f32 0.0, %v2058
        %v2060 = vpop.f32.mrb[0].mxu0
        %2061 = vmatprep.mubr.bf16.mxu0 0
        %2062 = vmatmul.mubr.bf16.gmra.mrb[0].mxu0 %v1878
        %v2063 = vpop.f32.mrb[0].mxu0
        %v2064 = vadd.f32 0.0, %v2063
        %v2065 = vpop.f32.mrb[0].mxu0
        %v2066 = vpop.f32.mrb[0].mxu0
        %v2067 = vadd.f32 0.0, %v2066
        %v2068 = vpop.f32.mrb[0].mxu0
        %2069 = vmatprep.mubr.bf16.mxu0 0
        %2070 = vmatmul.mubr.bf16.gmra.mrb[0].mxu0 %v1879
        %v2071 = vpop.f32.mrb[0].mxu0
        %v2072 = vadd.f32 0.0, %v2071
        %v2073 = vpop.f32.mrb[0].mxu0
        %v2074 = vpop.f32.mrb[0].mxu0
        %v2075 = vadd.f32 0.0, %v2074
        %v2076 = vpop.f32.mrb[0].mxu0
        %2077 = vmatprep.mubr.bf16.mxu0 0
        %2078 = vmatmul.mubr.bf16.gmra.mrb[0].mxu0 %v1880
        %v2079 = vpop.f32.mrb[0].mxu0
        %v2080 = vadd.f32 0.0, %v2079
        %v2081 = vpop.f32.mrb[0].mxu0
        %v2082 = vpop.f32.mrb[0].mxu0
        %v2083 = vadd.f32 0.0, %v2082
        %v2084 = vpop.f32.mrb[0].mxu0
        %2085 = vmatprep.mubr.bf16.mxu0 0
        %2086 = vmatmul.mubr.bf16.gmra.mrb[0].mxu0 %v1881
        %v2087 = vpop.f32.mrb[0].mxu0
        %v2088 = vadd.f32 0.0, %v2087
        %v2089 = vpop.f32.mrb[0].mxu0
        %v2090 = vpop.f32.mrb[0].mxu0
        %v2091 = vadd.f32 0.0, %v2090
        %v2092 = vpop.f32.mrb[0].mxu0
        %2093 = vmatprep.mubr.bf16.mxu0 0
        %2094 = vmatmul.mubr.bf16.gmra.mrb[0].mxu0 %v1882
        %v2095 = vpop.f32.mrb[0].mxu0
        %v2096 = vadd.f32 0.0, %v2095
        %v2097 = vpop.f32.mrb[0].mxu0
        %v2098 = vpop.f32.mrb[0].mxu0
        %v2099 = vadd.f32 0.0, %v2098
        %v2100 = vpop.f32.mrb[0].mxu0
        %2101 = vmatprep.mubr.bf16.mxu0 0
        %2102 = vmatmul.mubr.bf16.gmra.mrb[0].mxu0 %v1883
        %v2103 = vpop.f32.mrb[0].mxu0
        %v2104 = vadd.f32 0.0, %v2103
        %v2105 = vpop.f32.mrb[0].mxu0
        %v2106 = vpop.f32.mrb[0].mxu0
        %v2107 = vadd.f32 0.0, %v2106
        %v2108 = vpop.f32.mrb[0].mxu0
        %2109 = vdwg.mxu0
        %v2110 = vadd.f32 %v1804, %v1984
        %v2111 = vadd.f32 %v1805, %v1987
        %v2112 = vadd.f32 %v1806, %v1992
        %v2113 = vadd.f32 %v1807, %v1995
        %v2114 = vadd.f32 %v1808, %v2000
        %v2115 = vadd.f32 %v1809, %v2003
        %v2116 = vadd.f32 %v1810, %v2008
        %v2117 = vadd.f32 %v1811, %v2011
        %v2118 = vadd.f32 %v1812, %v2016
        %v2119 = vadd.f32 %v1813, %v2019
        %v2120 = vadd.f32 %v1814, %v2024
        %v2121 = vadd.f32 %v1815, %v2027
        %v2122 = vadd.f32 %v1816, %v2032
        %v2123 = vadd.f32 %v1817, %v2035
        %v2124 = vadd.f32 %v1818, %v2040
        %v2125 = vadd.f32 %v1819, %v2043
        %v2126 = vadd.f32 %v1820, %v2048
        %v2127 = vadd.f32 %v1821, %v2051
        %v2128 = vadd.f32 %v1822, %v2056
        %v2129 = vadd.f32 %v1823, %v2059
        %v2130 = vadd.f32 %v1824, %v2064
        %v2131 = vadd.f32 %v1825, %v2067
        %v2132 = vadd.f32 %v1826, %v2072
        %v2133 = vadd.f32 %v1827, %v2075
        %v2134 = vadd.f32 %v1828, %v2080
        %v2135 = vadd.f32 %v1829, %v2083
        %v2136 = vadd.f32 %v1830, %v2088
        %v2137 = vadd.f32 %v1831, %v2091
        %v2138 = vadd.f32 %v1832, %v2096
        %v2139 = vadd.f32 %v1833, %v2099
        %v2140 = vadd.f32 %v1834, %v2104
        %v2141 = vadd.f32 %v1835, %v2107
        %v2142 = vld [vmem:[%s944 + $0x1] sm:$0xff]
        %v2143 = vld [vmem:[%s944 + $0x9] sm:$0xff]
        %v2144 = vld [vmem:[%s944 + $0x19] sm:$0xff]
        %v2145 = vld [vmem:[%s944 + $0x21] sm:$0xff]
        %v2146 = vld [vmem:[%s944 + $0x31] sm:$0xff]
        %v2147 = vld [vmem:[%s944 + $0x39] sm:$0xff]
        %v2148 = vld [vmem:[%s944 + $0x49] sm:$0xff]
        %v2149 = vld [vmem:[%s944 + $0x51] sm:$0xff]
        %v2150 = vld [vmem:[%s944 + $0x61] sm:$0xff]
        %v2151 = vld [vmem:[%s944 + $0x69] sm:$0xff]
        %v2152 = vld [vmem:[%s944 + $0x79] sm:$0xff]
        %v2153 = vld [vmem:[%s944 + $0x81] sm:$0xff]
        %v2154 = vld [vmem:[%s944 + $0x91] sm:$0xff]
        %v2155 = vld [vmem:[%s944 + $0x99] sm:$0xff]
        %v2156 = vld [vmem:[%s944 + $0xa9] sm:$0xff]
        %v2157 = vld [vmem:[%s944 + $0xb1] sm:$0xff]
        %v2158 = vld [vmem:[%s944 + $0xc1] sm:$0xff]
        %v2159 = vld [vmem:[%s944 + $0xc9] sm:$0xff]
        %v2160 = vld [vmem:[%s944 + $0xd9] sm:$0xff]
        %v2161 = vld [vmem:[%s944 + $0xe1] sm:$0xff]
        %v2162 = vld [vmem:[%s944 + $0xf1] sm:$0xff]
        %v2163 = vld [vmem:[%s944 + $0xf9] sm:$0xff]
        %v2164 = vld [vmem:[%s944 + $0x109] sm:$0xff]
        %v2165 = vld [vmem:[%s944 + $0x111] sm:$0xff]
        %v2166 = vld [vmem:[%s944 + $0x121] sm:$0xff]
        %v2167 = vld [vmem:[%s944 + $0x129] sm:$0xff]
        %v2168 = vld [vmem:[%s944 + $0x139] sm:$0xff]
        %v2169 = vld [vmem:[%s944 + $0x141] sm:$0xff]
        %v2170 = vld [vmem:[%s944 + $0x151] sm:$0xff]
        %v2171 = vld [vmem:[%s944 + $0x159] sm:$0xff]
        %v2172 = vld [vmem:[%s944 + $0x169] sm:$0xff]
        %v2173 = vld [vmem:[%s944 + $0x171] sm:$0xff]
        %v2174 = vpack.c.bf16 %v2143, %v2142
        %v2175 = vpack.c.bf16 %v2145, %v2144
        %v2176 = vpack.c.bf16 %v2147, %v2146
        %v2177 = vpack.c.bf16 %v2149, %v2148
        %v2178 = vpack.c.bf16 %v2151, %v2150
        %v2179 = vpack.c.bf16 %v2153, %v2152
        %v2180 = vpack.c.bf16 %v2155, %v2154
        %v2181 = vpack.c.bf16 %v2157, %v2156
        %v2182 = vpack.c.bf16 %v2159, %v2158
        %v2183 = vpack.c.bf16 %v2161, %v2160
        %v2184 = vpack.c.bf16 %v2163, %v2162
        %v2185 = vpack.c.bf16 %v2165, %v2164
        %v2186 = vpack.c.bf16 %v2167, %v2166
        %v2187 = vpack.c.bf16 %v2169, %v2168
        %v2188 = vpack.c.bf16 %v2171, %v2170
        %v2189 = vpack.c.bf16 %v2173, %v2172
        %s2190 = scalar_lea.vmem [#allocation8], 256
        %v2191 = vld [vmem:[%s2190] sm:$0xf]
        %v2192 = vld [vmem:[%s2190 + $0x4] sm:$0xf]
        %v2193 = vld [vmem:[%s2190 + $0x8] sm:$0xf]
        %v2194 = vld [vmem:[%s2190 + $0xc] sm:$0xf]
        %v2195 = vld [vmem:[%s2190 + $0x10] sm:$0xf]
        %v2196 = vld [vmem:[%s2190 + $0x14] sm:$0xf]
        %v2197 = vld [vmem:[%s2190 + $0x18] sm:$0xf]
        %v2198 = vld [vmem:[%s2190 + $0x1c] sm:$0xf]
        %v2199 = vld [vmem:[%s2190 + $0x20] sm:$0xf]
        %v2200 = vld [vmem:[%s2190 + $0x24] sm:$0xf]
        %v2201 = vld [vmem:[%s2190 + $0x28] sm:$0xf]
        %v2202 = vld [vmem:[%s2190 + $0x2c] sm:$0xf]
        %v2203 = vld [vmem:[%s2190 + $0x30] sm:$0xf]
        %v2204 = vld [vmem:[%s2190 + $0x34] sm:$0xf]
        %v2205 = vld [vmem:[%s2190 + $0x38] sm:$0xf]
        %v2206 = vld [vmem:[%s2190 + $0x3c] sm:$0xf]
        %v2223 = vunpack.c.l.b16 %v2191
        %v2224 = vunpack.c.l.b16 %v2192
        %v2225 = vunpack.c.l.b16 %v2193
        %v2226 = vunpack.c.l.b16 %v2194
        %v2227 = vunpack.c.l.b16 %v2195
        %v2228 = vunpack.c.l.b16 %v2196
        %v2229 = vunpack.c.l.b16 %v2197
        %v2230 = vunpack.c.l.b16 %v2198
        %v2231 = vunpack.c.l.b16 %v2199
        %v2232 = vunpack.c.l.b16 %v2200
        %v2233 = vunpack.c.l.b16 %v2201
        %v2234 = vunpack.c.l.b16 %v2202
        %v2235 = vunpack.c.l.b16 %v2203
        %v2236 = vunpack.c.l.b16 %v2204
        %v2237 = vunpack.c.l.b16 %v2205
        %v2238 = vunpack.c.l.b16 %v2206
        %v2239 = vpack.c.b16 %v2224, %v2223
        %v2240 = vpack.c.b16 %v2226, %v2225
        %v2241 = vpack.c.b16 %v2228, %v2227
        %v2242 = vpack.c.b16 %v2230, %v2229
        %v2243 = vpack.c.b16 %v2232, %v2231
        %v2244 = vpack.c.b16 %v2234, %v2233
        %v2245 = vpack.c.b16 %v2236, %v2235
        %v2246 = vpack.c.b16 %v2238, %v2237
        %2255 = vmatprep.subr.bf16.mxu0 0
        %2256 = vmatpush1.bf16.msra.mxu0 %v2239
        %2257 = vmatprep.subr.bf16.mxu0 0
        %2258 = vmatpush1.bf16.msra.mxu0 %v2240
        %2259 = vmatprep.subr.bf16.mxu0 0
        %2260 = vmatpush1.bf16.msra.mxu0 %v2241
        %2261 = vmatprep.subr.bf16.mxu0 0
        %2262 = vmatpush1.bf16.msra.mxu0 %v2242
        %2263 = vmatprep.subr.bf16.mxu0 0
        %2264 = vmatpush1.bf16.msra.mxu0 %v2243
        %2265 = vmatprep.subr.bf16.mxu0 0
        %2266 = vmatpush1.bf16.msra.mxu0 %v2244
        %2267 = vmatprep.subr.bf16.mxu0 0
        %2268 = vmatpush1.bf16.msra.mxu0 %v2245
        %2269 = vmatprep.subr.bf16.mxu0 0
        %2270 = vmatpush1.bf16.msra.mxu0 %v2246
        %2271 = vmatprep.subr.bf16.mxu0 0
        %2272 = vmatpush1.bf16.msra.mxu0 0
        %2273 = vmatprep.subr.bf16.mxu0 0
        %2274 = vmatpush1.bf16.msra.mxu0 0
        %2275 = vmatprep.subr.bf16.mxu0 0
        %2276 = vmatpush1.bf16.msra.mxu0 0
        %2277 = vmatprep.subr.bf16.mxu0 0
        %2278 = vmatpush1.bf16.msra.mxu0 0
        %2279 = vmatprep.subr.bf16.mxu0 0
        %2280 = vmatpush1.bf16.msra.mxu0 0
        %2281 = vmatprep.subr.bf16.mxu0 0
        %2282 = vmatpush1.bf16.msra.mxu0 0
        %2283 = vmatprep.subr.bf16.mxu0 0
        %2284 = vmatpush1.bf16.msra.mxu0 0
        %2285 = vmatprep.subr.bf16.mxu0 0
        %2286 = vmatpush1.bf16.msra.mxu0 0
        %2287 = vmatprep.mubr.bf16.mxu0 0
        %2288 = vmatmul.mubr.bf16.gmra.mrb[0].mxu0 %v2174
        %v2289 = vpop.f32.mrb[0].mxu0
        %v2290 = vadd.f32 0.0, %v2289
        %v2291 = vpop.f32.mrb[0].mxu0
        %v2292 = vpop.f32.mrb[0].mxu0
        %v2293 = vadd.f32 0.0, %v2292
        %v2294 = vpop.f32.mrb[0].mxu0
        %2295 = vmatprep.mubr.bf16.mxu0 0
        %2296 = vmatmul.mubr.bf16.gmra.mrb[0].mxu0 %v2175
        %v2297 = vpop.f32.mrb[0].mxu0
        %v2298 = vadd.f32 0.0, %v2297
        %v2299 = vpop.f32.mrb[0].mxu0
        %v2300 = vpop.f32.mrb[0].mxu0
        %v2301 = vadd.f32 0.0, %v2300
        %v2302 = vpop.f32.mrb[0].mxu0
        %2303 = vmatprep.mubr.bf16.mxu0 0
        %2304 = vmatmul.mubr.bf16.gmra.mrb[0].mxu0 %v2176
        %v2305 = vpop.f32.mrb[0].mxu0
        %v2306 = vadd.f32 0.0, %v2305
        %v2307 = vpop.f32.mrb[0].mxu0
        %v2308 = vpop.f32.mrb[0].mxu0
        %v2309 = vadd.f32 0.0, %v2308
        %v2310 = vpop.f32.mrb[0].mxu0
        %2311 = vmatprep.mubr.bf16.mxu0 0
        %2312 = vmatmul.mubr.bf16.gmra.mrb[0].mxu0 %v2177
        %v2313 = vpop.f32.mrb[0].mxu0
        %v2314 = vadd.f32 0.0, %v2313
        %v2315 = vpop.f32.mrb[0].mxu0
        %v2316 = vpop.f32.mrb[0].mxu0
        %v2317 = vadd.f32 0.0, %v2316
        %v2318 = vpop.f32.mrb[0].mxu0
        %2319 = vmatprep.mubr.bf16.mxu0 0
        %2320 = vmatmul.mubr.bf16.gmra.mrb[0].mxu0 %v2178
        %v2321 = vpop.f32.mrb[0].mxu0
        %v2322 = vadd.f32 0.0, %v2321
        %v2323 = vpop.f32.mrb[0].mxu0
        %v2324 = vpop.f32.mrb[0].mxu0
        %v2325 = vadd.f32 0.0, %v2324
        %v2326 = vpop.f32.mrb[0].mxu0
        %2327 = vmatprep.mubr.bf16.mxu0 0
        %2328 = vmatmul.mubr.bf16.gmra.mrb[0].mxu0 %v2179
        %v2329 = vpop.f32.mrb[0].mxu0
        %v2330 = vadd.f32 0.0, %v2329
        %v2331 = vpop.f32.mrb[0].mxu0
        %v2332 = vpop.f32.mrb[0].mxu0
        %v2333 = vadd.f32 0.0, %v2332
        %v2334 = vpop.f32.mrb[0].mxu0
        %2335 = vmatprep.mubr.bf16.mxu0 0
        %2336 = vmatmul.mubr.bf16.gmra.mrb[0].mxu0 %v2180
        %v2337 = vpop.f32.mrb[0].mxu0
        %v2338 = vadd.f32 0.0, %v2337
        %v2339 = vpop.f32.mrb[0].mxu0
        %v2340 = vpop.f32.mrb[0].mxu0
        %v2341 = vadd.f32 0.0, %v2340
        %v2342 = vpop.f32.mrb[0].mxu0
        %2343 = vmatprep.mubr.bf16.mxu0 0
        %2344 = vmatmul.mubr.bf16.gmra.mrb[0].mxu0 %v2181
        %v2345 = vpop.f32.mrb[0].mxu0
        %v2346 = vadd.f32 0.0, %v2345
        %v2347 = vpop.f32.mrb[0].mxu0
        %v2348 = vpop.f32.mrb[0].mxu0
        %v2349 = vadd.f32 0.0, %v2348
        %v2350 = vpop.f32.mrb[0].mxu0
        %2351 = vmatprep.mubr.bf16.mxu0 0
        %2352 = vmatmul.mubr.bf16.gmra.mrb[0].mxu0 %v2182
        %v2353 = vpop.f32.mrb[0].mxu0
        %v2354 = vadd.f32 0.0, %v2353
        %v2355 = vpop.f32.mrb[0].mxu0
        %v2356 = vpop.f32.mrb[0].mxu0
        %v2357 = vadd.f32 0.0, %v2356
        %v2358 = vpop.f32.mrb[0].mxu0
        %2359 = vmatprep.mubr.bf16.mxu0 0
        %2360 = vmatmul.mubr.bf16.gmra.mrb[0].mxu0 %v2183
        %v2361 = vpop.f32.mrb[0].mxu0
        %v2362 = vadd.f32 0.0, %v2361
        %v2363 = vpop.f32.mrb[0].mxu0
        %v2364 = vpop.f32.mrb[0].mxu0
        %v2365 = vadd.f32 0.0, %v2364
        %v2366 = vpop.f32.mrb[0].mxu0
        %2367 = vmatprep.mubr.bf16.mxu0 0
        %2368 = vmatmul.mubr.bf16.gmra.mrb[0].mxu0 %v2184
        %v2369 = vpop.f32.mrb[0].mxu0
        %v2370 = vadd.f32 0.0, %v2369
        %v2371 = vpop.f32.mrb[0].mxu0
        %v2372 = vpop.f32.mrb[0].mxu0
        %v2373 = vadd.f32 0.0, %v2372
        %v2374 = vpop.f32.mrb[0].mxu0
        %2375 = vmatprep.mubr.bf16.mxu0 0
        %2376 = vmatmul.mubr.bf16.gmra.mrb[0].mxu0 %v2185
        %v2377 = vpop.f32.mrb[0].mxu0
        %v2378 = vadd.f32 0.0, %v2377
        %v2379 = vpop.f32.mrb[0].mxu0
        %v2380 = vpop.f32.mrb[0].mxu0
        %v2381 = vadd.f32 0.0, %v2380
        %v2382 = vpop.f32.mrb[0].mxu0
        %2383 = vmatprep.mubr.bf16.mxu0 0
        %2384 = vmatmul.mubr.bf16.gmra.mrb[0].mxu0 %v2186
        %v2385 = vpop.f32.mrb[0].mxu0
        %v2386 = vadd.f32 0.0, %v2385
        %v2387 = vpop.f32.mrb[0].mxu0
        %v2388 = vpop.f32.mrb[0].mxu0
        %v2389 = vadd.f32 0.0, %v2388
        %v2390 = vpop.f32.mrb[0].mxu0
        %2391 = vmatprep.mubr.bf16.mxu0 0
        %2392 = vmatmul.mubr.bf16.gmra.mrb[0].mxu0 %v2187
        %v2393 = vpop.f32.mrb[0].mxu0
        %v2394 = vadd.f32 0.0, %v2393
        %v2395 = vpop.f32.mrb[0].mxu0
        %v2396 = vpop.f32.mrb[0].mxu0
        %v2397 = vadd.f32 0.0, %v2396
        %v2398 = vpop.f32.mrb[0].mxu0
        %2399 = vmatprep.mubr.bf16.mxu0 0
        %2400 = vmatmul.mubr.bf16.gmra.mrb[0].mxu0 %v2188
        %v2401 = vpop.f32.mrb[0].mxu0
        %v2402 = vadd.f32 0.0, %v2401
        %v2403 = vpop.f32.mrb[0].mxu0
        %v2404 = vpop.f32.mrb[0].mxu0
        %v2405 = vadd.f32 0.0, %v2404
        %v2406 = vpop.f32.mrb[0].mxu0
        %2407 = vmatprep.mubr.bf16.mxu0 0
        %2408 = vmatmul.mubr.bf16.gmra.mrb[0].mxu0 %v2189
        %v2409 = vpop.f32.mrb[0].mxu0
        %v2410 = vadd.f32 0.0, %v2409
        %v2411 = vpop.f32.mrb[0].mxu0
        %v2412 = vpop.f32.mrb[0].mxu0
        %v2413 = vadd.f32 0.0, %v2412
        %v2414 = vpop.f32.mrb[0].mxu0
        %2415 = vdwg.mxu0
        %v2416 = vadd.f32 %v2110, %v2290
        %v2417 = vadd.f32 %v2111, %v2293
        %v2418 = vadd.f32 %v2112, %v2298
        %v2419 = vadd.f32 %v2113, %v2301
        %v2420 = vadd.f32 %v2114, %v2306
        %v2421 = vadd.f32 %v2115, %v2309
        %v2422 = vadd.f32 %v2116, %v2314
        %v2423 = vadd.f32 %v2117, %v2317
        %v2424 = vadd.f32 %v2118, %v2322
        %v2425 = vadd.f32 %v2119, %v2325
        %v2426 = vadd.f32 %v2120, %v2330
        %v2427 = vadd.f32 %v2121, %v2333
        %v2428 = vadd.f32 %v2122, %v2338
        %v2429 = vadd.f32 %v2123, %v2341
        %v2430 = vadd.f32 %v2124, %v2346
        %v2431 = vadd.f32 %v2125, %v2349
        %v2432 = vadd.f32 %v2126, %v2354
        %v2433 = vadd.f32 %v2127, %v2357
        %v2434 = vadd.f32 %v2128, %v2362
        %v2435 = vadd.f32 %v2129, %v2365
        %v2436 = vadd.f32 %v2130, %v2370
        %v2437 = vadd.f32 %v2131, %v2373
        %v2438 = vadd.f32 %v2132, %v2378
        %v2439 = vadd.f32 %v2133, %v2381
        %v2440 = vadd.f32 %v2134, %v2386
        %v2441 = vadd.f32 %v2135, %v2389
        %v2442 = vadd.f32 %v2136, %v2394
        %v2443 = vadd.f32 %v2137, %v2397
        %v2444 = vadd.f32 %v2138, %v2402
        %v2445 = vadd.f32 %v2139, %v2405
        %v2446 = vadd.f32 %v2140, %v2410
        %v2447 = vadd.f32 %v2141, %v2413
        %v2448 = vld [vmem:[%s944 + $0x2] sm:$0xff]
        %v2449 = vld [vmem:[%s944 + $0xa] sm:$0xff]
        %v2450 = vld [vmem:[%s944 + $0x1a] sm:$0xff]
        %v2451 = vld [vmem:[%s944 + $0x22] sm:$0xff]
        %v2452 = vld [vmem:[%s944 + $0x32] sm:$0xff]
        %v2453 = vld [vmem:[%s944 + $0x3a] sm:$0xff]
        %v2454 = vld [vmem:[%s944 + $0x4a] sm:$0xff]
        %v2455 = vld [vmem:[%s944 + $0x52] sm:$0xff]
        %v2456 = vld [vmem:[%s944 + $0x62] sm:$0xff]
        %v2457 = vld [vmem:[%s944 + $0x6a] sm:$0xff]
        %v2458 = vld [vmem:[%s944 + $0x7a] sm:$0xff]
        %v2459 = vld [vmem:[%s944 + $0x82] sm:$0xff]
        %v2460 = vld [vmem:[%s944 + $0x92] sm:$0xff]
        %v2461 = vld [vmem:[%s944 + $0x9a] sm:$0xff]
        %v2462 = vld [vmem:[%s944 + $0xaa] sm:$0xff]
        %v2463 = vld [vmem:[%s944 + $0xb2] sm:$0xff]
        %v2464 = vld [vmem:[%s944 + $0xc2] sm:$0xff]
        %v2465 = vld [vmem:[%s944 + $0xca] sm:$0xff]
        %v2466 = vld [vmem:[%s944 + $0xda] sm:$0xff]
        %v2467 = vld [vmem:[%s944 + $0xe2] sm:$0xff]
        %v2468 = vld [vmem:[%s944 + $0xf2] sm:$0xff]
        %v2469 = vld [vmem:[%s944 + $0xfa] sm:$0xff]
        %v2470 = vld [vmem:[%s944 + $0x10a] sm:$0xff]
        %v2471 = vld [vmem:[%s944 + $0x112] sm:$0xff]
        %v2472 = vld [vmem:[%s944 + $0x122] sm:$0xff]
        %v2473 = vld [vmem:[%s944 + $0x12a] sm:$0xff]
        %v2474 = vld [vmem:[%s944 + $0x13a] sm:$0xff]
        %v2475 = vld [vmem:[%s944 + $0x142] sm:$0xff]
        %v2476 = vld [vmem:[%s944 + $0x152] sm:$0xff]
        %v2477 = vld [vmem:[%s944 + $0x15a] sm:$0xff]
        %v2478 = vld [vmem:[%s944 + $0x16a] sm:$0xff]
        %v2479 = vld [vmem:[%s944 + $0x172] sm:$0xff]
        %v2480 = vpack.c.bf16 %v2449, %v2448
        %v2481 = vpack.c.bf16 %v2451, %v2450
        %v2482 = vpack.c.bf16 %v2453, %v2452
        %v2483 = vpack.c.bf16 %v2455, %v2454
        %v2484 = vpack.c.bf16 %v2457, %v2456
        %v2485 = vpack.c.bf16 %v2459, %v2458
        %v2486 = vpack.c.bf16 %v2461, %v2460
        %v2487 = vpack.c.bf16 %v2463, %v2462
        %v2488 = vpack.c.bf16 %v2465, %v2464
        %v2489 = vpack.c.bf16 %v2467, %v2466
        %v2490 = vpack.c.bf16 %v2469, %v2468
        %v2491 = vpack.c.bf16 %v2471, %v2470
        %v2492 = vpack.c.bf16 %v2473, %v2472
        %v2493 = vpack.c.bf16 %v2475, %v2474
        %v2494 = vpack.c.bf16 %v2477, %v2476
        %v2495 = vpack.c.bf16 %v2479, %v2478
        %s2496 = scalar_lea.vmem [#allocation8], 320
        %v2497 = vld [vmem:[%s2496] sm:$0xf]
        %v2498 = vld [vmem:[%s2496 + $0x4] sm:$0xf]
        %v2499 = vld [vmem:[%s2496 + $0x8] sm:$0xf]
        %v2500 = vld [vmem:[%s2496 + $0xc] sm:$0xf]
        %v2501 = vld [vmem:[%s2496 + $0x10] sm:$0xf]
        %v2502 = vld [vmem:[%s2496 + $0x14] sm:$0xf]
        %v2503 = vld [vmem:[%s2496 + $0x18] sm:$0xf]
        %v2504 = vld [vmem:[%s2496 + $0x1c] sm:$0xf]
        %v2505 = vld [vmem:[%s2496 + $0x20] sm:$0xf]
        %v2506 = vld [vmem:[%s2496 + $0x24] sm:$0xf]
        %v2507 = vld [vmem:[%s2496 + $0x28] sm:$0xf]
        %v2508 = vld [vmem:[%s2496 + $0x2c] sm:$0xf]
        %v2509 = vld [vmem:[%s2496 + $0x30] sm:$0xf]
        %v2510 = vld [vmem:[%s2496 + $0x34] sm:$0xf]
        %v2511 = vld [vmem:[%s2496 + $0x38] sm:$0xf]
        %v2512 = vld [vmem:[%s2496 + $0x3c] sm:$0xf]
        %v2529 = vunpack.c.l.b16 %v2497
        %v2530 = vunpack.c.l.b16 %v2498
        %v2531 = vunpack.c.l.b16 %v2499
        %v2532 = vunpack.c.l.b16 %v2500
        %v2533 = vunpack.c.l.b16 %v2501
        %v2534 = vunpack.c.l.b16 %v2502
        %v2535 = vunpack.c.l.b16 %v2503
        %v2536 = vunpack.c.l.b16 %v2504
        %v2537 = vunpack.c.l.b16 %v2505
        %v2538 = vunpack.c.l.b16 %v2506
        %v2539 = vunpack.c.l.b16 %v2507
        %v2540 = vunpack.c.l.b16 %v2508
        %v2541 = vunpack.c.l.b16 %v2509
        %v2542 = vunpack.c.l.b16 %v2510
        %v2543 = vunpack.c.l.b16 %v2511
        %v2544 = vunpack.c.l.b16 %v2512
        %v2545 = vpack.c.b16 %v2530, %v2529
        %v2546 = vpack.c.b16 %v2532, %v2531
        %v2547 = vpack.c.b16 %v2534, %v2533
        %v2548 = vpack.c.b16 %v2536, %v2535
        %v2549 = vpack.c.b16 %v2538, %v2537
        %v2550 = vpack.c.b16 %v2540, %v2539
        %v2551 = vpack.c.b16 %v2542, %v2541
        %v2552 = vpack.c.b16 %v2544, %v2543
        %2561 = vmatprep.subr.bf16.mxu0 0
        %2562 = vmatpush1.bf16.msra.mxu0 %v2545
        %2563 = vmatprep.subr.bf16.mxu0 0
        %2564 = vmatpush1.bf16.msra.mxu0 %v2546
        %2565 = vmatprep.subr.bf16.mxu0 0
        %2566 = vmatpush1.bf16.msra.mxu0 %v2547
        %2567 = vmatprep.subr.bf16.mxu0 0
        %2568 = vmatpush1.bf16.msra.mxu0 %v2548
        %2569 = vmatprep.subr.bf16.mxu0 0
        %2570 = vmatpush1.bf16.msra.mxu0 %v2549
        %2571 = vmatprep.subr.bf16.mxu0 0
        %2572 = vmatpush1.bf16.msra.mxu0 %v2550
        %2573 = vmatprep.subr.bf16.mxu0 0
        %2574 = vmatpush1.bf16.msra.mxu0 %v2551
        %2575 = vmatprep.subr.bf16.mxu0 0
        %2576 = vmatpush1.bf16.msra.mxu0 %v2552
        %2577 = vmatprep.subr.bf16.mxu0 0
        %2578 = vmatpush1.bf16.msra.mxu0 0
        %2579 = vmatprep.subr.bf16.mxu0 0
        %2580 = vmatpush1.bf16.msra.mxu0 0
        %2581 = vmatprep.subr.bf16.mxu0 0
        %2582 = vmatpush1.bf16.msra.mxu0 0
        %2583 = vmatprep.subr.bf16.mxu0 0
        %2584 = vmatpush1.bf16.msra.mxu0 0
        %2585 = vmatprep.subr.bf16.mxu0 0
        %2586 = vmatpush1.bf16.msra.mxu0 0
        %2587 = vmatprep.subr.bf16.mxu0 0
        %2588 = vmatpush1.bf16.msra.mxu0 0
        %2589 = vmatprep.subr.bf16.mxu0 0
        %2590 = vmatpush1.bf16.msra.mxu0 0
        %2591 = vmatprep.subr.bf16.mxu0 0
        %2592 = vmatpush1.bf16.msra.mxu0 0
        %2593 = vmatprep.mubr.bf16.mxu0 0
        %2594 = vmatmul.mubr.bf16.gmra.mrb[0].mxu0 %v2480
        %v2595 = vpop.f32.mrb[0].mxu0
        %v2596 = vadd.f32 0.0, %v2595
        %v2597 = vpop.f32.mrb[0].mxu0
        %v2598 = vpop.f32.mrb[0].mxu0
        %v2599 = vadd.f32 0.0, %v2598
        %v2600 = vpop.f32.mrb[0].mxu0
        %2601 = vmatprep.mubr.bf16.mxu0 0
        %2602 = vmatmul.mubr.bf16.gmra.mrb[0].mxu0 %v2481
        %v2603 = vpop.f32.mrb[0].mxu0
        %v2604 = vadd.f32 0.0, %v2603
        %v2605 = vpop.f32.mrb[0].mxu0
        %v2606 = vpop.f32.mrb[0].mxu0
        %v2607 = vadd.f32 0.0, %v2606
        %v2608 = vpop.f32.mrb[0].mxu0
        %2609 = vmatprep.mubr.bf16.mxu0 0
        %2610 = vmatmul.mubr.bf16.gmra.mrb[0].mxu0 %v2482
        %v2611 = vpop.f32.mrb[0].mxu0
        %v2612 = vadd.f32 0.0, %v2611
        %v2613 = vpop.f32.mrb[0].mxu0
        %v2614 = vpop.f32.mrb[0].mxu0
        %v2615 = vadd.f32 0.0, %v2614
        %v2616 = vpop.f32.mrb[0].mxu0
        %2617 = vmatprep.mubr.bf16.mxu0 0
        %2618 = vmatmul.mubr.bf16.gmra.mrb[0].mxu0 %v2483
        %v2619 = vpop.f32.mrb[0].mxu0
        %v2620 = vadd.f32 0.0, %v2619
        %v2621 = vpop.f32.mrb[0].mxu0
        %v2622 = vpop.f32.mrb[0].mxu0
        %v2623 = vadd.f32 0.0, %v2622
        %v2624 = vpop.f32.mrb[0].mxu0
        %2625 = vmatprep.mubr.bf16.mxu0 0
        %2626 = vmatmul.mubr.bf16.gmra.mrb[0].mxu0 %v2484
        %v2627 = vpop.f32.mrb[0].mxu0
        %v2628 = vadd.f32 0.0, %v2627
        %v2629 = vpop.f32.mrb[0].mxu0
        %v2630 = vpop.f32.mrb[0].mxu0
        %v2631 = vadd.f32 0.0, %v2630
        %v2632 = vpop.f32.mrb[0].mxu0
        %2633 = vmatprep.mubr.bf16.mxu0 0
        %2634 = vmatmul.mubr.bf16.gmra.mrb[0].mxu0 %v2485
        %v2635 = vpop.f32.mrb[0].mxu0
        %v2636 = vadd.f32 0.0, %v2635
        %v2637 = vpop.f32.mrb[0].mxu0
        %v2638 = vpop.f32.mrb[0].mxu0
        %v2639 = vadd.f32 0.0, %v2638
        %v2640 = vpop.f32.mrb[0].mxu0
        %2641 = vmatprep.mubr.bf16.mxu0 0
        %2642 = vmatmul.mubr.bf16.gmra.mrb[0].mxu0 %v2486
        %v2643 = vpop.f32.mrb[0].mxu0
        %v2644 = vadd.f32 0.0, %v2643
        %v2645 = vpop.f32.mrb[0].mxu0
        %v2646 = vpop.f32.mrb[0].mxu0
        %v2647 = vadd.f32 0.0, %v2646
        %v2648 = vpop.f32.mrb[0].mxu0
        %2649 = vmatprep.mubr.bf16.mxu0 0
        %2650 = vmatmul.mubr.bf16.gmra.mrb[0].mxu0 %v2487
        %v2651 = vpop.f32.mrb[0].mxu0
        %v2652 = vadd.f32 0.0, %v2651
        %v2653 = vpop.f32.mrb[0].mxu0
        %v2654 = vpop.f32.mrb[0].mxu0
        %v2655 = vadd.f32 0.0, %v2654
        %v2656 = vpop.f32.mrb[0].mxu0
        %2657 = vmatprep.mubr.bf16.mxu0 0
        %2658 = vmatmul.mubr.bf16.gmra.mrb[0].mxu0 %v2488
        %v2659 = vpop.f32.mrb[0].mxu0
        %v2660 = vadd.f32 0.0, %v2659
        %v2661 = vpop.f32.mrb[0].mxu0
        %v2662 = vpop.f32.mrb[0].mxu0
        %v2663 = vadd.f32 0.0, %v2662
        %v2664 = vpop.f32.mrb[0].mxu0
        %2665 = vmatprep.mubr.bf16.mxu0 0
        %2666 = vmatmul.mubr.bf16.gmra.mrb[0].mxu0 %v2489
        %v2667 = vpop.f32.mrb[0].mxu0
        %v2668 = vadd.f32 0.0, %v2667
        %v2669 = vpop.f32.mrb[0].mxu0
        %v2670 = vpop.f32.mrb[0].mxu0
        %v2671 = vadd.f32 0.0, %v2670
        %v2672 = vpop.f32.mrb[0].mxu0
        %2673 = vmatprep.mubr.bf16.mxu0 0
        %2674 = vmatmul.mubr.bf16.gmra.mrb[0].mxu0 %v2490
        %v2675 = vpop.f32.mrb[0].mxu0
        %v2676 = vadd.f32 0.0, %v2675
        %v2677 = vpop.f32.mrb[0].mxu0
        %v2678 = vpop.f32.mrb[0].mxu0
        %v2679 = vadd.f32 0.0, %v2678
        %v2680 = vpop.f32.mrb[0].mxu0
        %2681 = vmatprep.mubr.bf16.mxu0 0
        %2682 = vmatmul.mubr.bf16.gmra.mrb[0].mxu0 %v2491
        %v2683 = vpop.f32.mrb[0].mxu0
        %v2684 = vadd.f32 0.0, %v2683
        %v2685 = vpop.f32.mrb[0].mxu0
        %v2686 = vpop.f32.mrb[0].mxu0
        %v2687 = vadd.f32 0.0, %v2686
        %v2688 = vpop.f32.mrb[0].mxu0
        %2689 = vmatprep.mubr.bf16.mxu0 0
        %2690 = vmatmul.mubr.bf16.gmra.mrb[0].mxu0 %v2492
        %v2691 = vpop.f32.mrb[0].mxu0
        %v2692 = vadd.f32 0.0, %v2691
        %v2693 = vpop.f32.mrb[0].mxu0
        %v2694 = vpop.f32.mrb[0].mxu0
        %v2695 = vadd.f32 0.0, %v2694
        %v2696 = vpop.f32.mrb[0].mxu0
        %2697 = vmatprep.mubr.bf16.mxu0 0
        %2698 = vmatmul.mubr.bf16.gmra.mrb[0].mxu0 %v2493
        %v2699 = vpop.f32.mrb[0].mxu0
        %v2700 = vadd.f32 0.0, %v2699
        %v2701 = vpop.f32.mrb[0].mxu0
        %v2702 = vpop.f32.mrb[0].mxu0
        %v2703 = vadd.f32 0.0, %v2702
        %v2704 = vpop.f32.mrb[0].mxu0
        %2705 = vmatprep.mubr.bf16.mxu0 0
        %2706 = vmatmul.mubr.bf16.gmra.mrb[0].mxu0 %v2494
        %v2707 = vpop.f32.mrb[0].mxu0
        %v2708 = vadd.f32 0.0, %v2707
        %v2709 = vpop.f32.mrb[0].mxu0
        %v2710 = vpop.f32.mrb[0].mxu0
        %v2711 = vadd.f32 0.0, %v2710
        %v2712 = vpop.f32.mrb[0].mxu0
        %2713 = vmatprep.mubr.bf16.mxu0 0
        %2714 = vmatmul.mubr.bf16.gmra.mrb[0].mxu0 %v2495
        %v2715 = vpop.f32.mrb[0].mxu0
        %v2716 = vadd.f32 0.0, %v2715
        %v2717 = vpop.f32.mrb[0].mxu0
        %v2718 = vpop.f32.mrb[0].mxu0
        %v2719 = vadd.f32 0.0, %v2718
        %v2720 = vpop.f32.mrb[0].mxu0
        %2721 = vdwg.mxu0
        %v2722 = vadd.f32 %v2416, %v2596
        %v2723 = vadd.f32 %v2417, %v2599
        %v2724 = vadd.f32 %v2418, %v2604
        %v2725 = vadd.f32 %v2419, %v2607
        %v2726 = vadd.f32 %v2420, %v2612
        %v2727 = vadd.f32 %v2421, %v2615
        %v2728 = vadd.f32 %v2422, %v2620
        %v2729 = vadd.f32 %v2423, %v2623
        %v2730 = vadd.f32 %v2424, %v2628
        %v2731 = vadd.f32 %v2425, %v2631
        %v2732 = vadd.f32 %v2426, %v2636
        %v2733 = vadd.f32 %v2427, %v2639
        %v2734 = vadd.f32 %v2428, %v2644
        %v2735 = vadd.f32 %v2429, %v2647
        %v2736 = vadd.f32 %v2430, %v2652
        %v2737 = vadd.f32 %v2431, %v2655
        %v2738 = vadd.f32 %v2432, %v2660
        %v2739 = vadd.f32 %v2433, %v2663
        %v2740 = vadd.f32 %v2434, %v2668
        %v2741 = vadd.f32 %v2435, %v2671
        %v2742 = vadd.f32 %v2436, %v2676
        %v2743 = vadd.f32 %v2437, %v2679
        %v2744 = vadd.f32 %v2438, %v2684
        %v2745 = vadd.f32 %v2439, %v2687
        %v2746 = vadd.f32 %v2440, %v2692
        %v2747 = vadd.f32 %v2441, %v2695
        %v2748 = vadd.f32 %v2442, %v2700
        %v2749 = vadd.f32 %v2443, %v2703
        %v2750 = vadd.f32 %v2444, %v2708
        %v2751 = vadd.f32 %v2445, %v2711
        %v2752 = vadd.f32 %v2446, %v2716
        %v2753 = vadd.f32 %v2447, %v2719
        %s2754 = scalar_lea.vmem [#allocation2], 48
        %v2755 = vld [vmem:[%s2754] sm:$0xff]
        %v2756 = vld [vmem:[%s2754 + $0x8] sm:$0xff]
        %v2757 = vld [vmem:[%s2754 + $0x18] sm:$0xff]
        %v2758 = vld [vmem:[%s2754 + $0x20] sm:$0xff]
        %v2759 = vld [vmem:[%s2754 + $0x30] sm:$0xff]
        %v2760 = vld [vmem:[%s2754 + $0x38] sm:$0xff]
        %v2761 = vld [vmem:[%s2754 + $0x48] sm:$0xff]
        %v2762 = vld [vmem:[%s2754 + $0x50] sm:$0xff]
        %v2763 = vld [vmem:[%s2754 + $0x60] sm:$0xff]
        %v2764 = vld [vmem:[%s2754 + $0x68] sm:$0xff]
        %v2765 = vld [vmem:[%s2754 + $0x78] sm:$0xff]
        %v2766 = vld [vmem:[%s2754 + $0x80] sm:$0xff]
        %v2767 = vld [vmem:[%s2754 + $0x90] sm:$0xff]
        %v2768 = vld [vmem:[%s2754 + $0x98] sm:$0xff]
        %v2769 = vld [vmem:[%s2754 + $0xa8] sm:$0xff]
        %v2770 = vld [vmem:[%s2754 + $0xb0] sm:$0xff]
        %v2771 = vld [vmem:[%s2754 + $0xc0] sm:$0xff]
        %v2772 = vld [vmem:[%s2754 + $0xc8] sm:$0xff]
        %v2773 = vld [vmem:[%s2754 + $0xd8] sm:$0xff]
        %v2774 = vld [vmem:[%s2754 + $0xe0] sm:$0xff]
        %v2775 = vld [vmem:[%s2754 + $0xf0] sm:$0xff]
        %v2776 = vld [vmem:[%s2754 + $0xf8] sm:$0xff]
        %v2777 = vld [vmem:[%s2754 + $0x108] sm:$0xff]
        %v2778 = vld [vmem:[%s2754 + $0x110] sm:$0xff]
        %v2779 = vld [vmem:[%s2754 + $0x120] sm:$0xff]
        %v2780 = vld [vmem:[%s2754 + $0x128] sm:$0xff]
        %v2781 = vld [vmem:[%s2754 + $0x138] sm:$0xff]
        %v2782 = vld [vmem:[%s2754 + $0x140] sm:$0xff]
        %v2783 = vld [vmem:[%s2754 + $0x150] sm:$0xff]
        %v2784 = vld [vmem:[%s2754 + $0x158] sm:$0xff]
        %v2785 = vld [vmem:[%s2754 + $0x168] sm:$0xff]
        %v2786 = vld [vmem:[%s2754 + $0x170] sm:$0xff]
        %v2787 = vpack.c.bf16 %v2756, %v2755
        %v2788 = vpack.c.bf16 %v2758, %v2757
        %v2789 = vpack.c.bf16 %v2760, %v2759
        %v2790 = vpack.c.bf16 %v2762, %v2761
        %v2791 = vpack.c.bf16 %v2764, %v2763
        %v2792 = vpack.c.bf16 %v2766, %v2765
        %v2793 = vpack.c.bf16 %v2768, %v2767
        %v2794 = vpack.c.bf16 %v2770, %v2769
        %v2795 = vpack.c.bf16 %v2772, %v2771
        %v2796 = vpack.c.bf16 %v2774, %v2773
        %v2797 = vpack.c.bf16 %v2776, %v2775
        %v2798 = vpack.c.bf16 %v2778, %v2777
        %v2799 = vpack.c.bf16 %v2780, %v2779
        %v2800 = vpack.c.bf16 %v2782, %v2781
        %v2801 = vpack.c.bf16 %v2784, %v2783
        %v2802 = vpack.c.bf16 %v2786, %v2785
        %s2803 = scalar_lea.vmem [#allocation8], 384
        %v2804 = vld [vmem:[%s2803] sm:$0xf]
        %v2805 = vld [vmem:[%s2803 + $0x4] sm:$0xf]
        %v2806 = vld [vmem:[%s2803 + $0x8] sm:$0xf]
        %v2807 = vld [vmem:[%s2803 + $0xc] sm:$0xf]
        %v2808 = vld [vmem:[%s2803 + $0x10] sm:$0xf]
        %v2809 = vld [vmem:[%s2803 + $0x14] sm:$0xf]
        %v2810 = vld [vmem:[%s2803 + $0x18] sm:$0xf]
        %v2811 = vld [vmem:[%s2803 + $0x1c] sm:$0xf]
        %v2812 = vld [vmem:[%s2803 + $0x20] sm:$0xf]
        %v2813 = vld [vmem:[%s2803 + $0x24] sm:$0xf]
        %v2814 = vld [vmem:[%s2803 + $0x28] sm:$0xf]
        %v2815 = vld [vmem:[%s2803 + $0x2c] sm:$0xf]
        %v2816 = vld [vmem:[%s2803 + $0x30] sm:$0xf]
        %v2817 = vld [vmem:[%s2803 + $0x34] sm:$0xf]
        %v2818 = vld [vmem:[%s2803 + $0x38] sm:$0xf]
        %v2819 = vld [vmem:[%s2803 + $0x3c] sm:$0xf]
        %v2836 = vunpack.c.l.b16 %v2804
        %v2837 = vunpack.c.l.b16 %v2805
        %v2838 = vunpack.c.l.b16 %v2806
        %v2839 = vunpack.c.l.b16 %v2807
        %v2840 = vunpack.c.l.b16 %v2808
        %v2841 = vunpack.c.l.b16 %v2809
        %v2842 = vunpack.c.l.b16 %v2810
        %v2843 = vunpack.c.l.b16 %v2811
        %v2844 = vunpack.c.l.b16 %v2812
        %v2845 = vunpack.c.l.b16 %v2813
        %v2846 = vunpack.c.l.b16 %v2814
        %v2847 = vunpack.c.l.b16 %v2815
        %v2848 = vunpack.c.l.b16 %v2816
        %v2849 = vunpack.c.l.b16 %v2817
        %v2850 = vunpack.c.l.b16 %v2818
        %v2851 = vunpack.c.l.b16 %v2819
        %v2852 = vpack.c.b16 %v2837, %v2836
        %v2853 = vpack.c.b16 %v2839, %v2838
        %v2854 = vpack.c.b16 %v2841, %v2840
        %v2855 = vpack.c.b16 %v2843, %v2842
        %v2856 = vpack.c.b16 %v2845, %v2844
        %v2857 = vpack.c.b16 %v2847, %v2846
        %v2858 = vpack.c.b16 %v2849, %v2848
        %v2859 = vpack.c.b16 %v2851, %v2850
        %2868 = vmatprep.subr.bf16.mxu0 0
        %2869 = vmatpush1.bf16.msra.mxu0 %v2852
        %2870 = vmatprep.subr.bf16.mxu0 0
        %2871 = vmatpush1.bf16.msra.mxu0 %v2853
        %2872 = vmatprep.subr.bf16.mxu0 0
        %2873 = vmatpush1.bf16.msra.mxu0 %v2854
        %2874 = vmatprep.subr.bf16.mxu0 0
        %2875 = vmatpush1.bf16.msra.mxu0 %v2855
        %2876 = vmatprep.subr.bf16.mxu0 0
        %2877 = vmatpush1.bf16.msra.mxu0 %v2856
        %2878 = vmatprep.subr.bf16.mxu0 0
        %2879 = vmatpush1.bf16.msra.mxu0 %v2857
        %2880 = vmatprep.subr.bf16.mxu0 0
        %2881 = vmatpush1.bf16.msra.mxu0 %v2858
        %2882 = vmatprep.subr.bf16.mxu0 0
        %2883 = vmatpush1.bf16.msra.mxu0 %v2859
        %2884 = vmatprep.subr.bf16.mxu0 0
        %2885 = vmatpush1.bf16.msra.mxu0 0
        %2886 = vmatprep.subr.bf16.mxu0 0
        %2887 = vmatpush1.bf16.msra.mxu0 0
        %2888 = vmatprep.subr.bf16.mxu0 0
        %2889 = vmatpush1.bf16.msra.mxu0 0
        %2890 = vmatprep.subr.bf16.mxu0 0
        %2891 = vmatpush1.bf16.msra.mxu0 0
        %2892 = vmatprep.subr.bf16.mxu0 0
        %2893 = vmatpush1.bf16.msra.mxu0 0
        %2894 = vmatprep.subr.bf16.mxu0 0
        %2895 = vmatpush1.bf16.msra.mxu0 0
        %2896 = vmatprep.subr.bf16.mxu0 0
        %2897 = vmatpush1.bf16.msra.mxu0 0
        %2898 = vmatprep.subr.bf16.mxu0 0
        %2899 = vmatpush1.bf16.msra.mxu0 0
        %2900 = vmatprep.mubr.bf16.mxu0 0
        %2901 = vmatmul.mubr.bf16.gmra.mrb[0].mxu0 %v2787
        %v2902 = vpop.f32.mrb[0].mxu0
        %v2903 = vadd.f32 0.0, %v2902
        %v2904 = vpop.f32.mrb[0].mxu0
        %v2905 = vpop.f32.mrb[0].mxu0
        %v2906 = vadd.f32 0.0, %v2905
        %v2907 = vpop.f32.mrb[0].mxu0
        %2908 = vmatprep.mubr.bf16.mxu0 0
        %2909 = vmatmul.mubr.bf16.gmra.mrb[0].mxu0 %v2788
        %v2910 = vpop.f32.mrb[0].mxu0
        %v2911 = vadd.f32 0.0, %v2910
        %v2912 = vpop.f32.mrb[0].mxu0
        %v2913 = vpop.f32.mrb[0].mxu0
        %v2914 = vadd.f32 0.0, %v2913
        %v2915 = vpop.f32.mrb[0].mxu0
        %2916 = vmatprep.mubr.bf16.mxu0 0
        %2917 = vmatmul.mubr.bf16.gmra.mrb[0].mxu0 %v2789
        %v2918 = vpop.f32.mrb[0].mxu0
        %v2919 = vadd.f32 0.0, %v2918
        %v2920 = vpop.f32.mrb[0].mxu0
        %v2921 = vpop.f32.mrb[0].mxu0
        %v2922 = vadd.f32 0.0, %v2921
        %v2923 = vpop.f32.mrb[0].mxu0
        %2924 = vmatprep.mubr.bf16.mxu0 0
        %2925 = vmatmul.mubr.bf16.gmra.mrb[0].mxu0 %v2790
        %v2926 = vpop.f32.mrb[0].mxu0
        %v2927 = vadd.f32 0.0, %v2926
        %v2928 = vpop.f32.mrb[0].mxu0
        %v2929 = vpop.f32.mrb[0].mxu0
        %v2930 = vadd.f32 0.0, %v2929
        %v2931 = vpop.f32.mrb[0].mxu0
        %2932 = vmatprep.mubr.bf16.mxu0 0
        %2933 = vmatmul.mubr.bf16.gmra.mrb[0].mxu0 %v2791
        %v2934 = vpop.f32.mrb[0].mxu0
        %v2935 = vadd.f32 0.0, %v2934
        %v2936 = vpop.f32.mrb[0].mxu0
        %v2937 = vpop.f32.mrb[0].mxu0
        %v2938 = vadd.f32 0.0, %v2937
        %v2939 = vpop.f32.mrb[0].mxu0
        %2940 = vmatprep.mubr.bf16.mxu0 0
        %2941 = vmatmul.mubr.bf16.gmra.mrb[0].mxu0 %v2792
        %v2942 = vpop.f32.mrb[0].mxu0
        %v2943 = vadd.f32 0.0, %v2942
        %v2944 = vpop.f32.mrb[0].mxu0
        %v2945 = vpop.f32.mrb[0].mxu0
        %v2946 = vadd.f32 0.0, %v2945
        %v2947 = vpop.f32.mrb[0].mxu0
        %2948 = vmatprep.mubr.bf16.mxu0 0
        %2949 = vmatmul.mubr.bf16.gmra.mrb[0].mxu0 %v2793
        %v2950 = vpop.f32.mrb[0].mxu0
        %v2951 = vadd.f32 0.0, %v2950
        %v2952 = vpop.f32.mrb[0].mxu0
        %v2953 = vpop.f32.mrb[0].mxu0
        %v2954 = vadd.f32 0.0, %v2953
        %v2955 = vpop.f32.mrb[0].mxu0
        %2956 = vmatprep.mubr.bf16.mxu0 0
        %2957 = vmatmul.mubr.bf16.gmra.mrb[0].mxu0 %v2794
        %v2958 = vpop.f32.mrb[0].mxu0
        %v2959 = vadd.f32 0.0, %v2958
        %v2960 = vpop.f32.mrb[0].mxu0
        %v2961 = vpop.f32.mrb[0].mxu0
        %v2962 = vadd.f32 0.0, %v2961
        %v2963 = vpop.f32.mrb[0].mxu0
        %2964 = vmatprep.mubr.bf16.mxu0 0
        %2965 = vmatmul.mubr.bf16.gmra.mrb[0].mxu0 %v2795
        %v2966 = vpop.f32.mrb[0].mxu0
        %v2967 = vadd.f32 0.0, %v2966
        %v2968 = vpop.f32.mrb[0].mxu0
        %v2969 = vpop.f32.mrb[0].mxu0
        %v2970 = vadd.f32 0.0, %v2969
        %v2971 = vpop.f32.mrb[0].mxu0
        %2972 = vmatprep.mubr.bf16.mxu0 0
        %2973 = vmatmul.mubr.bf16.gmra.mrb[0].mxu0 %v2796
        %v2974 = vpop.f32.mrb[0].mxu0
        %v2975 = vadd.f32 0.0, %v2974
        %v2976 = vpop.f32.mrb[0].mxu0
        %v2977 = vpop.f32.mrb[0].mxu0
        %v2978 = vadd.f32 0.0, %v2977
        %v2979 = vpop.f32.mrb[0].mxu0
        %2980 = vmatprep.mubr.bf16.mxu0 0
        %2981 = vmatmul.mubr.bf16.gmra.mrb[0].mxu0 %v2797
        %v2982 = vpop.f32.mrb[0].mxu0
        %v2983 = vadd.f32 0.0, %v2982
        %v2984 = vpop.f32.mrb[0].mxu0
        %v2985 = vpop.f32.mrb[0].mxu0
        %v2986 = vadd.f32 0.0, %v2985
        %v2987 = vpop.f32.mrb[0].mxu0
        %2988 = vmatprep.mubr.bf16.mxu0 0
        %2989 = vmatmul.mubr.bf16.gmra.mrb[0].mxu0 %v2798
        %v2990 = vpop.f32.mrb[0].mxu0
        %v2991 = vadd.f32 0.0, %v2990
        %v2992 = vpop.f32.mrb[0].mxu0
        %v2993 = vpop.f32.mrb[0].mxu0
        %v2994 = vadd.f32 0.0, %v2993
        %v2995 = vpop.f32.mrb[0].mxu0
        %2996 = vmatprep.mubr.bf16.mxu0 0
        %2997 = vmatmul.mubr.bf16.gmra.mrb[0].mxu0 %v2799
        %v2998 = vpop.f32.mrb[0].mxu0
        %v2999 = vadd.f32 0.0, %v2998
        %v3000 = vpop.f32.mrb[0].mxu0
        %v3001 = vpop.f32.mrb[0].mxu0
        %v3002 = vadd.f32 0.0, %v3001
        %v3003 = vpop.f32.mrb[0].mxu0
        %3004 = vmatprep.mubr.bf16.mxu0 0
        %3005 = vmatmul.mubr.bf16.gmra.mrb[0].mxu0 %v2800
        %v3006 = vpop.f32.mrb[0].mxu0
        %v3007 = vadd.f32 0.0, %v3006
        %v3008 = vpop.f32.mrb[0].mxu0
        %v3009 = vpop.f32.mrb[0].mxu0
        %v3010 = vadd.f32 0.0, %v3009
        %v3011 = vpop.f32.mrb[0].mxu0
        %3012 = vmatprep.mubr.bf16.mxu0 0
        %3013 = vmatmul.mubr.bf16.gmra.mrb[0].mxu0 %v2801
        %v3014 = vpop.f32.mrb[0].mxu0
        %v3015 = vadd.f32 0.0, %v3014
        %v3016 = vpop.f32.mrb[0].mxu0
        %v3017 = vpop.f32.mrb[0].mxu0
        %v3018 = vadd.f32 0.0, %v3017
        %v3019 = vpop.f32.mrb[0].mxu0
        %3020 = vmatprep.mubr.bf16.mxu0 0
        %3021 = vmatmul.mubr.bf16.gmra.mrb[0].mxu0 %v2802
        %v3022 = vpop.f32.mrb[0].mxu0
        %v3023 = vadd.f32 0.0, %v3022
        %v3024 = vpop.f32.mrb[0].mxu0
        %v3025 = vpop.f32.mrb[0].mxu0
        %v3026 = vadd.f32 0.0, %v3025
        %v3027 = vpop.f32.mrb[0].mxu0
        %3028 = vdwg.mxu0
        %v3029 = vadd.f32 %v2722, %v2903
        %v3030 = vadd.f32 %v2723, %v2906
        %v3031 = vadd.f32 %v2724, %v2911
        %v3032 = vadd.f32 %v2725, %v2914
        %v3033 = vadd.f32 %v2726, %v2919
        %v3034 = vadd.f32 %v2727, %v2922
        %v3035 = vadd.f32 %v2728, %v2927
        %v3036 = vadd.f32 %v2729, %v2930
        %v3037 = vadd.f32 %v2730, %v2935
        %v3038 = vadd.f32 %v2731, %v2938
        %v3039 = vadd.f32 %v2732, %v2943
        %v3040 = vadd.f32 %v2733, %v2946
        %v3041 = vadd.f32 %v2734, %v2951
        %v3042 = vadd.f32 %v2735, %v2954
        %v3043 = vadd.f32 %v2736, %v2959
        %v3044 = vadd.f32 %v2737, %v2962
        %v3045 = vadd.f32 %v2738, %v2967
        %v3046 = vadd.f32 %v2739, %v2970
        %v3047 = vadd.f32 %v2740, %v2975
        %v3048 = vadd.f32 %v2741, %v2978
        %v3049 = vadd.f32 %v2742, %v2983
        %v3050 = vadd.f32 %v2743, %v2986
        %v3051 = vadd.f32 %v2744, %v2991
        %v3052 = vadd.f32 %v2745, %v2994
        %v3053 = vadd.f32 %v2746, %v2999
        %v3054 = vadd.f32 %v2747, %v3002
        %v3055 = vadd.f32 %v2748, %v3007
        %v3056 = vadd.f32 %v2749, %v3010
        %v3057 = vadd.f32 %v2750, %v3015
        %v3058 = vadd.f32 %v2751, %v3018
        %v3059 = vadd.f32 %v2752, %v3023
        %v3060 = vadd.f32 %v2753, %v3026
        %v3061 = vld [vmem:[%s2754 + $0x1] sm:$0xff]
        %v3062 = vld [vmem:[%s2754 + $0x9] sm:$0xff]
        %v3063 = vld [vmem:[%s2754 + $0x19] sm:$0xff]
        %v3064 = vld [vmem:[%s2754 + $0x21] sm:$0xff]
        %v3065 = vld [vmem:[%s2754 + $0x31] sm:$0xff]
        %v3066 = vld [vmem:[%s2754 + $0x39] sm:$0xff]
        %v3067 = vld [vmem:[%s2754 + $0x49] sm:$0xff]
        %v3068 = vld [vmem:[%s2754 + $0x51] sm:$0xff]
        %v3069 = vld [vmem:[%s2754 + $0x61] sm:$0xff]
        %v3070 = vld [vmem:[%s2754 + $0x69] sm:$0xff]
        %v3071 = vld [vmem:[%s2754 + $0x79] sm:$0xff]
        %v3072 = vld [vmem:[%s2754 + $0x81] sm:$0xff]
        %v3073 = vld [vmem:[%s2754 + $0x91] sm:$0xff]
        %v3074 = vld [vmem:[%s2754 + $0x99] sm:$0xff]
        %v3075 = vld [vmem:[%s2754 + $0xa9] sm:$0xff]
        %v3076 = vld [vmem:[%s2754 + $0xb1] sm:$0xff]
        %v3077 = vld [vmem:[%s2754 + $0xc1] sm:$0xff]
        %v3078 = vld [vmem:[%s2754 + $0xc9] sm:$0xff]
        %v3079 = vld [vmem:[%s2754 + $0xd9] sm:$0xff]
        %v3080 = vld [vmem:[%s2754 + $0xe1] sm:$0xff]
        %v3081 = vld [vmem:[%s2754 + $0xf1] sm:$0xff]
        %v3082 = vld [vmem:[%s2754 + $0xf9] sm:$0xff]
        %v3083 = vld [vmem:[%s2754 + $0x109] sm:$0xff]
        %v3084 = vld [vmem:[%s2754 + $0x111] sm:$0xff]
        %v3085 = vld [vmem:[%s2754 + $0x121] sm:$0xff]
        %v3086 = vld [vmem:[%s2754 + $0x129] sm:$0xff]
        %v3087 = vld [vmem:[%s2754 + $0x139] sm:$0xff]
        %v3088 = vld [vmem:[%s2754 + $0x141] sm:$0xff]
        %v3089 = vld [vmem:[%s2754 + $0x151] sm:$0xff]
        %v3090 = vld [vmem:[%s2754 + $0x159] sm:$0xff]
        %v3091 = vld [vmem:[%s2754 + $0x169] sm:$0xff]
        %v3092 = vld [vmem:[%s2754 + $0x171] sm:$0xff]
        %v3093 = vpack.c.bf16 %v3062, %v3061
        %v3094 = vpack.c.bf16 %v3064, %v3063
        %v3095 = vpack.c.bf16 %v3066, %v3065
        %v3096 = vpack.c.bf16 %v3068, %v3067
        %v3097 = vpack.c.bf16 %v3070, %v3069
        %v3098 = vpack.c.bf16 %v3072, %v3071
        %v3099 = vpack.c.bf16 %v3074, %v3073
        %v3100 = vpack.c.bf16 %v3076, %v3075
        %v3101 = vpack.c.bf16 %v3078, %v3077
        %v3102 = vpack.c.bf16 %v3080, %v3079
        %v3103 = vpack.c.bf16 %v3082, %v3081
        %v3104 = vpack.c.bf16 %v3084, %v3083
        %v3105 = vpack.c.bf16 %v3086, %v3085
        %v3106 = vpack.c.bf16 %v3088, %v3087
        %v3107 = vpack.c.bf16 %v3090, %v3089
        %v3108 = vpack.c.bf16 %v3092, %v3091
        %s3109 = scalar_lea.vmem [#allocation8], 448
        %v3110 = vld [vmem:[%s3109] sm:$0xf]
        %v3111 = vld [vmem:[%s3109 + $0x4] sm:$0xf]
        %v3112 = vld [vmem:[%s3109 + $0x8] sm:$0xf]
        %v3113 = vld [vmem:[%s3109 + $0xc] sm:$0xf]
        %v3114 = vld [vmem:[%s3109 + $0x10] sm:$0xf]
        %v3115 = vld [vmem:[%s3109 + $0x14] sm:$0xf]
        %v3116 = vld [vmem:[%s3109 + $0x18] sm:$0xf]
        %v3117 = vld [vmem:[%s3109 + $0x1c] sm:$0xf]
        %v3118 = vld [vmem:[%s3109 + $0x20] sm:$0xf]
        %v3119 = vld [vmem:[%s3109 + $0x24] sm:$0xf]
        %v3120 = vld [vmem:[%s3109 + $0x28] sm:$0xf]
        %v3121 = vld [vmem:[%s3109 + $0x2c] sm:$0xf]
        %v3122 = vld [vmem:[%s3109 + $0x30] sm:$0xf]
        %v3123 = vld [vmem:[%s3109 + $0x34] sm:$0xf]
        %v3124 = vld [vmem:[%s3109 + $0x38] sm:$0xf]
        %v3125 = vld [vmem:[%s3109 + $0x3c] sm:$0xf]
        %v3142 = vunpack.c.l.b16 %v3110
        %v3143 = vunpack.c.l.b16 %v3111
        %v3144 = vunpack.c.l.b16 %v3112
        %v3145 = vunpack.c.l.b16 %v3113
        %v3146 = vunpack.c.l.b16 %v3114
        %v3147 = vunpack.c.l.b16 %v3115
        %v3148 = vunpack.c.l.b16 %v3116
        %v3149 = vunpack.c.l.b16 %v3117
        %v3150 = vunpack.c.l.b16 %v3118
        %v3151 = vunpack.c.l.b16 %v3119
        %v3152 = vunpack.c.l.b16 %v3120
        %v3153 = vunpack.c.l.b16 %v3121
        %v3154 = vunpack.c.l.b16 %v3122
        %v3155 = vunpack.c.l.b16 %v3123
        %v3156 = vunpack.c.l.b16 %v3124
        %v3157 = vunpack.c.l.b16 %v3125
        %v3158 = vpack.c.b16 %v3143, %v3142
        %v3159 = vpack.c.b16 %v3145, %v3144
        %v3160 = vpack.c.b16 %v3147, %v3146
        %v3161 = vpack.c.b16 %v3149, %v3148
        %v3162 = vpack.c.b16 %v3151, %v3150
        %v3163 = vpack.c.b16 %v3153, %v3152
        %v3164 = vpack.c.b16 %v3155, %v3154
        %v3165 = vpack.c.b16 %v3157, %v3156
        %3174 = vmatprep.subr.bf16.mxu0 0
        %3175 = vmatpush1.bf16.msra.mxu0 %v3158
        %3176 = vmatprep.subr.bf16.mxu0 0
        %3177 = vmatpush1.bf16.msra.mxu0 %v3159
        %3178 = vmatprep.subr.bf16.mxu0 0
        %3179 = vmatpush1.bf16.msra.mxu0 %v3160
        %3180 = vmatprep.subr.bf16.mxu0 0
        %3181 = vmatpush1.bf16.msra.mxu0 %v3161
        %3182 = vmatprep.subr.bf16.mxu0 0
        %3183 = vmatpush1.bf16.msra.mxu0 %v3162
        %3184 = vmatprep.subr.bf16.mxu0 0
        %3185 = vmatpush1.bf16.msra.mxu0 %v3163
        %3186 = vmatprep.subr.bf16.mxu0 0
        %3187 = vmatpush1.bf16.msra.mxu0 %v3164
        %3188 = vmatprep.subr.bf16.mxu0 0
        %3189 = vmatpush1.bf16.msra.mxu0 %v3165
        %3190 = vmatprep.subr.bf16.mxu0 0
        %3191 = vmatpush1.bf16.msra.mxu0 0
        %3192 = vmatprep.subr.bf16.mxu0 0
        %3193 = vmatpush1.bf16.msra.mxu0 0
        %3194 = vmatprep.subr.bf16.mxu0 0
        %3195 = vmatpush1.bf16.msra.mxu0 0
        %3196 = vmatprep.subr.bf16.mxu0 0
        %3197 = vmatpush1.bf16.msra.mxu0 0
        %3198 = vmatprep.subr.bf16.mxu0 0
        %3199 = vmatpush1.bf16.msra.mxu0 0
        %3200 = vmatprep.subr.bf16.mxu0 0
        %3201 = vmatpush1.bf16.msra.mxu0 0
        %3202 = vmatprep.subr.bf16.mxu0 0
        %3203 = vmatpush1.bf16.msra.mxu0 0
        %3204 = vmatprep.subr.bf16.mxu0 0
        %3205 = vmatpush1.bf16.msra.mxu0 0
        %3206 = vmatprep.mubr.bf16.mxu0 0
        %3207 = vmatmul.mubr.bf16.gmra.mrb[0].mxu0 %v3093
        %v3208 = vpop.f32.mrb[0].mxu0
        %v3209 = vadd.f32 0.0, %v3208
        %v3210 = vpop.f32.mrb[0].mxu0
        %v3211 = vpop.f32.mrb[0].mxu0
        %v3212 = vadd.f32 0.0, %v3211
        %v3213 = vpop.f32.mrb[0].mxu0
        %3214 = vmatprep.mubr.bf16.mxu0 0
        %3215 = vmatmul.mubr.bf16.gmra.mrb[0].mxu0 %v3094
        %v3216 = vpop.f32.mrb[0].mxu0
        %v3217 = vadd.f32 0.0, %v3216
        %v3218 = vpop.f32.mrb[0].mxu0
        %v3219 = vpop.f32.mrb[0].mxu0
        %v3220 = vadd.f32 0.0, %v3219
        %v3221 = vpop.f32.mrb[0].mxu0
        %3222 = vmatprep.mubr.bf16.mxu0 0
        %3223 = vmatmul.mubr.bf16.gmra.mrb[0].mxu0 %v3095
        %v3224 = vpop.f32.mrb[0].mxu0
        %v3225 = vadd.f32 0.0, %v3224
        %v3226 = vpop.f32.mrb[0].mxu0
        %v3227 = vpop.f32.mrb[0].mxu0
        %v3228 = vadd.f32 0.0, %v3227
        %v3229 = vpop.f32.mrb[0].mxu0
        %3230 = vmatprep.mubr.bf16.mxu0 0
        %3231 = vmatmul.mubr.bf16.gmra.mrb[0].mxu0 %v3096
        %v3232 = vpop.f32.mrb[0].mxu0
        %v3233 = vadd.f32 0.0, %v3232
        %v3234 = vpop.f32.mrb[0].mxu0
        %v3235 = vpop.f32.mrb[0].mxu0
        %v3236 = vadd.f32 0.0, %v3235
        %v3237 = vpop.f32.mrb[0].mxu0
        %3238 = vmatprep.mubr.bf16.mxu0 0
        %3239 = vmatmul.mubr.bf16.gmra.mrb[0].mxu0 %v3097
        %v3240 = vpop.f32.mrb[0].mxu0
        %v3241 = vadd.f32 0.0, %v3240
        %v3242 = vpop.f32.mrb[0].mxu0
        %v3243 = vpop.f32.mrb[0].mxu0
        %v3244 = vadd.f32 0.0, %v3243
        %v3245 = vpop.f32.mrb[0].mxu0
        %3246 = vmatprep.mubr.bf16.mxu0 0
        %3247 = vmatmul.mubr.bf16.gmra.mrb[0].mxu0 %v3098
        %v3248 = vpop.f32.mrb[0].mxu0
        %v3249 = vadd.f32 0.0, %v3248
        %v3250 = vpop.f32.mrb[0].mxu0
        %v3251 = vpop.f32.mrb[0].mxu0
        %v3252 = vadd.f32 0.0, %v3251
        %v3253 = vpop.f32.mrb[0].mxu0
        %3254 = vmatprep.mubr.bf16.mxu0 0
        %3255 = vmatmul.mubr.bf16.gmra.mrb[0].mxu0 %v3099
        %v3256 = vpop.f32.mrb[0].mxu0
        %v3257 = vadd.f32 0.0, %v3256
        %v3258 = vpop.f32.mrb[0].mxu0
        %v3259 = vpop.f32.mrb[0].mxu0
        %v3260 = vadd.f32 0.0, %v3259
        %v3261 = vpop.f32.mrb[0].mxu0
        %3262 = vmatprep.mubr.bf16.mxu0 0
        %3263 = vmatmul.mubr.bf16.gmra.mrb[0].mxu0 %v3100
        %v3264 = vpop.f32.mrb[0].mxu0
        %v3265 = vadd.f32 0.0, %v3264
        %v3266 = vpop.f32.mrb[0].mxu0
        %v3267 = vpop.f32.mrb[0].mxu0
        %v3268 = vadd.f32 0.0, %v3267
        %v3269 = vpop.f32.mrb[0].mxu0
        %3270 = vmatprep.mubr.bf16.mxu0 0
        %3271 = vmatmul.mubr.bf16.gmra.mrb[0].mxu0 %v3101
        %v3272 = vpop.f32.mrb[0].mxu0
        %v3273 = vadd.f32 0.0, %v3272
        %v3274 = vpop.f32.mrb[0].mxu0
        %v3275 = vpop.f32.mrb[0].mxu0
        %v3276 = vadd.f32 0.0, %v3275
        %v3277 = vpop.f32.mrb[0].mxu0
        %3278 = vmatprep.mubr.bf16.mxu0 0
        %3279 = vmatmul.mubr.bf16.gmra.mrb[0].mxu0 %v3102
        %v3280 = vpop.f32.mrb[0].mxu0
        %v3281 = vadd.f32 0.0, %v3280
        %v3282 = vpop.f32.mrb[0].mxu0
        %v3283 = vpop.f32.mrb[0].mxu0
        %v3284 = vadd.f32 0.0, %v3283
        %v3285 = vpop.f32.mrb[0].mxu0
        %3286 = vmatprep.mubr.bf16.mxu0 0
        %3287 = vmatmul.mubr.bf16.gmra.mrb[0].mxu0 %v3103
        %v3288 = vpop.f32.mrb[0].mxu0
        %v3289 = vadd.f32 0.0, %v3288
        %v3290 = vpop.f32.mrb[0].mxu0
        %v3291 = vpop.f32.mrb[0].mxu0
        %v3292 = vadd.f32 0.0, %v3291
        %v3293 = vpop.f32.mrb[0].mxu0
        %3294 = vmatprep.mubr.bf16.mxu0 0
        %3295 = vmatmul.mubr.bf16.gmra.mrb[0].mxu0 %v3104
        %v3296 = vpop.f32.mrb[0].mxu0
        %v3297 = vadd.f32 0.0, %v3296
        %v3298 = vpop.f32.mrb[0].mxu0
        %v3299 = vpop.f32.mrb[0].mxu0
        %v3300 = vadd.f32 0.0, %v3299
        %v3301 = vpop.f32.mrb[0].mxu0
        %3302 = vmatprep.mubr.bf16.mxu0 0
        %3303 = vmatmul.mubr.bf16.gmra.mrb[0].mxu0 %v3105
        %v3304 = vpop.f32.mrb[0].mxu0
        %v3305 = vadd.f32 0.0, %v3304
        %v3306 = vpop.f32.mrb[0].mxu0
        %v3307 = vpop.f32.mrb[0].mxu0
        %v3308 = vadd.f32 0.0, %v3307
        %v3309 = vpop.f32.mrb[0].mxu0
        %3310 = vmatprep.mubr.bf16.mxu0 0
        %3311 = vmatmul.mubr.bf16.gmra.mrb[0].mxu0 %v3106
        %v3312 = vpop.f32.mrb[0].mxu0
        %v3313 = vadd.f32 0.0, %v3312
        %v3314 = vpop.f32.mrb[0].mxu0
        %v3315 = vpop.f32.mrb[0].mxu0
        %v3316 = vadd.f32 0.0, %v3315
        %v3317 = vpop.f32.mrb[0].mxu0
        %3318 = vmatprep.mubr.bf16.mxu0 0
        %3319 = vmatmul.mubr.bf16.gmra.mrb[0].mxu0 %v3107
        %v3320 = vpop.f32.mrb[0].mxu0
        %v3321 = vadd.f32 0.0, %v3320
        %v3322 = vpop.f32.mrb[0].mxu0
        %v3323 = vpop.f32.mrb[0].mxu0
        %v3324 = vadd.f32 0.0, %v3323
        %v3325 = vpop.f32.mrb[0].mxu0
        %3326 = vmatprep.mubr.bf16.mxu0 0
        %3327 = vmatmul.mubr.bf16.gmra.mrb[0].mxu0 %v3108
        %v3328 = vpop.f32.mrb[0].mxu0
        %v3329 = vadd.f32 0.0, %v3328
        %v3330 = vpop.f32.mrb[0].mxu0
        %v3331 = vpop.f32.mrb[0].mxu0
        %v3332 = vadd.f32 0.0, %v3331
        %v3333 = vpop.f32.mrb[0].mxu0
        %3334 = vdwg.mxu0
        %v3335 = vadd.f32 %v3029, %v3209
        %v3336 = vadd.f32 %v3030, %v3212
        %v3337 = vadd.f32 %v3031, %v3217
        %v3338 = vadd.f32 %v3032, %v3220
        %v3339 = vadd.f32 %v3033, %v3225
        %v3340 = vadd.f32 %v3034, %v3228
        %v3341 = vadd.f32 %v3035, %v3233
        %v3342 = vadd.f32 %v3036, %v3236
        %v3343 = vadd.f32 %v3037, %v3241
        %v3344 = vadd.f32 %v3038, %v3244
        %v3345 = vadd.f32 %v3039, %v3249
        %v3346 = vadd.f32 %v3040, %v3252
        %v3347 = vadd.f32 %v3041, %v3257
        %v3348 = vadd.f32 %v3042, %v3260
        %v3349 = vadd.f32 %v3043, %v3265
        %v3350 = vadd.f32 %v3044, %v3268
        %v3351 = vadd.f32 %v3045, %v3273
        %v3352 = vadd.f32 %v3046, %v3276
        %v3353 = vadd.f32 %v3047, %v3281
        %v3354 = vadd.f32 %v3048, %v3284
        %v3355 = vadd.f32 %v3049, %v3289
        %v3356 = vadd.f32 %v3050, %v3292
        %v3357 = vadd.f32 %v3051, %v3297
        %v3358 = vadd.f32 %v3052, %v3300
        %v3359 = vadd.f32 %v3053, %v3305
        %v3360 = vadd.f32 %v3054, %v3308
        %v3361 = vadd.f32 %v3055, %v3313
        %v3362 = vadd.f32 %v3056, %v3316
        %v3363 = vadd.f32 %v3057, %v3321
        %v3364 = vadd.f32 %v3058, %v3324
        %v3365 = vadd.f32 %v3059, %v3329
        %v3366 = vadd.f32 %v3060, %v3332
        %v3367 = vld [vmem:[%s2754 + $0x2] sm:$0xff]
        %v3368 = vld [vmem:[%s2754 + $0xa] sm:$0xff]
        %v3369 = vld [vmem:[%s2754 + $0x1a] sm:$0xff]
        %v3370 = vld [vmem:[%s2754 + $0x22] sm:$0xff]
        %v3371 = vld [vmem:[%s2754 + $0x32] sm:$0xff]
        %v3372 = vld [vmem:[%s2754 + $0x3a] sm:$0xff]
        %v3373 = vld [vmem:[%s2754 + $0x4a] sm:$0xff]
        %v3374 = vld [vmem:[%s2754 + $0x52] sm:$0xff]
        %v3375 = vld [vmem:[%s2754 + $0x62] sm:$0xff]
        %v3376 = vld [vmem:[%s2754 + $0x6a] sm:$0xff]
        %v3377 = vld [vmem:[%s2754 + $0x7a] sm:$0xff]
        %v3378 = vld [vmem:[%s2754 + $0x82] sm:$0xff]
        %v3379 = vld [vmem:[%s2754 + $0x92] sm:$0xff]
        %v3380 = vld [vmem:[%s2754 + $0x9a] sm:$0xff]
        %v3381 = vld [vmem:[%s2754 + $0xaa] sm:$0xff]
        %v3382 = vld [vmem:[%s2754 + $0xb2] sm:$0xff]
        %v3383 = vld [vmem:[%s2754 + $0xc2] sm:$0xff]
        %v3384 = vld [vmem:[%s2754 + $0xca] sm:$0xff]
        %v3385 = vld [vmem:[%s2754 + $0xda] sm:$0xff]
        %v3386 = vld [vmem:[%s2754 + $0xe2] sm:$0xff]
        %v3387 = vld [vmem:[%s2754 + $0xf2] sm:$0xff]
        %v3388 = vld [vmem:[%s2754 + $0xfa] sm:$0xff]
        %v3389 = vld [vmem:[%s2754 + $0x10a] sm:$0xff]
        %v3390 = vld [vmem:[%s2754 + $0x112] sm:$0xff]
        %v3391 = vld [vmem:[%s2754 + $0x122] sm:$0xff]
        %v3392 = vld [vmem:[%s2754 + $0x12a] sm:$0xff]
        %v3393 = vld [vmem:[%s2754 + $0x13a] sm:$0xff]
        %v3394 = vld [vmem:[%s2754 + $0x142] sm:$0xff]
        %v3395 = vld [vmem:[%s2754 + $0x152] sm:$0xff]
        %v3396 = vld [vmem:[%s2754 + $0x15a] sm:$0xff]
        %v3397 = vld [vmem:[%s2754 + $0x16a] sm:$0xff]
        %v3398 = vld [vmem:[%s2754 + $0x172] sm:$0xff]
        %v3399 = vpack.c.bf16 %v3368, %v3367
        %v3400 = vpack.c.bf16 %v3370, %v3369
        %v3401 = vpack.c.bf16 %v3372, %v3371
        %v3402 = vpack.c.bf16 %v3374, %v3373
        %v3403 = vpack.c.bf16 %v3376, %v3375
        %v3404 = vpack.c.bf16 %v3378, %v3377
        %v3405 = vpack.c.bf16 %v3380, %v3379
        %v3406 = vpack.c.bf16 %v3382, %v3381
        %v3407 = vpack.c.bf16 %v3384, %v3383
        %v3408 = vpack.c.bf16 %v3386, %v3385
        %v3409 = vpack.c.bf16 %v3388, %v3387
        %v3410 = vpack.c.bf16 %v3390, %v3389
        %v3411 = vpack.c.bf16 %v3392, %v3391
        %v3412 = vpack.c.bf16 %v3394, %v3393
        %v3413 = vpack.c.bf16 %v3396, %v3395
        %v3414 = vpack.c.bf16 %v3398, %v3397
        %s3415 = scalar_lea.vmem [#allocation8], 512
        %v3416 = vld [vmem:[%s3415] sm:$0xf]
        %v3417 = vld [vmem:[%s3415 + $0x4] sm:$0xf]
        %v3418 = vld [vmem:[%s3415 + $0x8] sm:$0xf]
        %v3419 = vld [vmem:[%s3415 + $0xc] sm:$0xf]
        %v3420 = vld [vmem:[%s3415 + $0x10] sm:$0xf]
        %v3421 = vld [vmem:[%s3415 + $0x14] sm:$0xf]
        %v3422 = vld [vmem:[%s3415 + $0x18] sm:$0xf]
        %v3423 = vld [vmem:[%s3415 + $0x1c] sm:$0xf]
        %v3424 = vld [vmem:[%s3415 + $0x20] sm:$0xf]
        %v3425 = vld [vmem:[%s3415 + $0x24] sm:$0xf]
        %v3426 = vld [vmem:[%s3415 + $0x28] sm:$0xf]
        %v3427 = vld [vmem:[%s3415 + $0x2c] sm:$0xf]
        %v3428 = vld [vmem:[%s3415 + $0x30] sm:$0xf]
        %v3429 = vld [vmem:[%s3415 + $0x34] sm:$0xf]
        %v3430 = vld [vmem:[%s3415 + $0x38] sm:$0xf]
        %v3431 = vld [vmem:[%s3415 + $0x3c] sm:$0xf]
        %v3448 = vunpack.c.l.b16 %v3416
        %v3449 = vunpack.c.l.b16 %v3417
        %v3450 = vunpack.c.l.b16 %v3418
        %v3451 = vunpack.c.l.b16 %v3419
        %v3452 = vunpack.c.l.b16 %v3420
        %v3453 = vunpack.c.l.b16 %v3421
        %v3454 = vunpack.c.l.b16 %v3422
        %v3455 = vunpack.c.l.b16 %v3423
        %v3456 = vunpack.c.l.b16 %v3424
        %v3457 = vunpack.c.l.b16 %v3425
        %v3458 = vunpack.c.l.b16 %v3426
        %v3459 = vunpack.c.l.b16 %v3427
        %v3460 = vunpack.c.l.b16 %v3428
        %v3461 = vunpack.c.l.b16 %v3429
        %v3462 = vunpack.c.l.b16 %v3430
        %v3463 = vunpack.c.l.b16 %v3431
        %v3464 = vpack.c.b16 %v3449, %v3448
        %v3465 = vpack.c.b16 %v3451, %v3450
        %v3466 = vpack.c.b16 %v3453, %v3452
        %v3467 = vpack.c.b16 %v3455, %v3454
        %v3468 = vpack.c.b16 %v3457, %v3456
        %v3469 = vpack.c.b16 %v3459, %v3458
        %v3470 = vpack.c.b16 %v3461, %v3460
        %v3471 = vpack.c.b16 %v3463, %v3462
        %3480 = vmatprep.subr.bf16.mxu0 0
        %3481 = vmatpush1.bf16.msra.mxu0 %v3464
        %3482 = vmatprep.subr.bf16.mxu0 0
        %3483 = vmatpush1.bf16.msra.mxu0 %v3465
        %3484 = vmatprep.subr.bf16.mxu0 0
        %3485 = vmatpush1.bf16.msra.mxu0 %v3466
        %3486 = vmatprep.subr.bf16.mxu0 0
        %3487 = vmatpush1.bf16.msra.mxu0 %v3467
        %3488 = vmatprep.subr.bf16.mxu0 0
        %3489 = vmatpush1.bf16.msra.mxu0 %v3468
        %3490 = vmatprep.subr.bf16.mxu0 0
        %3491 = vmatpush1.bf16.msra.mxu0 %v3469
        %3492 = vmatprep.subr.bf16.mxu0 0
        %3493 = vmatpush1.bf16.msra.mxu0 %v3470
        %3494 = vmatprep.subr.bf16.mxu0 0
        %3495 = vmatpush1.bf16.msra.mxu0 %v3471
        %3496 = vmatprep.subr.bf16.mxu0 0
        %3497 = vmatpush1.bf16.msra.mxu0 0
        %3498 = vmatprep.subr.bf16.mxu0 0
        %3499 = vmatpush1.bf16.msra.mxu0 0
        %3500 = vmatprep.subr.bf16.mxu0 0
        %3501 = vmatpush1.bf16.msra.mxu0 0
        %3502 = vmatprep.subr.bf16.mxu0 0
        %3503 = vmatpush1.bf16.msra.mxu0 0
        %3504 = vmatprep.subr.bf16.mxu0 0
        %3505 = vmatpush1.bf16.msra.mxu0 0
        %3506 = vmatprep.subr.bf16.mxu0 0
        %3507 = vmatpush1.bf16.msra.mxu0 0
        %3508 = vmatprep.subr.bf16.mxu0 0
        %3509 = vmatpush1.bf16.msra.mxu0 0
        %3510 = vmatprep.subr.bf16.mxu0 0
        %3511 = vmatpush1.bf16.msra.mxu0 0
        %3512 = vmatprep.mubr.bf16.mxu0 0
        %3513 = vmatmul.mubr.bf16.gmra.mrb[0].mxu0 %v3399
        %v3514 = vpop.f32.mrb[0].mxu0
        %v3515 = vadd.f32 0.0, %v3514
        %v3516 = vpop.f32.mrb[0].mxu0
        %v3517 = vpop.f32.mrb[0].mxu0
        %v3518 = vadd.f32 0.0, %v3517
        %v3519 = vpop.f32.mrb[0].mxu0
        %3520 = vmatprep.mubr.bf16.mxu0 0
        %3521 = vmatmul.mubr.bf16.gmra.mrb[0].mxu0 %v3400
        %v3522 = vpop.f32.mrb[0].mxu0
        %v3523 = vadd.f32 0.0, %v3522
        %v3524 = vpop.f32.mrb[0].mxu0
        %v3525 = vpop.f32.mrb[0].mxu0
        %v3526 = vadd.f32 0.0, %v3525
        %v3527 = vpop.f32.mrb[0].mxu0
        %3528 = vmatprep.mubr.bf16.mxu0 0
        %3529 = vmatmul.mubr.bf16.gmra.mrb[0].mxu0 %v3401
        %v3530 = vpop.f32.mrb[0].mxu0
        %v3531 = vadd.f32 0.0, %v3530
        %v3532 = vpop.f32.mrb[0].mxu0
        %v3533 = vpop.f32.mrb[0].mxu0
        %v3534 = vadd.f32 0.0, %v3533
        %v3535 = vpop.f32.mrb[0].mxu0
        %3536 = vmatprep.mubr.bf16.mxu0 0
        %3537 = vmatmul.mubr.bf16.gmra.mrb[0].mxu0 %v3402
        %v3538 = vpop.f32.mrb[0].mxu0
        %v3539 = vadd.f32 0.0, %v3538
        %v3540 = vpop.f32.mrb[0].mxu0
        %v3541 = vpop.f32.mrb[0].mxu0
        %v3542 = vadd.f32 0.0, %v3541
        %v3543 = vpop.f32.mrb[0].mxu0
        %3544 = vmatprep.mubr.bf16.mxu0 0
        %3545 = vmatmul.mubr.bf16.gmra.mrb[0].mxu0 %v3403
        %v3546 = vpop.f32.mrb[0].mxu0
        %v3547 = vadd.f32 0.0, %v3546
        %v3548 = vpop.f32.mrb[0].mxu0
        %v3549 = vpop.f32.mrb[0].mxu0
        %v3550 = vadd.f32 0.0, %v3549
        %v3551 = vpop.f32.mrb[0].mxu0
        %3552 = vmatprep.mubr.bf16.mxu0 0
        %3553 = vmatmul.mubr.bf16.gmra.mrb[0].mxu0 %v3404
        %v3554 = vpop.f32.mrb[0].mxu0
        %v3555 = vadd.f32 0.0, %v3554
        %v3556 = vpop.f32.mrb[0].mxu0
        %v3557 = vpop.f32.mrb[0].mxu0
        %v3558 = vadd.f32 0.0, %v3557
        %v3559 = vpop.f32.mrb[0].mxu0
        %3560 = vmatprep.mubr.bf16.mxu0 0
        %3561 = vmatmul.mubr.bf16.gmra.mrb[0].mxu0 %v3405
        %v3562 = vpop.f32.mrb[0].mxu0
        %v3563 = vadd.f32 0.0, %v3562
        %v3564 = vpop.f32.mrb[0].mxu0
        %v3565 = vpop.f32.mrb[0].mxu0
        %v3566 = vadd.f32 0.0, %v3565
        %v3567 = vpop.f32.mrb[0].mxu0
        %3568 = vmatprep.mubr.bf16.mxu0 0
        %3569 = vmatmul.mubr.bf16.gmra.mrb[0].mxu0 %v3406
        %v3570 = vpop.f32.mrb[0].mxu0
        %v3571 = vadd.f32 0.0, %v3570
        %v3572 = vpop.f32.mrb[0].mxu0
        %v3573 = vpop.f32.mrb[0].mxu0
        %v3574 = vadd.f32 0.0, %v3573
        %v3575 = vpop.f32.mrb[0].mxu0
        %3576 = vmatprep.mubr.bf16.mxu0 0
        %3577 = vmatmul.mubr.bf16.gmra.mrb[0].mxu0 %v3407
        %v3578 = vpop.f32.mrb[0].mxu0
        %v3579 = vadd.f32 0.0, %v3578
        %v3580 = vpop.f32.mrb[0].mxu0
        %v3581 = vpop.f32.mrb[0].mxu0
        %v3582 = vadd.f32 0.0, %v3581
        %v3583 = vpop.f32.mrb[0].mxu0
        %3584 = vmatprep.mubr.bf16.mxu0 0
        %3585 = vmatmul.mubr.bf16.gmra.mrb[0].mxu0 %v3408
        %v3586 = vpop.f32.mrb[0].mxu0
        %v3587 = vadd.f32 0.0, %v3586
        %v3588 = vpop.f32.mrb[0].mxu0
        %v3589 = vpop.f32.mrb[0].mxu0
        %v3590 = vadd.f32 0.0, %v3589
        %v3591 = vpop.f32.mrb[0].mxu0
        %3592 = vmatprep.mubr.bf16.mxu0 0
        %3593 = vmatmul.mubr.bf16.gmra.mrb[0].mxu0 %v3409
        %v3594 = vpop.f32.mrb[0].mxu0
        %v3595 = vadd.f32 0.0, %v3594
        %v3596 = vpop.f32.mrb[0].mxu0
        %v3597 = vpop.f32.mrb[0].mxu0
        %v3598 = vadd.f32 0.0, %v3597
        %v3599 = vpop.f32.mrb[0].mxu0
        %3600 = vmatprep.mubr.bf16.mxu0 0
        %3601 = vmatmul.mubr.bf16.gmra.mrb[0].mxu0 %v3410
        %v3602 = vpop.f32.mrb[0].mxu0
        %v3603 = vadd.f32 0.0, %v3602
        %v3604 = vpop.f32.mrb[0].mxu0
        %v3605 = vpop.f32.mrb[0].mxu0
        %v3606 = vadd.f32 0.0, %v3605
        %v3607 = vpop.f32.mrb[0].mxu0
        %3608 = vmatprep.mubr.bf16.mxu0 0
        %3609 = vmatmul.mubr.bf16.gmra.mrb[0].mxu0 %v3411
        %v3610 = vpop.f32.mrb[0].mxu0
        %v3611 = vadd.f32 0.0, %v3610
        %v3612 = vpop.f32.mrb[0].mxu0
        %v3613 = vpop.f32.mrb[0].mxu0
        %v3614 = vadd.f32 0.0, %v3613
        %v3615 = vpop.f32.mrb[0].mxu0
        %3616 = vmatprep.mubr.bf16.mxu0 0
        %3617 = vmatmul.mubr.bf16.gmra.mrb[0].mxu0 %v3412
        %v3618 = vpop.f32.mrb[0].mxu0
        %v3619 = vadd.f32 0.0, %v3618
        %v3620 = vpop.f32.mrb[0].mxu0
        %v3621 = vpop.f32.mrb[0].mxu0
        %v3622 = vadd.f32 0.0, %v3621
        %v3623 = vpop.f32.mrb[0].mxu0
        %3624 = vmatprep.mubr.bf16.mxu0 0
        %3625 = vmatmul.mubr.bf16.gmra.mrb[0].mxu0 %v3413
        %v3626 = vpop.f32.mrb[0].mxu0
        %v3627 = vadd.f32 0.0, %v3626
        %v3628 = vpop.f32.mrb[0].mxu0
        %v3629 = vpop.f32.mrb[0].mxu0
        %v3630 = vadd.f32 0.0, %v3629
        %v3631 = vpop.f32.mrb[0].mxu0
        %3632 = vmatprep.mubr.bf16.mxu0 0
        %3633 = vmatmul.mubr.bf16.gmra.mrb[0].mxu0 %v3414
        %v3634 = vpop.f32.mrb[0].mxu0
        %v3635 = vadd.f32 0.0, %v3634
        %v3636 = vpop.f32.mrb[0].mxu0
        %v3637 = vpop.f32.mrb[0].mxu0
        %v3638 = vadd.f32 0.0, %v3637
        %v3639 = vpop.f32.mrb[0].mxu0
        %3640 = vdwg.mxu0
        %v3641 = vadd.f32 %v3335, %v3515
        %v3642 = vadd.f32 %v3336, %v3518
        %v3643 = vadd.f32 %v3337, %v3523
        %v3644 = vadd.f32 %v3338, %v3526
        %v3645 = vadd.f32 %v3339, %v3531
        %v3646 = vadd.f32 %v3340, %v3534
        %v3647 = vadd.f32 %v3341, %v3539
        %v3648 = vadd.f32 %v3342, %v3542
        %v3649 = vadd.f32 %v3343, %v3547
        %v3650 = vadd.f32 %v3344, %v3550
        %v3651 = vadd.f32 %v3345, %v3555
        %v3652 = vadd.f32 %v3346, %v3558
        %v3653 = vadd.f32 %v3347, %v3563
        %v3654 = vadd.f32 %v3348, %v3566
        %v3655 = vadd.f32 %v3349, %v3571
        %v3656 = vadd.f32 %v3350, %v3574
        %v3657 = vadd.f32 %v3351, %v3579
        %v3658 = vadd.f32 %v3352, %v3582
        %v3659 = vadd.f32 %v3353, %v3587
        %v3660 = vadd.f32 %v3354, %v3590
        %v3661 = vadd.f32 %v3355, %v3595
        %v3662 = vadd.f32 %v3356, %v3598
        %v3663 = vadd.f32 %v3357, %v3603
        %v3664 = vadd.f32 %v3358, %v3606
        %v3665 = vadd.f32 %v3359, %v3611
        %v3666 = vadd.f32 %v3360, %v3614
        %v3667 = vadd.f32 %v3361, %v3619
        %v3668 = vadd.f32 %v3362, %v3622
        %v3669 = vadd.f32 %v3363, %v3627
        %v3670 = vadd.f32 %v3364, %v3630
        %v3671 = vadd.f32 %v3365, %v3635
        %v3672 = vadd.f32 %v3366, %v3638
        %v3674 = vlaneseq
        %v3675 = vshrl.u32 %v3674, 7
        %v3676 = vsub.s32 0, %v3675
        %v3677 = vrot.slane %v977, %v3676
        %v3679 = vmul.f32 %v3641, %v3677
        %v3680 = vmul.f32 %v3642, %v3677
        %v3681 = vmul.f32 %v3643, %v3677
        %v3682 = vmul.f32 %v3644, %v3677
        %v3683 = vmul.f32 %v3645, %v3677
        %v3684 = vmul.f32 %v3646, %v3677
        %v3685 = vmul.f32 %v3647, %v3677
        %v3686 = vmul.f32 %v3648, %v3677
        %v3687 = vmul.f32 %v3649, %v3677
        %v3688 = vmul.f32 %v3650, %v3677
        %v3689 = vmul.f32 %v3651, %v3677
        %v3690 = vmul.f32 %v3652, %v3677
        %v3691 = vmul.f32 %v3653, %v3677
        %v3692 = vmul.f32 %v3654, %v3677
        %v3693 = vmul.f32 %v3655, %v3677
        %v3694 = vmul.f32 %v3656, %v3677
        %v3695 = vmul.f32 %v3657, %v3677
        %v3696 = vmul.f32 %v3658, %v3677
        %v3697 = vmul.f32 %v3659, %v3677
        %v3698 = vmul.f32 %v3660, %v3677
        %v3699 = vmul.f32 %v3661, %v3677
        %v3700 = vmul.f32 %v3662, %v3677
        %v3701 = vmul.f32 %v3663, %v3677
        %v3702 = vmul.f32 %v3664, %v3677
        %v3703 = vmul.f32 %v3665, %v3677
        %v3704 = vmul.f32 %v3666, %v3677
        %v3705 = vmul.f32 %v3667, %v3677
        %v3706 = vmul.f32 %v3668, %v3677
        %v3707 = vmul.f32 %v3669, %v3677
        %v3708 = vmul.f32 %v3670, %v3677
        %v3709 = vmul.f32 %v3671, %v3677
        %v3710 = vmul.f32 %v3672, %v3677
        %v3712 = vlaneseq
        %v3713 = vshrl.u32 %v3712, 7
        %v3714 = vsub.s32 0, %v3713
        %v3715 = vrot.slane %v978, %v3714
        %v3717 = vadd.f32 %v3679, %v3715
        %v3718 = vadd.f32 %v3680, %v3715
        %v3719 = vadd.f32 %v3681, %v3715
        %v3720 = vadd.f32 %v3682, %v3715
        %v3721 = vadd.f32 %v3683, %v3715
        %v3722 = vadd.f32 %v3684, %v3715
        %v3723 = vadd.f32 %v3685, %v3715
        %v3724 = vadd.f32 %v3686, %v3715
        %v3725 = vadd.f32 %v3687, %v3715
        %v3726 = vadd.f32 %v3688, %v3715
        %v3727 = vadd.f32 %v3689, %v3715
        %v3728 = vadd.f32 %v3690, %v3715
        %v3729 = vadd.f32 %v3691, %v3715
        %v3730 = vadd.f32 %v3692, %v3715
        %v3731 = vadd.f32 %v3693, %v3715
        %v3732 = vadd.f32 %v3694, %v3715
        %v3733 = vadd.f32 %v3695, %v3715
        %v3734 = vadd.f32 %v3696, %v3715
        %v3735 = vadd.f32 %v3697, %v3715
        %v3736 = vadd.f32 %v3698, %v3715
        %v3737 = vadd.f32 %v3699, %v3715
        %v3738 = vadd.f32 %v3700, %v3715
        %v3739 = vadd.f32 %v3701, %v3715
        %v3740 = vadd.f32 %v3702, %v3715
        %v3741 = vadd.f32 %v3703, %v3715
        %v3742 = vadd.f32 %v3704, %v3715
        %v3743 = vadd.f32 %v3705, %v3715
        %v3744 = vadd.f32 %v3706, %v3715
        %v3745 = vadd.f32 %v3707, %v3715
        %v3746 = vadd.f32 %v3708, %v3715
        %v3747 = vadd.f32 %v3709, %v3715
        %v3748 = vadd.f32 %v3710, %v3715
        %v3749 = vmax.f32 %v3717, 0.0
        %v3750 = vmax.f32 %v3718, 0.0
        %v3751 = vmax.f32 %v3719, 0.0
        %v3752 = vmax.f32 %v3720, 0.0
        %v3753 = vmax.f32 %v3721, 0.0
        %v3754 = vmax.f32 %v3722, 0.0
        %v3755 = vmax.f32 %v3723, 0.0
        %v3756 = vmax.f32 %v3724, 0.0
        %v3757 = vmax.f32 %v3725, 0.0
        %v3758 = vmax.f32 %v3726, 0.0
        %v3759 = vmax.f32 %v3727, 0.0
        %v3760 = vmax.f32 %v3728, 0.0
        %v3761 = vmax.f32 %v3729, 0.0
        %v3762 = vmax.f32 %v3730, 0.0
        %v3763 = vmax.f32 %v3731, 0.0
        %v3764 = vmax.f32 %v3732, 0.0
        %v3765 = vmax.f32 %v3733, 0.0
        %v3766 = vmax.f32 %v3734, 0.0
        %v3767 = vmax.f32 %v3735, 0.0
        %v3768 = vmax.f32 %v3736, 0.0
        %v3769 = vmax.f32 %v3737, 0.0
        %v3770 = vmax.f32 %v3738, 0.0
        %v3771 = vmax.f32 %v3739, 0.0
        %v3772 = vmax.f32 %v3740, 0.0
        %v3773 = vmax.f32 %v3741, 0.0
        %v3774 = vmax.f32 %v3742, 0.0
        %v3775 = vmax.f32 %v3743, 0.0
        %v3776 = vmax.f32 %v3744, 0.0
        %v3777 = vmax.f32 %v3745, 0.0
        %v3778 = vmax.f32 %v3746, 0.0
        %v3779 = vmax.f32 %v3747, 0.0
        %v3780 = vmax.f32 %v3748, 0.0
        %v3781 = vpack.c.bf16 %v3750, %v3749
        %v3782 = vpack.c.bf16 %v3752, %v3751
        %v3783 = vpack.c.bf16 %v3754, %v3753
        %v3784 = vpack.c.bf16 %v3756, %v3755
        %v3785 = vpack.c.bf16 %v3758, %v3757
        %v3786 = vpack.c.bf16 %v3760, %v3759
        %v3787 = vpack.c.bf16 %v3762, %v3761
        %v3788 = vpack.c.bf16 %v3764, %v3763
        %v3789 = vpack.c.bf16 %v3766, %v3765
        %v3790 = vpack.c.bf16 %v3768, %v3767
        %v3791 = vpack.c.bf16 %v3770, %v3769
        %v3792 = vpack.c.bf16 %v3772, %v3771
        %v3793 = vpack.c.bf16 %v3774, %v3773
        %v3794 = vpack.c.bf16 %v3776, %v3775
        %v3795 = vpack.c.bf16 %v3778, %v3777
        %v3796 = vpack.c.bf16 %v3780, %v3779
        %v3797 = vld [vmem:[#allocation9] sm:$0xf]
        %v3798 = vld [vmem:[#allocation9 + $0x4] sm:$0xf]
        %v3799 = vld [vmem:[#allocation9 + $0x8] sm:$0xf]
        %v3800 = vld [vmem:[#allocation9 + $0xc] sm:$0xf]
        %v3801 = vld [vmem:[#allocation9 + $0x10] sm:$0xf]
        %v3802 = vld [vmem:[#allocation9 + $0x14] sm:$0xf]
        %v3803 = vld [vmem:[#allocation9 + $0x18] sm:$0xf]
        %v3804 = vld [vmem:[#allocation9 + $0x1c] sm:$0xf]
        %v3805 = vld [vmem:[#allocation9 + $0x20] sm:$0xf]
        %v3806 = vld [vmem:[#allocation9 + $0x24] sm:$0xf]
        %v3807 = vld [vmem:[#allocation9 + $0x28] sm:$0xf]
        %v3808 = vld [vmem:[#allocation9 + $0x2c] sm:$0xf]
        %v3809 = vld [vmem:[#allocation9 + $0x30] sm:$0xf]
        %v3810 = vld [vmem:[#allocation9 + $0x34] sm:$0xf]
        %v3811 = vld [vmem:[#allocation9 + $0x38] sm:$0xf]
        %v3812 = vld [vmem:[#allocation9 + $0x3c] sm:$0xf]
        %v3829 = vunpack.c.l.b16 %v3797
        %v3830 = vunpack.c.l.b16 %v3798
        %v3831 = vunpack.c.l.b16 %v3799
        %v3832 = vunpack.c.l.b16 %v3800
        %v3833 = vunpack.c.l.b16 %v3801
        %v3834 = vunpack.c.l.b16 %v3802
        %v3835 = vunpack.c.l.b16 %v3803
        %v3836 = vunpack.c.l.b16 %v3804
        %v3837 = vunpack.c.l.b16 %v3805
        %v3838 = vunpack.c.l.b16 %v3806
        %v3839 = vunpack.c.l.b16 %v3807
        %v3840 = vunpack.c.l.b16 %v3808
        %v3841 = vunpack.c.l.b16 %v3809
        %v3842 = vunpack.c.l.b16 %v3810
        %v3843 = vunpack.c.l.b16 %v3811
        %v3844 = vunpack.c.l.b16 %v3812
        %v3845 = vpack.c.b16 %v3830, %v3829
        %v3846 = vpack.c.b16 %v3832, %v3831
        %v3847 = vpack.c.b16 %v3834, %v3833
        %v3848 = vpack.c.b16 %v3836, %v3835
        %v3849 = vpack.c.b16 %v3838, %v3837
        %v3850 = vpack.c.b16 %v3840, %v3839
        %v3851 = vpack.c.b16 %v3842, %v3841
        %v3852 = vpack.c.b16 %v3844, %v3843
        %3861 = vmatprep.subr.bf16.mxu0 0
        %3862 = vmatpush1.bf16.msra.mxu0 %v3845
        %3863 = vmatprep.subr.bf16.mxu0 0
        %3864 = vmatpush1.bf16.msra.mxu0 %v3846
        %3865 = vmatprep.subr.bf16.mxu0 0
        %3866 = vmatpush1.bf16.msra.mxu0 %v3847
        %3867 = vmatprep.subr.bf16.mxu0 0
        %3868 = vmatpush1.bf16.msra.mxu0 %v3848
        %3869 = vmatprep.subr.bf16.mxu0 0
        %3870 = vmatpush1.bf16.msra.mxu0 %v3849
        %3871 = vmatprep.subr.bf16.mxu0 0
        %3872 = vmatpush1.bf16.msra.mxu0 %v3850
        %3873 = vmatprep.subr.bf16.mxu0 0
        %3874 = vmatpush1.bf16.msra.mxu0 %v3851
        %3875 = vmatprep.subr.bf16.mxu0 0
        %3876 = vmatpush1.bf16.msra.mxu0 %v3852
        %3877 = vmatprep.subr.bf16.mxu0 0
        %3878 = vmatpush1.bf16.msra.mxu0 0
        %3879 = vmatprep.subr.bf16.mxu0 0
        %3880 = vmatpush1.bf16.msra.mxu0 0
        %3881 = vmatprep.subr.bf16.mxu0 0
        %3882 = vmatpush1.bf16.msra.mxu0 0
        %3883 = vmatprep.subr.bf16.mxu0 0
        %3884 = vmatpush1.bf16.msra.mxu0 0
        %3885 = vmatprep.subr.bf16.mxu0 0
        %3886 = vmatpush1.bf16.msra.mxu0 0
        %3887 = vmatprep.subr.bf16.mxu0 0
        %3888 = vmatpush1.bf16.msra.mxu0 0
        %3889 = vmatprep.subr.bf16.mxu0 0
        %3890 = vmatpush1.bf16.msra.mxu0 0
        %3891 = vmatprep.subr.bf16.mxu0 0
        %3892 = vmatpush1.bf16.msra.mxu0 0
        %3893 = vmatprep.mubr.bf16.mxu0 0
        %3894 = vmatmul.mubr.bf16.gmra.mrb[0].mxu0 %v3781
        %v3895 = vpop.f32.mrb[0].mxu0
        %v3896 = vadd.f32 0.0, %v3895
        %v3897 = vpop.f32.mrb[0].mxu0
        %v3898 = vpop.f32.mrb[0].mxu0
        %v3899 = vadd.f32 0.0, %v3898
        %v3900 = vpop.f32.mrb[0].mxu0
        %3901 = vmatprep.mubr.bf16.mxu0 0
        %3902 = vmatmul.mubr.bf16.gmra.mrb[0].mxu0 %v3782
        %v3903 = vpop.f32.mrb[0].mxu0
        %v3904 = vadd.f32 0.0, %v3903
        %v3905 = vpop.f32.mrb[0].mxu0
        %v3906 = vpop.f32.mrb[0].mxu0
        %v3907 = vadd.f32 0.0, %v3906
        %v3908 = vpop.f32.mrb[0].mxu0
        %3909 = vmatprep.mubr.bf16.mxu0 0
        %3910 = vmatmul.mubr.bf16.gmra.mrb[0].mxu0 %v3783
        %v3911 = vpop.f32.mrb[0].mxu0
        %v3912 = vadd.f32 0.0, %v3911
        %v3913 = vpop.f32.mrb[0].mxu0
        %v3914 = vpop.f32.mrb[0].mxu0
        %v3915 = vadd.f32 0.0, %v3914
        %v3916 = vpop.f32.mrb[0].mxu0
        %3917 = vmatprep.mubr.bf16.mxu0 0
        %3918 = vmatmul.mubr.bf16.gmra.mrb[0].mxu0 %v3784
        %v3919 = vpop.f32.mrb[0].mxu0
        %v3920 = vadd.f32 0.0, %v3919
        %v3921 = vpop.f32.mrb[0].mxu0
        %v3922 = vpop.f32.mrb[0].mxu0
        %v3923 = vadd.f32 0.0, %v3922
        %v3924 = vpop.f32.mrb[0].mxu0
        %3925 = vmatprep.mubr.bf16.mxu0 0
        %3926 = vmatmul.mubr.bf16.gmra.mrb[0].mxu0 %v3785
        %v3927 = vpop.f32.mrb[0].mxu0
        %v3928 = vadd.f32 0.0, %v3927
        %v3929 = vpop.f32.mrb[0].mxu0
        %v3930 = vpop.f32.mrb[0].mxu0
        %v3931 = vadd.f32 0.0, %v3930
        %v3932 = vpop.f32.mrb[0].mxu0
        %3933 = vmatprep.mubr.bf16.mxu0 0
        %3934 = vmatmul.mubr.bf16.gmra.mrb[0].mxu0 %v3786
        %v3935 = vpop.f32.mrb[0].mxu0
        %v3936 = vadd.f32 0.0, %v3935
        %v3937 = vpop.f32.mrb[0].mxu0
        %v3938 = vpop.f32.mrb[0].mxu0
        %v3939 = vadd.f32 0.0, %v3938
        %v3940 = vpop.f32.mrb[0].mxu0
        %3941 = vmatprep.mubr.bf16.mxu0 0
        %3942 = vmatmul.mubr.bf16.gmra.mrb[0].mxu0 %v3787
        %v3943 = vpop.f32.mrb[0].mxu0
        %v3944 = vadd.f32 0.0, %v3943
        %v3945 = vpop.f32.mrb[0].mxu0
        %v3946 = vpop.f32.mrb[0].mxu0
        %v3947 = vadd.f32 0.0, %v3946
        %v3948 = vpop.f32.mrb[0].mxu0
        %3949 = vmatprep.mubr.bf16.mxu0 0
        %3950 = vmatmul.mubr.bf16.gmra.mrb[0].mxu0 %v3788
        %v3951 = vpop.f32.mrb[0].mxu0
        %v3952 = vadd.f32 0.0, %v3951
        %v3953 = vpop.f32.mrb[0].mxu0
        %v3954 = vpop.f32.mrb[0].mxu0
        %v3955 = vadd.f32 0.0, %v3954
        %v3956 = vpop.f32.mrb[0].mxu0
        %3957 = vmatprep.mubr.bf16.mxu0 0
        %3958 = vmatmul.mubr.bf16.gmra.mrb[0].mxu0 %v3789
        %v3959 = vpop.f32.mrb[0].mxu0
        %v3960 = vadd.f32 0.0, %v3959
        %v3961 = vpop.f32.mrb[0].mxu0
        %v3962 = vpop.f32.mrb[0].mxu0
        %v3963 = vadd.f32 0.0, %v3962
        %v3964 = vpop.f32.mrb[0].mxu0
        %3965 = vmatprep.mubr.bf16.mxu0 0
        %3966 = vmatmul.mubr.bf16.gmra.mrb[0].mxu0 %v3790
        %v3967 = vpop.f32.mrb[0].mxu0
        %v3968 = vadd.f32 0.0, %v3967
        %v3969 = vpop.f32.mrb[0].mxu0
        %v3970 = vpop.f32.mrb[0].mxu0
        %v3971 = vadd.f32 0.0, %v3970
        %v3972 = vpop.f32.mrb[0].mxu0
        %3973 = vmatprep.mubr.bf16.mxu0 0
        %3974 = vmatmul.mubr.bf16.gmra.mrb[0].mxu0 %v3791
        %v3975 = vpop.f32.mrb[0].mxu0
        %v3976 = vadd.f32 0.0, %v3975
        %v3977 = vpop.f32.mrb[0].mxu0
        %v3978 = vpop.f32.mrb[0].mxu0
        %v3979 = vadd.f32 0.0, %v3978
        %v3980 = vpop.f32.mrb[0].mxu0
        %3981 = vmatprep.mubr.bf16.mxu0 0
        %3982 = vmatmul.mubr.bf16.gmra.mrb[0].mxu0 %v3792
        %v3983 = vpop.f32.mrb[0].mxu0
        %v3984 = vadd.f32 0.0, %v3983
        %v3985 = vpop.f32.mrb[0].mxu0
        %v3986 = vpop.f32.mrb[0].mxu0
        %v3987 = vadd.f32 0.0, %v3986
        %v3988 = vpop.f32.mrb[0].mxu0
        %3989 = vmatprep.mubr.bf16.mxu0 0
        %3990 = vmatmul.mubr.bf16.gmra.mrb[0].mxu0 %v3793
        %v3991 = vpop.f32.mrb[0].mxu0
        %v3992 = vadd.f32 0.0, %v3991
        %v3993 = vpop.f32.mrb[0].mxu0
        %v3994 = vpop.f32.mrb[0].mxu0
        %v3995 = vadd.f32 0.0, %v3994
        %v3996 = vpop.f32.mrb[0].mxu0
        %3997 = vmatprep.mubr.bf16.mxu0 0
        %3998 = vmatmul.mubr.bf16.gmra.mrb[0].mxu0 %v3794
        %v3999 = vpop.f32.mrb[0].mxu0
        %v4000 = vadd.f32 0.0, %v3999
        %v4001 = vpop.f32.mrb[0].mxu0
        %v4002 = vpop.f32.mrb[0].mxu0
        %v4003 = vadd.f32 0.0, %v4002
        %v4004 = vpop.f32.mrb[0].mxu0
        %4005 = vmatprep.mubr.bf16.mxu0 0
        %4006 = vmatmul.mubr.bf16.gmra.mrb[0].mxu0 %v3795
        %v4007 = vpop.f32.mrb[0].mxu0
        %v4008 = vadd.f32 0.0, %v4007
        %v4009 = vpop.f32.mrb[0].mxu0
        %v4010 = vpop.f32.mrb[0].mxu0
        %v4011 = vadd.f32 0.0, %v4010
        %v4012 = vpop.f32.mrb[0].mxu0
        %4013 = vmatprep.mubr.bf16.mxu0 0
        %4014 = vmatmul.mubr.bf16.gmra.mrb[0].mxu0 %v3796
        %v4015 = vpop.f32.mrb[0].mxu0
        %v4016 = vadd.f32 0.0, %v4015
        %v4017 = vpop.f32.mrb[0].mxu0
        %v4018 = vpop.f32.mrb[0].mxu0
        %v4019 = vadd.f32 0.0, %v4018
        %v4020 = vpop.f32.mrb[0].mxu0
        %4021 = vdwg.mxu0
        %v4023 = vlaneseq
        %v4024 = vshrl.u32 %v4023, 7
        %v4025 = vsub.s32 0, %v4024
        %v4026 = vrot.slane %v979, %v4025
        %v4028 = vmul.f32 %v3896, %v4026
        %v4029 = vmul.f32 %v3899, %v4026
        %v4030 = vmul.f32 %v3904, %v4026
        %v4031 = vmul.f32 %v3907, %v4026
        %v4032 = vmul.f32 %v3912, %v4026
        %v4033 = vmul.f32 %v3915, %v4026
        %v4034 = vmul.f32 %v3920, %v4026
        %v4035 = vmul.f32 %v3923, %v4026
        %v4036 = vmul.f32 %v3928, %v4026
        %v4037 = vmul.f32 %v3931, %v4026
        %v4038 = vmul.f32 %v3936, %v4026
        %v4039 = vmul.f32 %v3939, %v4026
        %v4040 = vmul.f32 %v3944, %v4026
        %v4041 = vmul.f32 %v3947, %v4026
        %v4042 = vmul.f32 %v3952, %v4026
        %v4043 = vmul.f32 %v3955, %v4026
        %v4044 = vmul.f32 %v3960, %v4026
        %v4045 = vmul.f32 %v3963, %v4026
        %v4046 = vmul.f32 %v3968, %v4026
        %v4047 = vmul.f32 %v3971, %v4026
        %v4048 = vmul.f32 %v3976, %v4026
        %v4049 = vmul.f32 %v3979, %v4026
        %v4050 = vmul.f32 %v3984, %v4026
        %v4051 = vmul.f32 %v3987, %v4026
        %v4052 = vmul.f32 %v3992, %v4026
        %v4053 = vmul.f32 %v3995, %v4026
        %v4054 = vmul.f32 %v4000, %v4026
        %v4055 = vmul.f32 %v4003, %v4026
        %v4056 = vmul.f32 %v4008, %v4026
        %v4057 = vmul.f32 %v4011, %v4026
        %v4058 = vmul.f32 %v4016, %v4026
        %v4059 = vmul.f32 %v4019, %v4026
        %v4061 = vlaneseq
        %v4062 = vshrl.u32 %v4061, 7
        %v4063 = vsub.s32 0, %v4062
        %v4064 = vrot.slane %v980, %v4063
        %v4066 = vadd.f32 %v4028, %v4064
        %v4067 = vadd.f32 %v4029, %v4064
        %v4068 = vadd.f32 %v4030, %v4064
        %v4069 = vadd.f32 %v4031, %v4064
        %v4070 = vadd.f32 %v4032, %v4064
        %v4071 = vadd.f32 %v4033, %v4064
        %v4072 = vadd.f32 %v4034, %v4064
        %v4073 = vadd.f32 %v4035, %v4064
        %v4074 = vadd.f32 %v4036, %v4064
        %v4075 = vadd.f32 %v4037, %v4064
        %v4076 = vadd.f32 %v4038, %v4064
        %v4077 = vadd.f32 %v4039, %v4064
        %v4078 = vadd.f32 %v4040, %v4064
        %v4079 = vadd.f32 %v4041, %v4064
        %v4080 = vadd.f32 %v4042, %v4064
        %v4081 = vadd.f32 %v4043, %v4064
        %v4082 = vadd.f32 %v4044, %v4064
        %v4083 = vadd.f32 %v4045, %v4064
        %v4084 = vadd.f32 %v4046, %v4064
        %v4085 = vadd.f32 %v4047, %v4064
        %v4086 = vadd.f32 %v4048, %v4064
        %v4087 = vadd.f32 %v4049, %v4064
        %v4088 = vadd.f32 %v4050, %v4064
        %v4089 = vadd.f32 %v4051, %v4064
        %v4090 = vadd.f32 %v4052, %v4064
        %v4091 = vadd.f32 %v4053, %v4064
        %v4092 = vadd.f32 %v4054, %v4064
        %v4093 = vadd.f32 %v4055, %v4064
        %v4094 = vadd.f32 %v4056, %v4064
        %v4095 = vadd.f32 %v4057, %v4064
        %v4096 = vadd.f32 %v4058, %v4064
        %v4097 = vadd.f32 %v4059, %v4064
        %v4098 = vld [vmem:[%s458] sm:$0xff]
        %v4099 = vld [vmem:[%s458 + $0x8] sm:$0xff]
        %v4100 = vld [vmem:[%s458 + $0x10] sm:$0xff]
        %v4101 = vld [vmem:[%s458 + $0x18] sm:$0xff]
        %v4102 = vld [vmem:[%s458 + $0x20] sm:$0xff]
        %v4103 = vld [vmem:[%s458 + $0x28] sm:$0xff]
        %v4104 = vld [vmem:[%s458 + $0x30] sm:$0xff]
        %v4105 = vld [vmem:[%s458 + $0x38] sm:$0xff]
        %v4106 = vld [vmem:[%s458 + $0x40] sm:$0xff]
        %v4107 = vld [vmem:[%s458 + $0x48] sm:$0xff]
        %v4108 = vld [vmem:[%s458 + $0x50] sm:$0xff]
        %v4109 = vld [vmem:[%s458 + $0x58] sm:$0xff]
        %v4110 = vld [vmem:[%s458 + $0x60] sm:$0xff]
        %v4111 = vld [vmem:[%s458 + $0x68] sm:$0xff]
        %v4112 = vld [vmem:[%s458 + $0x70] sm:$0xff]
        %v4113 = vld [vmem:[%s458 + $0x78] sm:$0xff]
        %v4114 = vld [vmem:[%s458 + $0x80] sm:$0xff]
        %v4115 = vld [vmem:[%s458 + $0x88] sm:$0xff]
        %v4116 = vld [vmem:[%s458 + $0x90] sm:$0xff]
        %v4117 = vld [vmem:[%s458 + $0x98] sm:$0xff]
        %v4118 = vld [vmem:[%s458 + $0xa0] sm:$0xff]
        %v4119 = vld [vmem:[%s458 + $0xa8] sm:$0xff]
        %v4120 = vld [vmem:[%s458 + $0xb0] sm:$0xff]
        %v4121 = vld [vmem:[%s458 + $0xb8] sm:$0xff]
        %v4122 = vld [vmem:[%s458 + $0xc0] sm:$0xff]
        %v4123 = vld [vmem:[%s458 + $0xc8] sm:$0xff]
        %v4124 = vld [vmem:[%s458 + $0xd0] sm:$0xff]
        %v4125 = vld [vmem:[%s458 + $0xd8] sm:$0xff]
        %v4126 = vld [vmem:[%s458 + $0xe0] sm:$0xff]
        %v4127 = vld [vmem:[%s458 + $0xe8] sm:$0xff]
        %v4128 = vld [vmem:[%s458 + $0xf0] sm:$0xff]
        %v4129 = vld [vmem:[%s458 + $0xf8] sm:$0xff]
        %v4130 = vpack.c.bf16 %v4099, %v4098
        %v4131 = vpack.c.bf16 %v4101, %v4100
        %v4132 = vpack.c.bf16 %v4103, %v4102
        %v4133 = vpack.c.bf16 %v4105, %v4104
        %v4134 = vpack.c.bf16 %v4107, %v4106
        %v4135 = vpack.c.bf16 %v4109, %v4108
        %v4136 = vpack.c.bf16 %v4111, %v4110
        %v4137 = vpack.c.bf16 %v4113, %v4112
        %v4138 = vpack.c.bf16 %v4115, %v4114
        %v4139 = vpack.c.bf16 %v4117, %v4116
        %v4140 = vpack.c.bf16 %v4119, %v4118
        %v4141 = vpack.c.bf16 %v4121, %v4120
        %v4142 = vpack.c.bf16 %v4123, %v4122
        %v4143 = vpack.c.bf16 %v4125, %v4124
        %v4144 = vpack.c.bf16 %v4127, %v4126
        %v4145 = vpack.c.bf16 %v4129, %v4128
        %v4146 = vld [vmem:[#allocation11] sm:$0xf]
        %v4147 = vld [vmem:[#allocation11 + $0x4] sm:$0xf]
        %v4148 = vld [vmem:[#allocation11 + $0x8] sm:$0xf]
        %v4149 = vld [vmem:[#allocation11 + $0xc] sm:$0xf]
        %v4150 = vld [vmem:[#allocation11 + $0x10] sm:$0xf]
        %v4151 = vld [vmem:[#allocation11 + $0x14] sm:$0xf]
        %v4152 = vld [vmem:[#allocation11 + $0x18] sm:$0xf]
        %v4153 = vld [vmem:[#allocation11 + $0x1c] sm:$0xf]
        %v4154 = vld [vmem:[#allocation11 + $0x20] sm:$0xf]
        %v4155 = vld [vmem:[#allocation11 + $0x24] sm:$0xf]
        %v4156 = vld [vmem:[#allocation11 + $0x28] sm:$0xf]
        %v4157 = vld [vmem:[#allocation11 + $0x2c] sm:$0xf]
        %v4158 = vld [vmem:[#allocation11 + $0x30] sm:$0xf]
        %v4159 = vld [vmem:[#allocation11 + $0x34] sm:$0xf]
        %v4160 = vld [vmem:[#allocation11 + $0x38] sm:$0xf]
        %v4161 = vld [vmem:[#allocation11 + $0x3c] sm:$0xf]
        %v4178 = vunpack.c.l.b16 %v4146
        %v4179 = vunpack.c.l.b16 %v4147
        %v4180 = vunpack.c.l.b16 %v4148
        %v4181 = vunpack.c.l.b16 %v4149
        %v4182 = vunpack.c.l.b16 %v4150
        %v4183 = vunpack.c.l.b16 %v4151
        %v4184 = vunpack.c.l.b16 %v4152
        %v4185 = vunpack.c.l.b16 %v4153
        %v4186 = vunpack.c.l.b16 %v4154
        %v4187 = vunpack.c.l.b16 %v4155
        %v4188 = vunpack.c.l.b16 %v4156
        %v4189 = vunpack.c.l.b16 %v4157
        %v4190 = vunpack.c.l.b16 %v4158
        %v4191 = vunpack.c.l.b16 %v4159
        %v4192 = vunpack.c.l.b16 %v4160
        %v4193 = vunpack.c.l.b16 %v4161
        %v4194 = vpack.c.b16 %v4179, %v4178
        %v4195 = vpack.c.b16 %v4181, %v4180
        %v4196 = vpack.c.b16 %v4183, %v4182
        %v4197 = vpack.c.b16 %v4185, %v4184
        %v4198 = vpack.c.b16 %v4187, %v4186
        %v4199 = vpack.c.b16 %v4189, %v4188
        %v4200 = vpack.c.b16 %v4191, %v4190
        %v4201 = vpack.c.b16 %v4193, %v4192
        %4210 = vmatprep.subr.bf16.mxu0 0
        %4211 = vmatpush1.bf16.msra.mxu0 %v4194
        %4212 = vmatprep.subr.bf16.mxu0 0
        %4213 = vmatpush1.bf16.msra.mxu0 %v4195
        %4214 = vmatprep.subr.bf16.mxu0 0
        %4215 = vmatpush1.bf16.msra.mxu0 %v4196
        %4216 = vmatprep.subr.bf16.mxu0 0
        %4217 = vmatpush1.bf16.msra.mxu0 %v4197
        %4218 = vmatprep.subr.bf16.mxu0 0
        %4219 = vmatpush1.bf16.msra.mxu0 %v4198
        %4220 = vmatprep.subr.bf16.mxu0 0
        %4221 = vmatpush1.bf16.msra.mxu0 %v4199
        %4222 = vmatprep.subr.bf16.mxu0 0
        %4223 = vmatpush1.bf16.msra.mxu0 %v4200
        %4224 = vmatprep.subr.bf16.mxu0 0
        %4225 = vmatpush1.bf16.msra.mxu0 %v4201
        %4226 = vmatprep.subr.bf16.mxu0 0
        %4227 = vmatpush1.bf16.msra.mxu0 0
        %4228 = vmatprep.subr.bf16.mxu0 0
        %4229 = vmatpush1.bf16.msra.mxu0 0
        %4230 = vmatprep.subr.bf16.mxu0 0
        %4231 = vmatpush1.bf16.msra.mxu0 0
        %4232 = vmatprep.subr.bf16.mxu0 0
        %4233 = vmatpush1.bf16.msra.mxu0 0
        %4234 = vmatprep.subr.bf16.mxu0 0
        %4235 = vmatpush1.bf16.msra.mxu0 0
        %4236 = vmatprep.subr.bf16.mxu0 0
        %4237 = vmatpush1.bf16.msra.mxu0 0
        %4238 = vmatprep.subr.bf16.mxu0 0
        %4239 = vmatpush1.bf16.msra.mxu0 0
        %4240 = vmatprep.subr.bf16.mxu0 0
        %4241 = vmatpush1.bf16.msra.mxu0 0
        %4242 = vmatprep.mubr.bf16.mxu0 0
        %4243 = vmatmul.mubr.bf16.gmra.mrb[0].mxu0 %v4130
        %v4244 = vpop.f32.mrb[0].mxu0
        %v4245 = vadd.f32 0.0, %v4244
        %v4246 = vpop.f32.mrb[0].mxu0
        %v4247 = vpop.f32.mrb[0].mxu0
        %v4248 = vadd.f32 0.0, %v4247
        %v4249 = vpop.f32.mrb[0].mxu0
        %4250 = vmatprep.mubr.bf16.mxu0 0
        %4251 = vmatmul.mubr.bf16.gmra.mrb[0].mxu0 %v4131
        %v4252 = vpop.f32.mrb[0].mxu0
        %v4253 = vadd.f32 0.0, %v4252
        %v4254 = vpop.f32.mrb[0].mxu0
        %v4255 = vpop.f32.mrb[0].mxu0
        %v4256 = vadd.f32 0.0, %v4255
        %v4257 = vpop.f32.mrb[0].mxu0
        %4258 = vmatprep.mubr.bf16.mxu0 0
        %4259 = vmatmul.mubr.bf16.gmra.mrb[0].mxu0 %v4132
        %v4260 = vpop.f32.mrb[0].mxu0
        %v4261 = vadd.f32 0.0, %v4260
        %v4262 = vpop.f32.mrb[0].mxu0
        %v4263 = vpop.f32.mrb[0].mxu0
        %v4264 = vadd.f32 0.0, %v4263
        %v4265 = vpop.f32.mrb[0].mxu0
        %4266 = vmatprep.mubr.bf16.mxu0 0
        %4267 = vmatmul.mubr.bf16.gmra.mrb[0].mxu0 %v4133
        %v4268 = vpop.f32.mrb[0].mxu0
        %v4269 = vadd.f32 0.0, %v4268
        %v4270 = vpop.f32.mrb[0].mxu0
        %v4271 = vpop.f32.mrb[0].mxu0
        %v4272 = vadd.f32 0.0, %v4271
        %v4273 = vpop.f32.mrb[0].mxu0
        %4274 = vmatprep.mubr.bf16.mxu0 0
        %4275 = vmatmul.mubr.bf16.gmra.mrb[0].mxu0 %v4134
        %v4276 = vpop.f32.mrb[0].mxu0
        %v4277 = vadd.f32 0.0, %v4276
        %v4278 = vpop.f32.mrb[0].mxu0
        %v4279 = vpop.f32.mrb[0].mxu0
        %v4280 = vadd.f32 0.0, %v4279
        %v4281 = vpop.f32.mrb[0].mxu0
        %4282 = vmatprep.mubr.bf16.mxu0 0
        %4283 = vmatmul.mubr.bf16.gmra.mrb[0].mxu0 %v4135
        %v4284 = vpop.f32.mrb[0].mxu0
        %v4285 = vadd.f32 0.0, %v4284
        %v4286 = vpop.f32.mrb[0].mxu0
        %v4287 = vpop.f32.mrb[0].mxu0
        %v4288 = vadd.f32 0.0, %v4287
        %v4289 = vpop.f32.mrb[0].mxu0
        %4290 = vmatprep.mubr.bf16.mxu0 0
        %4291 = vmatmul.mubr.bf16.gmra.mrb[0].mxu0 %v4136
        %v4292 = vpop.f32.mrb[0].mxu0
        %v4293 = vadd.f32 0.0, %v4292
        %v4294 = vpop.f32.mrb[0].mxu0
        %v4295 = vpop.f32.mrb[0].mxu0
        %v4296 = vadd.f32 0.0, %v4295
        %v4297 = vpop.f32.mrb[0].mxu0
        %4298 = vmatprep.mubr.bf16.mxu0 0
        %4299 = vmatmul.mubr.bf16.gmra.mrb[0].mxu0 %v4137
        %v4300 = vpop.f32.mrb[0].mxu0
        %v4301 = vadd.f32 0.0, %v4300
        %v4302 = vpop.f32.mrb[0].mxu0
        %v4303 = vpop.f32.mrb[0].mxu0
        %v4304 = vadd.f32 0.0, %v4303
        %v4305 = vpop.f32.mrb[0].mxu0
        %4306 = vmatprep.mubr.bf16.mxu0 0
        %4307 = vmatmul.mubr.bf16.gmra.mrb[0].mxu0 %v4138
        %v4308 = vpop.f32.mrb[0].mxu0
        %v4309 = vadd.f32 0.0, %v4308
        %v4310 = vpop.f32.mrb[0].mxu0
        %v4311 = vpop.f32.mrb[0].mxu0
        %v4312 = vadd.f32 0.0, %v4311
        %v4313 = vpop.f32.mrb[0].mxu0
        %4314 = vmatprep.mubr.bf16.mxu0 0
        %4315 = vmatmul.mubr.bf16.gmra.mrb[0].mxu0 %v4139
        %v4316 = vpop.f32.mrb[0].mxu0
        %v4317 = vadd.f32 0.0, %v4316
        %v4318 = vpop.f32.mrb[0].mxu0
        %v4319 = vpop.f32.mrb[0].mxu0
        %v4320 = vadd.f32 0.0, %v4319
        %v4321 = vpop.f32.mrb[0].mxu0
        %4322 = vmatprep.mubr.bf16.mxu0 0
        %4323 = vmatmul.mubr.bf16.gmra.mrb[0].mxu0 %v4140
        %v4324 = vpop.f32.mrb[0].mxu0
        %v4325 = vadd.f32 0.0, %v4324
        %v4326 = vpop.f32.mrb[0].mxu0
        %v4327 = vpop.f32.mrb[0].mxu0
        %v4328 = vadd.f32 0.0, %v4327
        %v4329 = vpop.f32.mrb[0].mxu0
        %4330 = vmatprep.mubr.bf16.mxu0 0
        %4331 = vmatmul.mubr.bf16.gmra.mrb[0].mxu0 %v4141
        %v4332 = vpop.f32.mrb[0].mxu0
        %v4333 = vadd.f32 0.0, %v4332
        %v4334 = vpop.f32.mrb[0].mxu0
        %v4335 = vpop.f32.mrb[0].mxu0
        %v4336 = vadd.f32 0.0, %v4335
        %v4337 = vpop.f32.mrb[0].mxu0
        %4338 = vmatprep.mubr.bf16.mxu0 0
        %4339 = vmatmul.mubr.bf16.gmra.mrb[0].mxu0 %v4142
        %v4340 = vpop.f32.mrb[0].mxu0
        %v4341 = vadd.f32 0.0, %v4340
        %v4342 = vpop.f32.mrb[0].mxu0
        %v4343 = vpop.f32.mrb[0].mxu0
        %v4344 = vadd.f32 0.0, %v4343
        %v4345 = vpop.f32.mrb[0].mxu0
        %4346 = vmatprep.mubr.bf16.mxu0 0
        %4347 = vmatmul.mubr.bf16.gmra.mrb[0].mxu0 %v4143
        %v4348 = vpop.f32.mrb[0].mxu0
        %v4349 = vadd.f32 0.0, %v4348
        %v4350 = vpop.f32.mrb[0].mxu0
        %v4351 = vpop.f32.mrb[0].mxu0
        %v4352 = vadd.f32 0.0, %v4351
        %v4353 = vpop.f32.mrb[0].mxu0
        %4354 = vmatprep.mubr.bf16.mxu0 0
        %4355 = vmatmul.mubr.bf16.gmra.mrb[0].mxu0 %v4144
        %v4356 = vpop.f32.mrb[0].mxu0
        %v4357 = vadd.f32 0.0, %v4356
        %v4358 = vpop.f32.mrb[0].mxu0
        %v4359 = vpop.f32.mrb[0].mxu0
        %v4360 = vadd.f32 0.0, %v4359
        %v4361 = vpop.f32.mrb[0].mxu0
        %4362 = vmatprep.mubr.bf16.mxu0 0
        %4363 = vmatmul.mubr.bf16.gmra.mrb[0].mxu0 %v4145
        %v4364 = vpop.f32.mrb[0].mxu0
        %v4365 = vadd.f32 0.0, %v4364
        %v4366 = vpop.f32.mrb[0].mxu0
        %v4367 = vpop.f32.mrb[0].mxu0
        %v4368 = vadd.f32 0.0, %v4367
        %v4369 = vpop.f32.mrb[0].mxu0
        %4370 = vdwg.mxu0
        %v4372 = vlaneseq
        %v4373 = vshrl.u32 %v4372, 7
        %v4374 = vsub.s32 0, %v4373
        %v4375 = vrot.slane %v981, %v4374
        %v4377 = vmul.f32 %v4245, %v4375
        %v4378 = vmul.f32 %v4248, %v4375
        %v4379 = vmul.f32 %v4253, %v4375
        %v4380 = vmul.f32 %v4256, %v4375
        %v4381 = vmul.f32 %v4261, %v4375
        %v4382 = vmul.f32 %v4264, %v4375
        %v4383 = vmul.f32 %v4269, %v4375
        %v4384 = vmul.f32 %v4272, %v4375
        %v4385 = vmul.f32 %v4277, %v4375
        %v4386 = vmul.f32 %v4280, %v4375
        %v4387 = vmul.f32 %v4285, %v4375
        %v4388 = vmul.f32 %v4288, %v4375
        %v4389 = vmul.f32 %v4293, %v4375
        %v4390 = vmul.f32 %v4296, %v4375
        %v4391 = vmul.f32 %v4301, %v4375
        %v4392 = vmul.f32 %v4304, %v4375
        %v4393 = vmul.f32 %v4309, %v4375
        %v4394 = vmul.f32 %v4312, %v4375
        %v4395 = vmul.f32 %v4317, %v4375
        %v4396 = vmul.f32 %v4320, %v4375
        %v4397 = vmul.f32 %v4325, %v4375
        %v4398 = vmul.f32 %v4328, %v4375
        %v4399 = vmul.f32 %v4333, %v4375
        %v4400 = vmul.f32 %v4336, %v4375
        %v4401 = vmul.f32 %v4341, %v4375
        %v4402 = vmul.f32 %v4344, %v4375
        %v4403 = vmul.f32 %v4349, %v4375
        %v4404 = vmul.f32 %v4352, %v4375
        %v4405 = vmul.f32 %v4357, %v4375
        %v4406 = vmul.f32 %v4360, %v4375
        %v4407 = vmul.f32 %v4365, %v4375
        %v4408 = vmul.f32 %v4368, %v4375
        %v4410 = vlaneseq
        %v4411 = vshrl.u32 %v4410, 7
        %v4412 = vsub.s32 0, %v4411
        %v4413 = vrot.slane %v982, %v4412
        %v4415 = vadd.f32 %v4377, %v4413
        %v4416 = vadd.f32 %v4378, %v4413
        %v4417 = vadd.f32 %v4379, %v4413
        %v4418 = vadd.f32 %v4380, %v4413
        %v4419 = vadd.f32 %v4381, %v4413
        %v4420 = vadd.f32 %v4382, %v4413
        %v4421 = vadd.f32 %v4383, %v4413
        %v4422 = vadd.f32 %v4384, %v4413
        %v4423 = vadd.f32 %v4385, %v4413
        %v4424 = vadd.f32 %v4386, %v4413
        %v4425 = vadd.f32 %v4387, %v4413
        %v4426 = vadd.f32 %v4388, %v4413
        %v4427 = vadd.f32 %v4389, %v4413
        %v4428 = vadd.f32 %v4390, %v4413
        %v4429 = vadd.f32 %v4391, %v4413
        %v4430 = vadd.f32 %v4392, %v4413
        %v4431 = vadd.f32 %v4393, %v4413
        %v4432 = vadd.f32 %v4394, %v4413
        %v4433 = vadd.f32 %v4395, %v4413
        %v4434 = vadd.f32 %v4396, %v4413
        %v4435 = vadd.f32 %v4397, %v4413
        %v4436 = vadd.f32 %v4398, %v4413
        %v4437 = vadd.f32 %v4399, %v4413
        %v4438 = vadd.f32 %v4400, %v4413
        %v4439 = vadd.f32 %v4401, %v4413
        %v4440 = vadd.f32 %v4402, %v4413
        %v4441 = vadd.f32 %v4403, %v4413
        %v4442 = vadd.f32 %v4404, %v4413
        %v4443 = vadd.f32 %v4405, %v4413
        %v4444 = vadd.f32 %v4406, %v4413
        %v4445 = vadd.f32 %v4407, %v4413
        %v4446 = vadd.f32 %v4408, %v4413
        %v4447 = vadd.f32 %v4066, %v4415
        %v4448 = vadd.f32 %v4067, %v4416
        %v4449 = vadd.f32 %v4068, %v4417
        %v4450 = vadd.f32 %v4069, %v4418
        %v4451 = vadd.f32 %v4070, %v4419
        %v4452 = vadd.f32 %v4071, %v4420
        %v4453 = vadd.f32 %v4072, %v4421
        %v4454 = vadd.f32 %v4073, %v4422
        %v4455 = vadd.f32 %v4074, %v4423
        %v4456 = vadd.f32 %v4075, %v4424
        %v4457 = vadd.f32 %v4076, %v4425
        %v4458 = vadd.f32 %v4077, %v4426
        %v4459 = vadd.f32 %v4078, %v4427
        %v4460 = vadd.f32 %v4079, %v4428
        %v4461 = vadd.f32 %v4080, %v4429
        %v4462 = vadd.f32 %v4081, %v4430
        %v4463 = vadd.f32 %v4082, %v4431
        %v4464 = vadd.f32 %v4083, %v4432
        %v4465 = vadd.f32 %v4084, %v4433
        %v4466 = vadd.f32 %v4085, %v4434
        %v4467 = vadd.f32 %v4086, %v4435
        %v4468 = vadd.f32 %v4087, %v4436
        %v4469 = vadd.f32 %v4088, %v4437
        %v4470 = vadd.f32 %v4089, %v4438
        %v4471 = vadd.f32 %v4090, %v4439
        %v4472 = vadd.f32 %v4091, %v4440
        %v4473 = vadd.f32 %v4092, %v4441
        %v4474 = vadd.f32 %v4093, %v4442
        %v4475 = vadd.f32 %v4094, %v4443
        %v4476 = vadd.f32 %v4095, %v4444
        %v4477 = vadd.f32 %v4096, %v4445
        %v4478 = vadd.f32 %v4097, %v4446
        %v4479 = vmax.f32 %v4447, 0.0
        %v4480 = vmax.f32 %v4448, 0.0
        %v4481 = vmax.f32 %v4449, 0.0
        %v4482 = vmax.f32 %v4450, 0.0
        %v4483 = vmax.f32 %v4451, 0.0
        %v4484 = vmax.f32 %v4452, 0.0
        %v4485 = vmax.f32 %v4453, 0.0
        %v4486 = vmax.f32 %v4454, 0.0
        %v4487 = vmax.f32 %v4455, 0.0
        %v4488 = vmax.f32 %v4456, 0.0
        %v4489 = vmax.f32 %v4457, 0.0
        %v4490 = vmax.f32 %v4458, 0.0
        %v4491 = vmax.f32 %v4459, 0.0
        %v4492 = vmax.f32 %v4460, 0.0
        %v4493 = vmax.f32 %v4461, 0.0
        %v4494 = vmax.f32 %v4462, 0.0
        %v4495 = vmax.f32 %v4463, 0.0
        %v4496 = vmax.f32 %v4464, 0.0
        %v4497 = vmax.f32 %v4465, 0.0
        %v4498 = vmax.f32 %v4466, 0.0
        %v4499 = vmax.f32 %v4467, 0.0
        %v4500 = vmax.f32 %v4468, 0.0
        %v4501 = vmax.f32 %v4469, 0.0
        %v4502 = vmax.f32 %v4470, 0.0
        %v4503 = vmax.f32 %v4471, 0.0
        %v4504 = vmax.f32 %v4472, 0.0
        %v4505 = vmax.f32 %v4473, 0.0
        %v4506 = vmax.f32 %v4474, 0.0
        %v4507 = vmax.f32 %v4475, 0.0
        %v4508 = vmax.f32 %v4476, 0.0
        %v4509 = vmax.f32 %v4477, 0.0
        %v4510 = vmax.f32 %v4478, 0.0
        %4511 = vst [vmem:[%s516] sm:$0xff] %v4479
        %4512 = vst [vmem:[%s516 + $0x8] sm:$0xff] %v4480
        %4513 = vst [vmem:[%s516 + $0x10] sm:$0xff] %v4481
        %4514 = vst [vmem:[%s516 + $0x18] sm:$0xff] %v4482
        %4515 = vst [vmem:[%s516 + $0x20] sm:$0xff] %v4483
        %4516 = vst [vmem:[%s516 + $0x28] sm:$0xff] %v4484
        %4517 = vst [vmem:[%s516 + $0x30] sm:$0xff] %v4485
        %4518 = vst [vmem:[%s516 + $0x38] sm:$0xff] %v4486
        %4519 = vst [vmem:[%s516 + $0x40] sm:$0xff] %v4487
        %4520 = vst [vmem:[%s516 + $0x48] sm:$0xff] %v4488
        %4521 = vst [vmem:[%s516 + $0x50] sm:$0xff] %v4489
        %4522 = vst [vmem:[%s516 + $0x58] sm:$0xff] %v4490
        %4523 = vst [vmem:[%s516 + $0x60] sm:$0xff] %v4491
        %4524 = vst [vmem:[%s516 + $0x68] sm:$0xff] %v4492
        %4525 = vst [vmem:[%s516 + $0x70] sm:$0xff] %v4493
        %4526 = vst [vmem:[%s516 + $0x78] sm:$0xff] %v4494
        %4527 = vst [vmem:[%s516 + $0x80] sm:$0xff] %v4495
        %4528 = vst [vmem:[%s516 + $0x88] sm:$0xff] %v4496
        %4529 = vst [vmem:[%s516 + $0x90] sm:$0xff] %v4497
        %4530 = vst [vmem:[%s516 + $0x98] sm:$0xff] %v4498
        %4531 = vst [vmem:[%s516 + $0xa0] sm:$0xff] %v4499
        %4532 = vst [vmem:[%s516 + $0xa8] sm:$0xff] %v4500
        %4533 = vst [vmem:[%s516 + $0xb0] sm:$0xff] %v4501
        %4534 = vst [vmem:[%s516 + $0xb8] sm:$0xff] %v4502
        %4535 = vst [vmem:[%s516 + $0xc0] sm:$0xff] %v4503
        %4536 = vst [vmem:[%s516 + $0xc8] sm:$0xff] %v4504
        %4537 = vst [vmem:[%s516 + $0xd0] sm:$0xff] %v4505
        %4538 = vst [vmem:[%s516 + $0xd8] sm:$0xff] %v4506
        %4539 = vst [vmem:[%s516 + $0xe0] sm:$0xff] %v4507
        %4540 = vst [vmem:[%s516 + $0xe8] sm:$0xff] %v4508
        %4541 = vst [vmem:[%s516 + $0xf0] sm:$0xff] %v4509
        %4542 = vst [vmem:[%s516 + $0xf8] sm:$0xff] %v4510
        %s4543 = sand.u32 %s318, 1
        %s4544 = scalar_lea.sflag [#allocation5], %s4543
        %s4545 = sand.u32 %s318, 1
        %s4546 = smul.addr %s4545, 256
        %s4547 = scalar_lea.vmem [#allocation12], %s4546
        // Predicated region
        $region93: #{tpu_custom_call.1} parent=71 // pred_check
          %p4548 = pneg %p328
        $region94: #{tpu_custom_call.1} parent=71 // pred_check_branch
          %4550 = sbr.rel (%p4548) target = $region96
        $region95: #{tpu_custom_call.1} parent=71 // pred_region
          %s4552 = ssub.s32 4096, 4096
          %4553 = vsyncadd %s4544, %s4552
          %s4554 = smul.addr %s32, 32
          %s4555 = smul.addr %s4554, 128
          %s4556 = scalar_lea.hbm %s13, %s4555
          %s4557 = sshll.u32 %s4547, 4
          %s4558 = int_to_ptr.vmem [resolvable:$true] %s4557
          %4563 = dma.vmem_to_hbm [thread:$0]  %s4558, 4096, %s4556, %s4544, 128, 128, 8
        $region96: #{tpu_custom_call.1} parent=71 // pred_fallthru
          _
      $region72: #{tpu_custom_call.1} parent=5 // pred_fallthru
        _
      %p4564 = scmp.le.s32.totalorder 2, %s27
      // Predicated region
      $region97: #{tpu_custom_call.1} parent=5 // pred_check
        %p4565 = pneg %p4564
      $region98: #{tpu_custom_call.1} parent=5 // pred_check_branch
        %4567 = sbr.rel (%p4565) target = $region100
      $region99: #{tpu_custom_call.1} parent=5 // pred_region
        %s4568 = ssub.s32 %s27, 2
        // Predicated region
        $region101: #{tpu_custom_call.1} parent=99 // pred_check
          %p4569 = pneg %p334
        $region102: #{tpu_custom_call.1} parent=99 // pred_check_branch
          %4571 = sbr.rel (%p4569) target = $region104
        $region103: #{tpu_custom_call.1} parent=99 // pred_region
          %s4572 = sand.u32 %s319, 1
          %s4573 = scalar_lea.sflag [#allocation5], %s4572
          %s4574 = sand.u32 %s319, 1
          %s4575 = smul.addr %s4574, 256
          %s4576 = scalar_lea.vmem [#allocation12], %s4575
          %4577 = dma.done %s4573, 4096
        $region104: #{tpu_custom_call.1} parent=99 // pred_fallthru
          _
      $region100: #{tpu_custom_call.1} parent=5 // pred_fallthru
        _
    $region6: #{tpu_custom_call.1} parent=1 // loop_footer
      %s31 = sadd.s32 1, %s27
    $region7: #{tpu_custom_call.1} parent=1 // loop_footer_branch
      %26 = sbr.rel target = $region3
    $region8: #{tpu_custom_call.1} parent=1 // loop_exit
      _
    %4578 = vsyncpa [#allocation4], 1
    %s4579 = scalar_lea.sflag [#allocation4], 1
    %4580 = vsyncpa %s4579, 1
    %4581 = vsyncpa [#allocation7], 1
    %4582 = vsyncpa [#allocation10], 1
    %4583 = vsyncpa [#allocation5], 1
    %s4584 = scalar_lea.sflag [#allocation5], 1
    %4585 = vsyncpa %s4584, 1

</llo_original>
